<compile_context>
chip_gen: v6e
topology: v6e:2x2x1
jax: 0.10.0
libtpu: 0.0.40
codegen_flags: <defaults>
</compile_context>

<pallas_src>
import numpy as np
import jax
import jax.numpy as jnp
from jax.experimental import pallas as pl
from jax.experimental.pallas import tpu as pltpu

IN_DIM = 3
OUT_DIM = 10
GROWTH = 8
BLOCK_SIZES = (3, 3)
BOTTLENECK_FACTOR = 4
KERNEL_SIZE = 3
BN_EPS = 1e-5
LANE = 128


def _round_up(x, m):
    return ((x + m - 1) // m) * m


def _pick_tile_m(M):
    """Tile M to its real size; give >=2 grid steps where cheap (v7x megacore)."""
    assert M % 8 == 0, M
    if M % 256 == 0:
        return 128
    if M >= 16 and M % 16 == 0:
        return M // 2
    return M


# ---------------- Pallas kernels ----------------
def _make_mm_kernel(has_pre, has_post, has_add):
    """Fused (optional BN-ReLU) -> matmul -> (optional BN-ReLU) -> (optional residual-add)."""
    def kernel(*refs):
        idx = 0
        x_ref = refs[idx]; idx += 1
        if has_pre:
            ps_ref, pb_ref = refs[idx], refs[idx + 1]; idx += 2
        w_ref = refs[idx]; idx += 1
        if has_post:
            qs_ref, qb_ref = refs[idx], refs[idx + 1]; idx += 2
        if has_add:
            a_ref = refs[idx]; idx += 1
        o_ref = refs[idx]

        x = x_ref[...]
        if has_pre:
            x = jnp.maximum(x.astype(jnp.float32) * ps_ref[...] + pb_ref[...], 0.0)
        acc = jnp.dot(x.astype(w_ref.dtype), w_ref[...],
                      preferred_element_type=jnp.float32)
        if has_post:
            acc = jnp.maximum(acc * qs_ref[...] + qb_ref[...], 0.0)
        if has_add:
            acc = acc + a_ref[...].astype(jnp.float32)
        o_ref[...] = acc.astype(o_ref.dtype)
    return kernel


def pallas_matmul(x, w, pre=None, post=None, add=None, out_dtype=jnp.bfloat16):
    """(M,K) @ (K,128) with fused BN-ReLU pre/post epilogues and optional slab add."""
    M, K = x.shape
    K2, Np = w.shape
    assert K == K2 and Np == LANE and K % LANE == 0 and M % 8 == 0
    tile_m = _pick_tile_m(M)
    grid = (M // tile_m,)

    in_specs = [pl.BlockSpec((tile_m, K), lambda i: (i, 0))]
    args = [x]
    if pre is not None:
        s, b = pre
        assert s.shape == (1, K)
        in_specs += [pl.BlockSpec((1, K), lambda i: (0, 0))] * 2
        args += [s, b]
    in_specs.append(pl.BlockSpec((K, Np), lambda i: (0, 0)))
    args.append(w)
    if post is not None:
        s, b = post
        in_specs += [pl.BlockSpec((1, Np), lambda i: (0, 0))] * 2
        args += [s, b]
    if add is not None:
        in_specs.append(pl.BlockSpec((tile_m, Np), lambda i: (i, 0)))
        args.append(add)

    return pl.pallas_call(
        _make_mm_kernel(pre is not None, post is not None, add is not None),
        out_shape=jax.ShapeDtypeStruct((M, Np), out_dtype),
        grid=grid,
        in_specs=in_specs,
        out_specs=pl.BlockSpec((tile_m, Np), lambda i: (i, 0)),
        compiler_params=pltpu.CompilerParams(dimension_semantics=("parallel",)),
    )(*args)


def _bn_relu_kernel(x_ref, s_ref, b_ref, o_ref):
    x = x_ref[...].astype(jnp.float32)
    o_ref[...] = jnp.maximum(x * s_ref[...] + b_ref[...], 0.0).astype(o_ref.dtype)


def pallas_bn_relu(x, scale, bias):
    """Standalone fused inference BN + ReLU on a (M,128) slab (needed before spatial
    zero-padding of a 3x3 conv, where fusing into the matmul would corrupt the pad)."""
    M, C = x.shape
    assert C == LANE and M % 8 == 0
    tile_m = _pick_tile_m(M)
    return pl.pallas_call(
        _bn_relu_kernel,
        out_shape=jax.ShapeDtypeStruct((M, C), x.dtype),
        grid=(M // tile_m,),
        in_specs=[pl.BlockSpec((tile_m, C), lambda i: (i, 0)),
                  pl.BlockSpec((1, C), lambda i: (0, 0)),
                  pl.BlockSpec((1, C), lambda i: (0, 0))],
        out_specs=pl.BlockSpec((tile_m, C), lambda i: (i, 0)),
        compiler_params=pltpu.CompilerParams(dimension_semantics=("parallel",)),
    )(x, scale, bias)


def _tail_kernel(x_ref, s_ref, b_ref, w_ref, fb_ref, o_ref):
    # BN-ReLU -> global average pool over HW -> fc matmul + bias, all in one call.
    x = x_ref[...].astype(jnp.float32)                       # (N, HW, 128)
    xa = jnp.maximum(x * s_ref[...] + b_ref[...], 0.0)
    feat = jnp.mean(xa, axis=1)                              # (N, 128)
    o_ref[...] = jnp.dot(feat, w_ref[...],
                         preferred_element_type=jnp.float32) + fb_ref[...]


def pallas_tail(x3, scale, bias, fc_w, fc_b):
    N, HW, C = x3.shape
    assert C == LANE and HW % 8 == 0
    return pl.pallas_call(
        _tail_kernel,
        out_shape=jax.ShapeDtypeStruct((N, C), jnp.float32),
        grid=(1,),
        in_specs=[pl.BlockSpec((N, HW, C), lambda i: (0, 0, 0)),
                  pl.BlockSpec((1, 1, C), lambda i: (0, 0, 0)),
                  pl.BlockSpec((1, 1, C), lambda i: (0, 0, 0)),
                  pl.BlockSpec((C, C), lambda i: (0, 0)),
                  pl.BlockSpec((1, C), lambda i: (0, 0))],
        out_specs=pl.BlockSpec((N, C), lambda i: (0, 0)),
    )(x3, scale, bias, fc_w, fc_b)


# ---------------- JAX glue (patch extraction, pooling) ----------------
# TODO(synk): im2col and the 3x3/7x7 windowed pooling remain plain-JAX data-movement glue;
# an in-kernel tap-accumulation conv would remove the remaining duplicated HBM traffic.
def _im2col(x_nhwc, kh, kw, stride, pad):
    if pad:
        x_nhwc = jnp.pad(x_nhwc, ((0, 0), (pad, pad), (pad, pad), (0, 0)))
    N, H, W, C = x_nhwc.shape
    Ho = (H - kh) // stride + 1
    Wo = (W - kw) // stride + 1
    taps = []
    for i in range(kh):
        for j in range(kw):
            taps.append(x_nhwc[:, i:i + stride * Ho:stride, j:j + stride * Wo:stride, :])
    cols = jnp.concatenate(taps, axis=-1)     # tap-major (i, j, c), matches weight layout
    return cols.reshape(N * Ho * Wo, kh * kw * C), (N, Ho, Wo)


def maxpool_3s2p1(x_nhwc):
    return jax.lax.reduce_window(
        x_nhwc, jnp.array(-jnp.inf, dtype=x_nhwc.dtype), jax.lax.max,
        window_dimensions=(1, 3, 3, 1), window_strides=(1, 2, 2, 1),
        padding=((0, 0), (1, 1), (1, 1), (0, 0)))


def avgpool_2s2(x_nhwc):
    N, H, W, C = x_nhwc.shape
    y = x_nhwc.astype(jnp.float32).reshape(N, H // 2, 2, W // 2, 2, C).mean(axis=(2, 4))
    return y.astype(x_nhwc.dtype)


# ---------------- deterministic parameter construction (pre-padded / bf16) ----------------
def _conv_weight(key, kh, kw, cin, cout):
    fan_in = kh * kw * cin
    return jax.random.normal(key, (kh, kw, cin, cout), jnp.float32) / np.sqrt(fan_in)


def _bn_affine(key, c):
    k1, k2, k3, k4 = jax.random.split(key, 4)
    gamma = 1.0 + 0.1 * jax.random.normal(k1, (c,), jnp.float32)
    beta = 0.1 * jax.random.normal(k2, (c,), jnp.float32)
    rmean = 0.1 * jax.random.normal(k3, (c,), jnp.float32)
    rvar = 1.0 + 0.2 * jax.random.uniform(k4, (c,), jnp.float32)
    scale = gamma / jnp.sqrt(rvar + BN_EPS)   # fold running stats into scale/bias
    bias = beta - rmean * scale
    return scale, bias


def _pad_vec(v, n=LANE):
    return jnp.pad(v.astype(jnp.float32), (0, n - v.shape[0])).reshape(1, n)


def _pad_matrix(w, rows=LANE, cols=LANE):
    out = jnp.zeros((rows, cols), jnp.float32)
    return out.at[:w.shape[0], :w.shape[1]].set(w.astype(jnp.float32))


def _pad_conv3x3(w, out_off):
    """(3,3,cin,cout) -> (9*128, 128) bf16 with lane-padded taps and the cout real
    output channels placed at lane offset `out_off` (makes the DenseNet concat a free add)."""
    kh, kw, cin, cout = w.shape
    w2 = jnp.pad(w.reshape(kh * kw, cin, cout).astype(jnp.float32),
                 ((0, 0), (0, LANE - cin), (0, 0)))          # (9, 128, cout)
    wp = jnp.zeros((kh * kw * LANE, LANE), jnp.float32)
    wp = wp.at[:, out_off:out_off + cout].set(w2.reshape(kh * kw * LANE, cout))
    return wp.astype(jnp.bfloat16)


def build_params(key):
    keys = iter(jax.random.split(key, 256))
    nk = lambda: next(keys)
    p = {}

    channels = 2 * GROWTH   # first_features=None -> 2*growth_rate = 16
    stem_w = _conv_weight(nk(), 7, 7, IN_DIM, channels).reshape(7 * 7 * IN_DIM, channels)
    p["stem_w"] = _pad_matrix(stem_w, rows=_round_up(7 * 7 * IN_DIM, LANE),
                              cols=LANE).astype(jnp.bfloat16)
    s, b = _bn_affine(nk(), channels)
    p["stem_s"], p["stem_b"] = _pad_vec(s), _pad_vec(b)

    blocks = []
    for bi, n_layers in enumerate(BLOCK_SIZES):
        layers = []
        for li in range(n_layers):
            in_ch = channels + GROWTH * li
            lp = {}
            next_ch = in_ch
            if int(BOTTLENECK_FACTOR * GROWTH) < in_ch:      # bottleneck=True branch
                next_ch = int(BOTTLENECK_FACTOR * GROWTH)
                s, b = _bn_affine(nk(), in_ch)
                lp["bneck_s"], lp["bneck_b"] = _pad_vec(s), _pad_vec(b)
                bw = _conv_weight(nk(), 1, 1, in_ch, next_ch).reshape(in_ch, next_ch)
                lp["bneck_w"] = _pad_matrix(bw).astype(jnp.bfloat16)
            s, b = _bn_affine(nk(), next_ch)
            lp["bn_s"], lp["bn_b"] = _pad_vec(s), _pad_vec(b)
            w3 = _conv_weight(nk(), KERNEL_SIZE, KERNEL_SIZE, next_ch, GROWTH)
            lp["w3"] = _pad_conv3x3(w3, out_off=in_ch)
            layers.append(lp)
        channels = channels + n_layers * GROWTH
        blk = {"layers": layers}
        if bi < len(BLOCK_SIZES) - 1:
            out_ch = int(np.round(channels * 1.0))           # compression_factor = 1.0
            s, b = _bn_affine(nk(), channels)
            blk["trans_s"], blk["trans_b"] = _pad_vec(s), _pad_vec(b)
            tw = _conv_weight(nk(), 1, 1, channels, out_ch).reshape(channels, out_ch)
            blk["trans_w"] = _pad_matrix(tw).astype(jnp.bfloat16)
            channels = out_ch
        blocks.append(blk)
    p["blocks"] = blocks

    s, b = _bn_affine(nk(), channels)
    p["last_s"] = _pad_vec(s).reshape(1, 1, LANE)
    p["last_b"] = _pad_vec(b).reshape(1, 1, LANE)
    fcw = _conv_weight(nk(), 1, 1, channels, OUT_DIM).reshape(channels, OUT_DIM)
    p["fc_w"] = _pad_matrix(fcw)                             # f32, tail matmul stays f32
    p["fc_b"] = _pad_vec(0.01 * jax.random.normal(nk(), (OUT_DIM,), jnp.float32))
    return p


# ---------------- forward pass ----------------
def densenet_forward(params, x_nchw):
    x = jnp.transpose(x_nchw, (0, 2, 3, 1)).astype(jnp.float32)      # NCHW -> NHWC

    # stem: conv7 s2 p3 (+ fused BN-ReLU epilogue) -> maxpool3 s2 p1
    cols, (N, H, W) = _im2col(x, 7, 7, 2, 3)                          # (N*16*16, 147)
    Kp = params["stem_w"].shape[0]
    cols = jnp.pad(cols, ((0, 0), (0, Kp - cols.shape[1]))).astype(jnp.bfloat16)
    slab = pallas_matmul(cols, params["stem_w"],
                         post=(params["stem_s"], params["stem_b"]))   # (N*16*16, 128) bf16
    x4 = maxpool_3s2p1(slab.reshape(N, H, W, LANE))
    N, H, W = x4.shape[:3]
    slab = x4.reshape(N * H * W, LANE)

    for blk in params["blocks"]:
        # DenseBlock
        for lp in blk["layers"]:
            if "bneck_w" in lp:
                # fused: BN-ReLU -> 1x1 bottleneck conv -> BN-ReLU (post-activated intermediate)
                act = pallas_matmul(slab, lp["bneck_w"],
                                    pre=(lp["bneck_s"], lp["bneck_b"]),
                                    post=(lp["bn_s"], lp["bn_b"]))
            else:
                # BN-ReLU must precede the conv's spatial zero padding
                act = pallas_bn_relu(slab, lp["bn_s"], lp["bn_b"])
            cols, _ = _im2col(act.reshape(N, H, W, LANE), 3, 3, 1, KERNEL_SIZE // 2)
            # 3x3 conv; weight padded to place outputs at lane offset C_in and the previous
            # slab is added in-kernel => torch.cat((x, out), 1) for free, lane-dense output.
            slab = pallas_matmul(cols, lp["w3"], add=slab)
        # TransitionLayer: fused BN-ReLU -> 1x1 conv, then avgpool2
        if "trans_w" in blk:
            y = pallas_matmul(slab, blk["trans_w"],
                              pre=(blk["trans_s"], blk["trans_b"]))
            y4 = avgpool_2s2(y.reshape(N, H, W, LANE))
            N, H, W = y4.shape[:3]
            slab = y4.reshape(N * H * W, LANE)

    # tail: BN -> ReLU -> global avg pool -> fc (1x1 conv w/ bias) -> squeeze, one call
    logits = pallas_tail(slab.reshape(N, H * W, LANE),
                         params["last_s"], params["last_b"],
                         params["fc_w"], params["fc_b"])
    return logits[:, :OUT_DIM]                                        # un-pad once at the end


if __name__ == "__main__":
    key = jax.random.PRNGKey(0)
    pkey, xkey = jax.random.split(key)
    params = build_params(pkey)
    x = jax.random.normal(xkey, (2, 3, 32, 32), jnp.float32)          # NCHW like PyTorch

    fwd = jax.jit(densenet_forward)
    out = fwd(params, x)
    out = jax.block_until_ready(out)

    assert out.shape == (2, OUT_DIM), out.shape
    assert bool(jnp.all(jnp.isfinite(out)))
    print("KERNEL_OK")
</pallas_src>

<mosaic_0001>
module attributes {stable_mosaic.version = 11 : i64} {
  func.func @kernel(%arg0: i32, %arg1: memref<128x256xbf16, #tpu.memory_space<vmem>>, %arg2: memref<256x128xbf16, #tpu.memory_space<vmem>>, %arg3: memref<1x128xf32, #tpu.memory_space<vmem>>, %arg4: memref<1x128xf32, #tpu.memory_space<vmem>>, %arg5: memref<128x128xbf16, #tpu.memory_space<vmem>>) attributes {dimension_semantics = [#tpu.dimension_semantics<parallel>], iteration_bounds = array<i64: 4>, scalar_prefetch = 0 : i64, scratch_operands = 0 : i64, tpu.core_type = #tpu.core_type<tc>, window_params = [{transform_indices = @transform_0, window_bounds = array<i64: 128, 256>}, {pipeline_mode = #tpu.pipeline_mode<synchronous>, transform_indices = @transform_1, window_bounds = array<i64: 256, 128>}, {pipeline_mode = #tpu.pipeline_mode<synchronous>, transform_indices = @transform_2, window_bounds = array<i64: 1, 128>}, {pipeline_mode = #tpu.pipeline_mode<synchronous>, transform_indices = @transform_3, window_bounds = array<i64: 1, 128>}, {transform_indices = @transform_4, window_bounds = array<i64: 128, 128>}]} {
    %c0 = arith.constant 0 : index
    %c0_0 = arith.constant 0 : index
    %0 = vector.load %arg1[%c0, %c0_0] : memref<128x256xbf16, #tpu.memory_space<vmem>>, vector<128x256xbf16>
    %c0_1 = arith.constant 0 : index
    %c0_2 = arith.constant 0 : index
    %1 = vector.load %arg2[%c0_1, %c0_2] : memref<256x128xbf16, #tpu.memory_space<vmem>>, vector<256x128xbf16>
    %cst = arith.constant dense<0.000000e+00> : vector<128x128xf32>
    %2 = tpu.matmul %0, %1, %cst {dimension_numbers = #tpu.dot_dimension_numbers<[1], [0], [0], [1], [0, 0, 1, 1], [], []>} : vector<128x256xbf16>, vector<256x128xbf16>, vector<128x128xf32> -> vector<128x128xf32>
    %c0_3 = arith.constant 0 : index
    %c0_4 = arith.constant 0 : index
    %3 = vector.load %arg3[%c0_3, %c0_4] : memref<1x128xf32, #tpu.memory_space<vmem>>, vector<1x128xf32>
    %4 = vector.broadcast %3 : vector<1x128xf32> to vector<128x128xf32>
    %5 = arith.mulf %2, %4 : vector<128x128xf32>
    %c0_5 = arith.constant 0 : index
    %c0_6 = arith.constant 0 : index
    %6 = vector.load %arg4[%c0_5, %c0_6] : memref<1x128xf32, #tpu.memory_space<vmem>>, vector<1x128xf32>
    %7 = vector.broadcast %6 : vector<1x128xf32> to vector<128x128xf32>
    %8 = arith.addf %5, %7 : vector<128x128xf32>
    %cst_7 = arith.constant 0.000000e+00 : f32
    %9 = vector.broadcast %cst_7 : f32 to vector<128x128xf32>
    %10 = arith.maximumf %8, %9 : vector<128x128xf32>
    %11 = arith.truncf %10 : vector<128x128xf32> to vector<128x128xbf16>
    %c0_8 = arith.constant 0 : index
    %c0_9 = arith.constant 0 : index
    %12 = vector.load %arg5[%c0_8, %c0_9] : memref<128x128xbf16, #tpu.memory_space<vmem>>, vector<128x128xbf16>
    tpu.vector_store %arg5[%c0_8, %c0_9], %11 {strides = array<i32>} : memref<128x128xbf16, #tpu.memory_space<vmem>>, vector<128x128xbf16>,
    return
  }
  func.func @transform_0(%arg0: i32) -> (i32, i32) {
    %c0_i32 = arith.constant 0 : i32
    %c0_i32_0 = arith.constant 0 : i32
    return %arg0, %c0_i32 : i32, i32
  }
  func.func @transform_1(%arg0: i32) -> (i32, i32) {
    %c0_i32 = arith.constant 0 : i32
    %c0_i32_0 = arith.constant 0 : i32
    %c0_i32_1 = arith.constant 0 : i32
    return %c0_i32, %c0_i32_0 : i32, i32
  }
  func.func @transform_2(%arg0: i32) -> (i32, i32) {
    %c0_i32 = arith.constant 0 : i32
    %c0_i32_0 = arith.constant 0 : i32
    %c0_i32_1 = arith.constant 0 : i32
    return %c0_i32, %c0_i32_0 : i32, i32
  }
  func.func @transform_3(%arg0: i32) -> (i32, i32) {
    %c0_i32 = arith.constant 0 : i32
    %c0_i32_0 = arith.constant 0 : i32
    %c0_i32_1 = arith.constant 0 : i32
    return %c0_i32, %c0_i32_0 : i32, i32
  }
  func.func @transform_4(%arg0: i32) -> (i32, i32) {
    %c0_i32 = arith.constant 0 : i32
    %c0_i32_0 = arith.constant 0 : i32
    return %arg0, %c0_i32 : i32, i32
  }
}

module attributes {stable_mosaic.version = 11 : i64} {
  func.func @_bn_relu_kernel(%arg0: i32, %arg1: memref<64x128xbf16, #tpu.memory_space<vmem>>, %arg2: memref<1x128xf32, #tpu.memory_space<vmem>>, %arg3: memref<1x128xf32, #tpu.memory_space<vmem>>, %arg4: memref<64x128xbf16, #tpu.memory_space<vmem>>) attributes {dimension_semantics = [#tpu.dimension_semantics<parallel>], iteration_bounds = array<i64: 2>, scalar_prefetch = 0 : i64, scratch_operands = 0 : i64, tpu.core_type = #tpu.core_type<tc>, window_params = [{transform_indices = @transform_0, window_bounds = array<i64: 64, 128>}, {pipeline_mode = #tpu.pipeline_mode<synchronous>, transform_indices = @transform_1, window_bounds = array<i64: 1, 128>}, {pipeline_mode = #tpu.pipeline_mode<synchronous>, transform_indices = @transform_2, window_bounds = array<i64: 1, 128>}, {transform_indices = @transform_3, window_bounds = array<i64: 64, 128>}]} {
    %c0 = arith.constant 0 : index
    %c0_0 = arith.constant 0 : index
    %0 = vector.load %arg1[%c0, %c0_0] : memref<64x128xbf16, #tpu.memory_space<vmem>>, vector<64x128xbf16>
    %1 = arith.extf %0 : vector<64x128xbf16> to vector<64x128xf32>
    %c0_1 = arith.constant 0 : index
    %c0_2 = arith.constant 0 : index
    %2 = vector.load %arg2[%c0_1, %c0_2] : memref<1x128xf32, #tpu.memory_space<vmem>>, vector<1x128xf32>
    %3 = vector.broadcast %2 : vector<1x128xf32> to vector<64x128xf32>
    %4 = arith.mulf %1, %3 : vector<64x128xf32>
    %c0_3 = arith.constant 0 : index
    %c0_4 = arith.constant 0 : index
    %5 = vector.load %arg3[%c0_3, %c0_4] : memref<1x128xf32, #tpu.memory_space<vmem>>, vector<1x128xf32>
    %6 = vector.broadcast %5 : vector<1x128xf32> to vector<64x128xf32>
    %7 = arith.addf %4, %6 : vector<64x128xf32>
    %cst = arith.constant 0.000000e+00 : f32
    %8 = vector.broadcast %cst : f32 to vector<64x128xf32>
    %9 = arith.maximumf %7, %8 : vector<64x128xf32>
    %10 = arith.truncf %9 : vector<64x128xf32> to vector<64x128xbf16>
    %c0_5 = arith.constant 0 : index
    %c0_6 = arith.constant 0 : index
    %11 = vector.load %arg4[%c0_5, %c0_6] : memref<64x128xbf16, #tpu.memory_space<vmem>>, vector<64x128xbf16>
    tpu.vector_store %arg4[%c0_5, %c0_6], %10 {strides = array<i32>} : memref<64x128xbf16, #tpu.memory_space<vmem>>, vector<64x128xbf16>,
    return
  }
  func.func @transform_0(%arg0: i32) -> (i32, i32) {
    %c0_i32 = arith.constant 0 : i32
    %c0_i32_0 = arith.constant 0 : i32
    return %arg0, %c0_i32 : i32, i32
  }
  func.func @transform_1(%arg0: i32) -> (i32, i32) {
    %c0_i32 = arith.constant 0 : i32
    %c0_i32_0 = arith.constant 0 : i32
    %c0_i32_1 = arith.constant 0 : i32
    return %c0_i32, %c0_i32_0 : i32, i32
  }
  func.func @transform_2(%arg0: i32) -> (i32, i32) {
    %c0_i32 = arith.constant 0 : i32
    %c0_i32_0 = arith.constant 0 : i32
    %c0_i32_1 = arith.constant 0 : i32
    return %c0_i32, %c0_i32_0 : i32, i32
  }
  func.func @transform_3(%arg0: i32) -> (i32, i32) {
    %c0_i32 = arith.constant 0 : i32
    %c0_i32_0 = arith.constant 0 : i32
    return %arg0, %c0_i32 : i32, i32
  }
}

module attributes {stable_mosaic.version = 11 : i64} {
  func.func @kernel(%arg0: i32, %arg1: memref<64x1152xbf16, #tpu.memory_space<vmem>>, %arg2: memref<1152x128xbf16, #tpu.memory_space<vmem>>, %arg3: memref<64x128xbf16, #tpu.memory_space<vmem>>, %arg4: memref<64x128xbf16, #tpu.memory_space<vmem>>) attributes {dimension_semantics = [#tpu.dimension_semantics<parallel>], iteration_bounds = array<i64: 2>, scalar_prefetch = 0 : i64, scratch_operands = 0 : i64, tpu.core_type = #tpu.core_type<tc>, window_params = [{transform_indices = @transform_0, window_bounds = array<i64: 64, 1152>}, {pipeline_mode = #tpu.pipeline_mode<synchronous>, transform_indices = @transform_1, window_bounds = array<i64: 1152, 128>}, {transform_indices = @transform_2, window_bounds = array<i64: 64, 128>}, {transform_indices = @transform_3, window_bounds = array<i64: 64, 128>}]} {
    %c0 = arith.constant 0 : index
    %c0_0 = arith.constant 0 : index
    %0 = vector.load %arg1[%c0, %c0_0] : memref<64x1152xbf16, #tpu.memory_space<vmem>>, vector<64x1152xbf16>
    %c0_1 = arith.constant 0 : index
    %c0_2 = arith.constant 0 : index
    %1 = vector.load %arg2[%c0_1, %c0_2] : memref<1152x128xbf16, #tpu.memory_space<vmem>>, vector<1152x128xbf16>
    %cst = arith.constant dense<0.000000e+00> : vector<64x128xf32>
    %2 = tpu.matmul %0, %1, %cst {dimension_numbers = #tpu.dot_dimension_numbers<[1], [0], [0], [1], [0, 0, 1, 1], [], []>} : vector<64x1152xbf16>, vector<1152x128xbf16>, vector<64x128xf32> -> vector<64x128xf32>
    %c0_3 = arith.constant 0 : index
    %c0_4 = arith.constant 0 : index
    %3 = vector.load %arg3[%c0_3, %c0_4] : memref<64x128xbf16, #tpu.memory_space<vmem>>, vector<64x128xbf16>
    %4 = arith.extf %3 : vector<64x128xbf16> to vector<64x128xf32>
    %5 = arith.addf %2, %4 : vector<64x128xf32>
    %6 = arith.truncf %5 : vector<64x128xf32> to vector<64x128xbf16>
    %c0_5 = arith.constant 0 : index
    %c0_6 = arith.constant 0 : index
    %7 = vector.load %arg4[%c0_5, %c0_6] : memref<64x128xbf16, #tpu.memory_space<vmem>>, vector<64x128xbf16>
    tpu.vector_store %arg4[%c0_5, %c0_6], %6 {strides = array<i32>} : memref<64x128xbf16, #tpu.memory_space<vmem>>, vector<64x128xbf16>,
    return
  }
  func.func @transform_0(%arg0: i32) -> (i32, i32) {
    %c0_i32 = arith.constant 0 : i32
    %c0_i32_0 = arith.constant 0 : i32
    return %arg0, %c0_i32 : i32, i32
  }
  func.func @transform_1(%arg0: i32) -> (i32, i32) {
    %c0_i32 = arith.constant 0 : i32
    %c0_i32_0 = arith.constant 0 : i32
    %c0_i32_1 = arith.constant 0 : i32
    return %c0_i32, %c0_i32_0 : i32, i32
  }
  func.func @transform_2(%arg0: i32) -> (i32, i32) {
    %c0_i32 = arith.constant 0 : i32
    %c0_i32_0 = arith.constant 0 : i32
    return %arg0, %c0_i32 : i32, i32
  }
  func.func @transform_3(%arg0: i32) -> (i32, i32) {
    %c0_i32 = arith.constant 0 : i32
    %c0_i32_0 = arith.constant 0 : i32
    return %arg0, %c0_i32 : i32, i32
  }
}

module attributes {stable_mosaic.version = 11 : i64} {
  func.func @kernel(%arg0: i32, %arg1: memref<64x128xbf16, #tpu.memory_space<vmem>>, %arg2: memref<1x128xf32, #tpu.memory_space<vmem>>, %arg3: memref<1x128xf32, #tpu.memory_space<vmem>>, %arg4: memref<128x128xbf16, #tpu.memory_space<vmem>>, %arg5: memref<64x128xbf16, #tpu.memory_space<vmem>>) attributes {dimension_semantics = [#tpu.dimension_semantics<parallel>], iteration_bounds = array<i64: 2>, scalar_prefetch = 0 : i64, scratch_operands = 0 : i64, tpu.core_type = #tpu.core_type<tc>, window_params = [{transform_indices = @transform_0, window_bounds = array<i64: 64, 128>}, {pipeline_mode = #tpu.pipeline_mode<synchronous>, transform_indices = @transform_1, window_bounds = array<i64: 1, 128>}, {pipeline_mode = #tpu.pipeline_mode<synchronous>, transform_indices = @transform_2, window_bounds = array<i64: 1, 128>}, {pipeline_mode = #tpu.pipeline_mode<synchronous>, transform_indices = @transform_3, window_bounds = array<i64: 128, 128>}, {transform_indices = @transform_4, window_bounds = array<i64: 64, 128>}]} {
    %c0 = arith.constant 0 : index
    %c0_0 = arith.constant 0 : index
    %0 = vector.load %arg1[%c0, %c0_0] : memref<64x128xbf16, #tpu.memory_space<vmem>>, vector<64x128xbf16>
    %1 = arith.extf %0 : vector<64x128xbf16> to vector<64x128xf32>
    %c0_1 = arith.constant 0 : index
    %c0_2 = arith.constant 0 : index
    %2 = vector.load %arg2[%c0_1, %c0_2] : memref<1x128xf32, #tpu.memory_space<vmem>>, vector<1x128xf32>
    %3 = vector.broadcast %2 : vector<1x128xf32> to vector<64x128xf32>
    %4 = arith.mulf %1, %3 : vector<64x128xf32>
    %c0_3 = arith.constant 0 : index
    %c0_4 = arith.constant 0 : index
    %5 = vector.load %arg3[%c0_3, %c0_4] : memref<1x128xf32, #tpu.memory_space<vmem>>, vector<1x128xf32>
    %6 = vector.broadcast %5 : vector<1x128xf32> to vector<64x128xf32>
    %7 = arith.addf %4, %6 : vector<64x128xf32>
    %cst = arith.constant 0.000000e+00 : f32
    %8 = vector.broadcast %cst : f32 to vector<64x128xf32>
    %9 = arith.maximumf %7, %8 : vector<64x128xf32>
    %10 = arith.truncf %9 : vector<64x128xf32> to vector<64x128xbf16>
    %c0_5 = arith.constant 0 : index
    %c0_6 = arith.constant 0 : index
    %11 = vector.load %arg4[%c0_5, %c0_6] : memref<128x128xbf16, #tpu.memory_space<vmem>>, vector<128x128xbf16>
    %cst_7 = arith.constant dense<0.000000e+00> : vector<64x128xf32>
    %12 = tpu.matmul %10, %11, %cst_7 {dimension_numbers = #tpu.dot_dimension_numbers<[1], [0], [0], [1], [0, 0, 1, 1], [], []>} : vector<64x128xbf16>, vector<128x128xbf16>, vector<64x128xf32> -> vector<64x128xf32>
    %13 = arith.truncf %12 : vector<64x128xf32> to vector<64x128xbf16>
    %c0_8 = arith.constant 0 : index
    %c0_9 = arith.constant 0 : index
    %14 = vector.load %arg5[%c0_8, %c0_9] : memref<64x128xbf16, #tpu.memory_space<vmem>>, vector<64x128xbf16>
    tpu.vector_store %arg5[%c0_8, %c0_9], %13 {strides = array<i32>} : memref<64x128xbf16, #tpu.memory_space<vmem>>, vector<64x128xbf16>,
    return
  }
  func.func @transform_0(%arg0: i32) -> (i32, i32) {
    %c0_i32 = arith.constant 0 : i32
    %c0_i32_0 = arith.constant 0 : i32
    return %arg0, %c0_i32 : i32, i32
  }
  func.func @transform_1(%arg0: i32) -> (i32, i32) {
    %c0_i32 = arith.constant 0 : i32
    %c0_i32_0 = arith.constant 0 : i32
    %c0_i32_1 = arith.constant 0 : i32
    return %c0_i32, %c0_i32_0 : i32, i32
  }
  func.func @transform_2(%arg0: i32) -> (i32, i32) {
    %c0_i32 = arith.constant 0 : i32
    %c0_i32_0 = arith.constant 0 : i32
    %c0_i32_1 = arith.constant 0 : i32
    return %c0_i32, %c0_i32_0 : i32, i32
  }
  func.func @transform_3(%arg0: i32) -> (i32, i32) {
    %c0_i32 = arith.constant 0 : i32
    %c0_i32_0 = arith.constant 0 : i32
    %c0_i32_1 = arith.constant 0 : i32
    return %c0_i32, %c0_i32_0 : i32, i32
  }
  func.func @transform_4(%arg0: i32) -> (i32, i32) {
    %c0_i32 = arith.constant 0 : i32
    %c0_i32_0 = arith.constant 0 : i32
    return %arg0, %c0_i32 : i32, i32
  }
}

module attributes {stable_mosaic.version = 11 : i64} {
  func.func @kernel(%arg0: i32, %arg1: memref<16x128xbf16, #tpu.memory_space<vmem>>, %arg2: memref<1x128xf32, #tpu.memory_space<vmem>>, %arg3: memref<1x128xf32, #tpu.memory_space<vmem>>, %arg4: memref<128x128xbf16, #tpu.memory_space<vmem>>, %arg5: memref<1x128xf32, #tpu.memory_space<vmem>>, %arg6: memref<1x128xf32, #tpu.memory_space<vmem>>, %arg7: memref<16x128xbf16, #tpu.memory_space<vmem>>) attributes {dimension_semantics = [#tpu.dimension_semantics<parallel>], iteration_bounds = array<i64: 2>, scalar_prefetch = 0 : i64, scratch_operands = 0 : i64, tpu.core_type = #tpu.core_type<tc>, window_params = [{transform_indices = @transform_0, window_bounds = array<i64: 16, 128>}, {pipeline_mode = #tpu.pipeline_mode<synchronous>, transform_indices = @transform_1, window_bounds = array<i64: 1, 128>}, {pipeline_mode = #tpu.pipeline_mode<synchronous>, transform_indices = @transform_2, window_bounds = array<i64: 1, 128>}, {pipeline_mode = #tpu.pipeline_mode<synchronous>, transform_indices = @transform_3, window_bounds = array<i64: 128, 128>}, {pipeline_mode = #tpu.pipeline_mode<synchronous>, transform_indices = @transform_4, window_bounds = array<i64: 1, 128>}, {pipeline_mode = #tpu.pipeline_mode<synchronous>, transform_indices = @transform_5, window_bounds = array<i64: 1, 128>}, {transform_indices = @transform_6, window_bounds = array<i64: 16, 128>}]} {
    %c0 = arith.constant 0 : index
    %c0_0 = arith.constant 0 : index
    %0 = vector.load %arg1[%c0, %c0_0] : memref<16x128xbf16, #tpu.memory_space<vmem>>, vector<16x128xbf16>
    %1 = arith.extf %0 : vector<16x128xbf16> to vector<16x128xf32>
    %c0_1 = arith.constant 0 : index
    %c0_2 = arith.constant 0 : index
    %2 = vector.load %arg2[%c0_1, %c0_2] : memref<1x128xf32, #tpu.memory_space<vmem>>, vector<1x128xf32>
    %3 = vector.broadcast %2 : vector<1x128xf32> to vector<16x128xf32>
    %4 = arith.mulf %1, %3 : vector<16x128xf32>
    %c0_3 = arith.constant 0 : index
    %c0_4 = arith.constant 0 : index
    %5 = vector.load %arg3[%c0_3, %c0_4] : memref<1x128xf32, #tpu.memory_space<vmem>>, vector<1x128xf32>
    %6 = vector.broadcast %5 : vector<1x128xf32> to vector<16x128xf32>
    %7 = arith.addf %4, %6 : vector<16x128xf32>
    %cst = arith.constant 0.000000e+00 : f32
    %8 = vector.broadcast %cst : f32 to vector<16x128xf32>
    %9 = arith.maximumf %7, %8 : vector<16x128xf32>
    %10 = arith.truncf %9 : vector<16x128xf32> to vector<16x128xbf16>
    %c0_5 = arith.constant 0 : index
    %c0_6 = arith.constant 0 : index
    %11 = vector.load %arg4[%c0_5, %c0_6] : memref<128x128xbf16, #tpu.memory_space<vmem>>, vector<128x128xbf16>
    %cst_7 = arith.constant dense<0.000000e+00> : vector<16x128xf32>
    %12 = tpu.matmul %10, %11, %cst_7 {dimension_numbers = #tpu.dot_dimension_numbers<[1], [0], [0], [1], [0, 0, 1, 1], [], []>} : vector<16x128xbf16>, vector<128x128xbf16>, vector<16x128xf32> -> vector<16x128xf32>
    %c0_8 = arith.constant 0 : index
    %c0_9 = arith.constant 0 : index
    %13 = vector.load %arg5[%c0_8, %c0_9] : memref<1x128xf32, #tpu.memory_space<vmem>>, vector<1x128xf32>
    %14 = vector.broadcast %13 : vector<1x128xf32> to vector<16x128xf32>
    %15 = arith.mulf %12, %14 : vector<16x128xf32>
    %c0_10 = arith.constant 0 : index
    %c0_11 = arith.constant 0 : index
    %16 = vector.load %arg6[%c0_10, %c0_11] : memref<1x128xf32, #tpu.memory_space<vmem>>, vector<1x128xf32>
    %17 = vector.broadcast %16 : vector<1x128xf32> to vector<16x128xf32>
    %18 = arith.addf %15, %17 : vector<16x128xf32>
    %cst_12 = arith.constant 0.000000e+00 : f32
    %19 = vector.broadcast %cst_12 : f32 to vector<16x128xf32>
    %20 = arith.maximumf %18, %19 : vector<16x128xf32>
    %21 = arith.truncf %20 : vector<16x128xf32> to vector<16x128xbf16>
    %c0_13 = arith.constant 0 : index
    %c0_14 = arith.constant 0 : index
    %22 = vector.load %arg7[%c0_13, %c0_14] : memref<16x128xbf16, #tpu.memory_space<vmem>>, vector<16x128xbf16>
    tpu.vector_store %arg7[%c0_13, %c0_14], %21 {strides = array<i32>} : memref<16x128xbf16, #tpu.memory_space<vmem>>, vector<16x128xbf16>,
    return
  }
  func.func @transform_0(%arg0: i32) -> (i32, i32) {
    %c0_i32 = arith.constant 0 : i32
    %c0_i32_0 = arith.constant 0 : i32
    return %arg0, %c0_i32 : i32, i32
  }
  func.func @transform_1(%arg0: i32) -> (i32, i32) {
    %c0_i32 = arith.constant 0 : i32
    %c0_i32_0 = arith.constant 0 : i32
    %c0_i32_1 = arith.constant 0 : i32
    return %c0_i32, %c0_i32_0 : i32, i32
  }
  func.func @transform_2(%arg0: i32) -> (i32, i32) {
    %c0_i32 = arith.constant 0 : i32
    %c0_i32_0 = arith.constant 0 : i32
    %c0_i32_1 = arith.constant 0 : i32
    return %c0_i32, %c0_i32_0 : i32, i32
  }
  func.func @transform_3(%arg0: i32) -> (i32, i32) {
    %c0_i32 = arith.constant 0 : i32
    %c0_i32_0 = arith.constant 0 : i32
    %c0_i32_1 = arith.constant 0 : i32
    return %c0_i32, %c0_i32_0 : i32, i32
  }
  func.func @transform_4(%arg0: i32) -> (i32, i32) {
    %c0_i32 = arith.constant 0 : i32
    %c0_i32_0 = arith.constant 0 : i32
    %c0_i32_1 = arith.constant 0 : i32
    return %c0_i32, %c0_i32_0 : i32, i32
  }
  func.func @transform_5(%arg0: i32) -> (i32, i32) {
    %c0_i32 = arith.constant 0 : i32
    %c0_i32_0 = arith.constant 0 : i32
    %c0_i32_1 = arith.constant 0 : i32
    return %c0_i32, %c0_i32_0 : i32, i32
  }
  func.func @transform_6(%arg0: i32) -> (i32, i32) {
    %c0_i32 = arith.constant 0 : i32
    %c0_i32_0 = arith.constant 0 : i32
    return %arg0, %c0_i32 : i32, i32
  }
}

module attributes {stable_mosaic.version = 11 : i64} {
  func.func @kernel(%arg0: i32, %arg1: memref<16x1152xbf16, #tpu.memory_space<vmem>>, %arg2: memref<1152x128xbf16, #tpu.memory_space<vmem>>, %arg3: memref<16x128xbf16, #tpu.memory_space<vmem>>, %arg4: memref<16x128xbf16, #tpu.memory_space<vmem>>) attributes {dimension_semantics = [#tpu.dimension_semantics<parallel>], iteration_bounds = array<i64: 2>, scalar_prefetch = 0 : i64, scratch_operands = 0 : i64, tpu.core_type = #tpu.core_type<tc>, window_params = [{transform_indices = @transform_0, window_bounds = array<i64: 16, 1152>}, {pipeline_mode = #tpu.pipeline_mode<synchronous>, transform_indices = @transform_1, window_bounds = array<i64: 1152, 128>}, {transform_indices = @transform_2, window_bounds = array<i64: 16, 128>}, {transform_indices = @transform_3, window_bounds = array<i64: 16, 128>}]} {
    %c0 = arith.constant 0 : index
    %c0_0 = arith.constant 0 : index
    %0 = vector.load %arg1[%c0, %c0_0] : memref<16x1152xbf16, #tpu.memory_space<vmem>>, vector<16x1152xbf16>
    %c0_1 = arith.constant 0 : index
    %c0_2 = arith.constant 0 : index
    %1 = vector.load %arg2[%c0_1, %c0_2] : memref<1152x128xbf16, #tpu.memory_space<vmem>>, vector<1152x128xbf16>
    %cst = arith.constant dense<0.000000e+00> : vector<16x128xf32>
    %2 = tpu.matmul %0, %1, %cst {dimension_numbers = #tpu.dot_dimension_numbers<[1], [0], [0], [1], [0, 0, 1, 1], [], []>} : vector<16x1152xbf16>, vector<1152x128xbf16>, vector<16x128xf32> -> vector<16x128xf32>
    %c0_3 = arith.constant 0 : index
    %c0_4 = arith.constant 0 : index
    %3 = vector.load %arg3[%c0_3, %c0_4] : memref<16x128xbf16, #tpu.memory_space<vmem>>, vector<16x128xbf16>
    %4 = arith.extf %3 : vector<16x128xbf16> to vector<16x128xf32>
    %5 = arith.addf %2, %4 : vector<16x128xf32>
    %6 = arith.truncf %5 : vector<16x128xf32> to vector<16x128xbf16>
    %c0_5 = arith.constant 0 : index
    %c0_6 = arith.constant 0 : index
    %7 = vector.load %arg4[%c0_5, %c0_6] : memref<16x128xbf16, #tpu.memory_space<vmem>>, vector<16x128xbf16>
    tpu.vector_store %arg4[%c0_5, %c0_6], %6 {strides = array<i32>} : memref<16x128xbf16, #tpu.memory_space<vmem>>, vector<16x128xbf16>,
    return
  }
  func.func @transform_0(%arg0: i32) -> (i32, i32) {
    %c0_i32 = arith.constant 0 : i32
    %c0_i32_0 = arith.constant 0 : i32
    return %arg0, %c0_i32 : i32, i32
  }
  func.func @transform_1(%arg0: i32) -> (i32, i32) {
    %c0_i32 = arith.constant 0 : i32
    %c0_i32_0 = arith.constant 0 : i32
    %c0_i32_1 = arith.constant 0 : i32
    return %c0_i32, %c0_i32_0 : i32, i32
  }
  func.func @transform_2(%arg0: i32) -> (i32, i32) {
    %c0_i32 = arith.constant 0 : i32
    %c0_i32_0 = arith.constant 0 : i32
    return %arg0, %c0_i32 : i32, i32
  }
  func.func @transform_3(%arg0: i32) -> (i32, i32) {
    %c0_i32 = arith.constant 0 : i32
    %c0_i32_0 = arith.constant 0 : i32
    return %arg0, %c0_i32 : i32, i32
  }
}

module attributes {stable_mosaic.version = 11 : i64} {
  func.func @_tail_kernel(%arg0: i32, %arg1: memref<2x16x128xbf16, #tpu.memory_space<vmem>>, %arg2: memref<1x1x128xf32, #tpu.memory_space<vmem>>, %arg3: memref<1x1x128xf32, #tpu.memory_space<vmem>>, %arg4: memref<128x128xf32, #tpu.memory_space<vmem>>, %arg5: memref<1x128xf32, #tpu.memory_space<vmem>>, %arg6: memref<2x128xf32, #tpu.memory_space<vmem>>) attributes {dimension_semantics = [#tpu.dimension_semantics<arbitrary>], iteration_bounds = array<i64: 1>, scalar_prefetch = 0 : i64, scratch_operands = 0 : i64, tpu.core_type = #tpu.core_type<tc>, window_params = [{pipeline_mode = #tpu.pipeline_mode<synchronous>, transform_indices = @transform_0, window_bounds = array<i64: 2, 16, 128>}, {pipeline_mode = #tpu.pipeline_mode<synchronous>, transform_indices = @transform_1, window_bounds = array<i64: 1, 1, 128>}, {pipeline_mode = #tpu.pipeline_mode<synchronous>, transform_indices = @transform_2, window_bounds = array<i64: 1, 1, 128>}, {pipeline_mode = #tpu.pipeline_mode<synchronous>, transform_indices = @transform_3, window_bounds = array<i64: 128, 128>}, {pipeline_mode = #tpu.pipeline_mode<synchronous>, transform_indices = @transform_4, window_bounds = array<i64: 1, 128>}, {pipeline_mode = #tpu.pipeline_mode<synchronous>, transform_indices = @transform_5, window_bounds = array<i64: 2, 128>}]} {
    %c0 = arith.constant 0 : index
    %c0_0 = arith.constant 0 : index
    %c0_1 = arith.constant 0 : index
    %0 = vector.load %arg1[%c0, %c0_0, %c0_1] : memref<2x16x128xbf16, #tpu.memory_space<vmem>>, vector<2x16x128xbf16>
    %1 = arith.extf %0 : vector<2x16x128xbf16> to vector<2x16x128xf32>
    %c0_2 = arith.constant 0 : index
    %c0_3 = arith.constant 0 : index
    %c0_4 = arith.constant 0 : index
    %2 = vector.load %arg2[%c0_2, %c0_3, %c0_4] : memref<1x1x128xf32, #tpu.memory_space<vmem>>, vector<1x1x128xf32>
    %3 = vector.broadcast %2 : vector<1x1x128xf32> to vector<2x16x128xf32>
    %4 = arith.mulf %1, %3 : vector<2x16x128xf32>
    %c0_5 = arith.constant 0 : index
    %c0_6 = arith.constant 0 : index
    %c0_7 = arith.constant 0 : index
    %5 = vector.load %arg3[%c0_5, %c0_6, %c0_7] : memref<1x1x128xf32, #tpu.memory_space<vmem>>, vector<1x1x128xf32>
    %6 = vector.broadcast %5 : vector<1x1x128xf32> to vector<2x16x128xf32>
    %7 = arith.addf %4, %6 : vector<2x16x128xf32>
    %cst = arith.constant 0.000000e+00 : f32
    %8 = vector.broadcast %cst : f32 to vector<2x16x128xf32>
    %9 = arith.maximumf %7, %8 : vector<2x16x128xf32>
    %cst_8 = arith.constant dense<0.000000e+00> : vector<2x128xf32>
    %10 = vector.multi_reduction <add>, %9, %cst_8 [1] : vector<2x16x128xf32> to vector<2x128xf32>
    %cst_9 = arith.constant 1.600000e+01 : f32
    %11 = vector.broadcast %cst_9 : f32 to vector<2x128xf32>
    %12 = arith.divf %10, %11 : vector<2x128xf32>
    %c0_10 = arith.constant 0 : index
    %c0_11 = arith.constant 0 : index
    %13 = vector.load %arg4[%c0_10, %c0_11] : memref<128x128xf32, #tpu.memory_space<vmem>>, vector<128x128xf32>
    %cst_12 = arith.constant dense<0.000000e+00> : vector<2x128xf32>
    %14 = tpu.matmul %12, %13, %cst_12 {dimension_numbers = #tpu.dot_dimension_numbers<[1], [0], [0], [1], [0, 0, 1, 1], [], []>} : vector<2x128xf32>, vector<128x128xf32>, vector<2x128xf32> -> vector<2x128xf32>
    %c0_13 = arith.constant 0 : index
    %c0_14 = arith.constant 0 : index
    %15 = vector.load %arg5[%c0_13, %c0_14] : memref<1x128xf32, #tpu.memory_space<vmem>>, vector<1x128xf32>
    %16 = vector.broadcast %15 : vector<1x128xf32> to vector<2x128xf32>
    %17 = arith.addf %14, %16 : vector<2x128xf32>
    %c0_15 = arith.constant 0 : index
    %c0_16 = arith.constant 0 : index
    %18 = vector.load %arg6[%c0_15, %c0_16] : memref<2x128xf32, #tpu.memory_space<vmem>>, vector<2x128xf32>
    tpu.vector_store %arg6[%c0_15, %c0_16], %17 {strides = array<i32>} : memref<2x128xf32, #tpu.memory_space<vmem>>, vector<2x128xf32>,
    return
  }
  func.func @transform_0(%arg0: i32) -> (i32, i32, i32) {
    %c0_i32 = arith.constant 0 : i32
    %c0_i32_0 = arith.constant 0 : i32
    %c0_i32_1 = arith.constant 0 : i32
    %c0_i32_2 = arith.constant 0 : i32
    return %c0_i32, %c0_i32_0, %c0_i32_1 : i32, i32, i32
  }
  func.func @transform_1(%arg0: i32) -> (i32, i32, i32) {
    %c0_i32 = arith.constant 0 : i32
    %c0_i32_0 = arith.constant 0 : i32
    %c0_i32_1 = arith.constant 0 : i32
    %c0_i32_2 = arith.constant 0 : i32
    return %c0_i32, %c0_i32_0, %c0_i32_1 : i32, i32, i32
  }
  func.func @transform_2(%arg0: i32) -> (i32, i32, i32) {
    %c0_i32 = arith.constant 0 : i32
    %c0_i32_0 = arith.constant 0 : i32
    %c0_i32_1 = arith.constant 0 : i32
    %c0_i32_2 = arith.constant 0 : i32
    return %c0_i32, %c0_i32_0, %c0_i32_1 : i32, i32, i32
  }
  func.func @transform_3(%arg0: i32) -> (i32, i32) {
    %c0_i32 = arith.constant 0 : i32
    %c0_i32_0 = arith.constant 0 : i32
    %c0_i32_1 = arith.constant 0 : i32
    return %c0_i32, %c0_i32_0 : i32, i32
  }
  func.func @transform_4(%arg0: i32) -> (i32, i32) {
    %c0_i32 = arith.constant 0 : i32
    %c0_i32_0 = arith.constant 0 : i32
    %c0_i32_1 = arith.constant 0 : i32
    return %c0_i32, %c0_i32_0 : i32, i32
  }
  func.func @transform_5(%arg0: i32) -> (i32, i32) {
    %c0_i32 = arith.constant 0 : i32
    %c0_i32_0 = arith.constant 0 : i32
    %c0_i32_1 = arith.constant 0 : i32
    return %c0_i32, %c0_i32_0 : i32, i32
  }
}

</mosaic_0001>

<llo_original>
// kernel: densenet_forward.16
$region0: #{densenet_forward.16}
  #allocation0 [shape = 'u32[]', space=smem, size = 0x4, offset = 0x4, fixed_abs, tag = 'smem constant byte address 0x4 - core index']
  #allocation1 [shape = 'u32[144,128]{1,0:T(1,128)}', space=vmem, size = 0x12000, scoped, tag = 'internal scratch']
  %s0 = inlined_call_operand.vmem [shape: bf16[128,128], index: 0, kind: input, shape index: {}]
  %s1 = inlined_call_operand.vmem [shape: f32[1,128], index: 1, kind: input, shape index: {}]
  %s2 = inlined_call_operand.vmem [shape: f32[1,128], index: 2, kind: input, shape index: {}]
  %s3 = inlined_call_operand.vmem [shape: bf16[128,128], index: 3, kind: output, shape index: {}]
  %s4 = sld [smem:[#allocation0]]
  $region45: #{densenet_forward.16} parent=0
    _
  %s6 = ssub.s32 1, %s4
  %s7 = scalar_select 0, %s6, %s4
  loop: start=0, step=1, limit=4
  $region2: #{densenet_forward.16} parent=0 // loop_pre_header
    _
  $region3: #{densenet_forward.16} parent=0 // loop_header
    %s9 = sphi 0, %s13
    %p10 = scmp.ge.s32.totalorder %s9, 4
    %s19 = sphi 0, %s21
    %s22 = sphi 0, %s19
    %s23 = sphi 0, %s22
    %s39 = sphi 0, %s23
    %s43 = sphi 0, %s43
    %s45 = sphi 0, %s43
    %s46 = sphi 0, %s45
    %s60 = sphi 0, %s46
    %s64 = sphi 0, %s64
    %s66 = sphi 0, %s64
    %s67 = sphi 0, %s66
    %s81 = sphi 0, %s67
    %s87 = sphi 0, %s89
    %s90 = sphi 0, %s87
    %s91 = sphi 0, %s90
    %s107 = sphi 0, %s91
  $region4: #{densenet_forward.16} parent=0 // loop_header_branch
    %12 = sbr.rel (%p10) target = $region8
  $region5: #{densenet_forward.16} parent=0 // loop_body
    %s14 = ssub.s32 %s9, 1
    %s15 = ssub.s32 %s9, 2
    %s16 = sadd.s32 %s9, 1
    %s17 = ssub.s32 %s9, %s16
    %p18 = scmp.eq.s32.totalorder %s17, 0
    %s20 = sadd.s32 %s19, 1
    %s21 = scalar_select %p18, %s19, %s20
    %p24 = pneg %p18
    %p25 = scmp.eq.s32.totalorder %s9, 1
    %p26 = por %p24, %p25
    %p27 = scmp.ne.s32.totalorder %s19, %s22
    %p28 = scmp.eq.s32.totalorder %s9, 0
    %p29 = por %p27, %p28
    %p30 = scmp.ne.s32.totalorder %s19, %s22
    %p31 = scmp.eq.s32.totalorder %s14, 1
    %p32 = por %p30, %p31
    %p33 = scmp.ne.s32.totalorder %s22, %s23
    %p34 = scmp.eq.s32.totalorder %s14, 0
    %p35 = por %p33, %p34
    %p36 = scmp.ne.s32.totalorder %s22, %s23
    %p37 = scmp.eq.s32.totalorder %s15, 1
    %p38 = por %p36, %p37
    %p40 = scmp.ne.s32.totalorder %s23, %s39
    %p41 = scmp.eq.s32.totalorder %s15, 0
    %p42 = por %p40, %p41
    %s44 = sadd.s32 %s43, 1
    %p47 = scmp.eq.s32.totalorder %s9, 1
    %p48 = scmp.ne.s32.totalorder %s43, %s45
    %p49 = scmp.eq.s32.totalorder %s9, 0
    %p50 = por %p48, %p49
    %p51 = scmp.ne.s32.totalorder %s43, %s45
    %p52 = scmp.eq.s32.totalorder %s14, 1
    %p53 = por %p51, %p52
    %p54 = scmp.ne.s32.totalorder %s45, %s46
    %p55 = scmp.eq.s32.totalorder %s14, 0
    %p56 = por %p54, %p55
    %p57 = scmp.ne.s32.totalorder %s45, %s46
    %p58 = scmp.eq.s32.totalorder %s15, 1
    %p59 = por %p57, %p58
    %p61 = scmp.ne.s32.totalorder %s46, %s60
    %p62 = scmp.eq.s32.totalorder %s15, 0
    %p63 = por %p61, %p62
    %s65 = sadd.s32 %s64, 1
    %p68 = scmp.eq.s32.totalorder %s9, 1
    %p69 = scmp.ne.s32.totalorder %s64, %s66
    %p70 = scmp.eq.s32.totalorder %s9, 0
    %p71 = por %p69, %p70
    %p72 = scmp.ne.s32.totalorder %s64, %s66
    %p73 = scmp.eq.s32.totalorder %s14, 1
    %p74 = por %p72, %p73
    %p75 = scmp.ne.s32.totalorder %s66, %s67
    %p76 = scmp.eq.s32.totalorder %s14, 0
    %p77 = por %p75, %p76
    %p78 = scmp.ne.s32.totalorder %s66, %s67
    %p79 = scmp.eq.s32.totalorder %s15, 1
    %p80 = por %p78, %p79
    %p82 = scmp.ne.s32.totalorder %s67, %s81
    %p83 = scmp.eq.s32.totalorder %s15, 0
    %p84 = por %p82, %p83
    %s85 = ssub.s32 %s9, %s16
    %p86 = scmp.eq.s32.totalorder %s85, 0
    %s88 = sadd.s32 %s87, 1
    %s89 = scalar_select %p86, %s87, %s88
    %p92 = pneg %p86
    %p93 = scmp.eq.s32.totalorder %s9, 1
    %p94 = por %p92, %p93
    %p95 = scmp.ne.s32.totalorder %s87, %s90
    %p96 = scmp.eq.s32.totalorder %s9, 0
    %p97 = por %p95, %p96
    %p98 = scmp.ne.s32.totalorder %s87, %s90
    %p99 = scmp.eq.s32.totalorder %s14, 1
    %p100 = por %p98, %p99
    %p101 = scmp.ne.s32.totalorder %s90, %s91
    %p102 = scmp.eq.s32.totalorder %s14, 0
    %p103 = por %p101, %p102
    %p104 = scmp.ne.s32.totalorder %s90, %s91
    %p105 = scmp.eq.s32.totalorder %s15, 1
    %p106 = por %p104, %p105
    %p108 = scmp.ne.s32.totalorder %s91, %s107
    %p109 = scmp.eq.s32.totalorder %s15, 0
    %p110 = por %p108, %p109
    %p111 = scmp.le.s32.totalorder 1, %s9
    %p112 = scmp.lt.s32.totalorder %s9, 3
    %p113 = pnand %p111, %p112
    %p114 = pneg %p113
    // Predicated region
    $region9: #{densenet_forward.16} parent=5 // pred_check
      _
    $region10: #{densenet_forward.16} parent=5 // pred_check_branch
      %116 = sbr.rel (%p113) target = $region12
    $region11: #{densenet_forward.16} parent=5 // pred_region
      %s117 = ssub.s32 %s9, 1
      // Predicated region
      $region13: #{densenet_forward.16} parent=11 // pred_check
        %p118 = pneg %p56
      $region14: #{densenet_forward.16} parent=11 // pred_check_branch
        %120 = sbr.rel (%p118) target = $region16
      $region15: #{densenet_forward.16} parent=11 // pred_region
        _
      $region16: #{densenet_forward.16} parent=11 // pred_fallthru
        _
      // Predicated region
      $region17: #{densenet_forward.16} parent=11 // pred_check
        %p121 = pneg %p77
      $region18: #{densenet_forward.16} parent=11 // pred_check_branch
        %123 = sbr.rel (%p121) target = $region20
      $region19: #{densenet_forward.16} parent=11 // pred_region
        _
      $region20: #{densenet_forward.16} parent=11 // pred_fallthru
        _
    $region12: #{densenet_forward.16} parent=5 // pred_fallthru
      _
    %p124 = scmp.lt.s32.totalorder %s9, 2
    // Predicated region
    $region21: #{densenet_forward.16} parent=5 // pred_check
      %p125 = pneg %p124
    $region22: #{densenet_forward.16} parent=5 // pred_check_branch
      %127 = sbr.rel (%p125) target = $region24
    $region23: #{densenet_forward.16} parent=5 // pred_region
      // Predicated region
      $region25: #{densenet_forward.16} parent=23 // pred_check
        %p128 = pneg %p29
      $region26: #{densenet_forward.16} parent=23 // pred_check_branch
        %130 = sbr.rel (%p128) target = $region28
      $region27: #{densenet_forward.16} parent=23 // pred_region
        %s131 = smul.u32 8, %s9
        %p132 = scmp.lt.s32.totalorder %s131, 15
        %s133 = scalar_select %p132, %s131, 15
        %s134 = smul.addr %s133, 4
        %s135 = scalar_lea.vmem %s0, %s134
        %s136 = smul.u32 8, %s9
      $region28: #{densenet_forward.16} parent=23 // pred_fallthru
        _
    $region24: #{densenet_forward.16} parent=5 // pred_fallthru
      _
    %p137 = scmp.le.s32.totalorder 1, %s9
    %p138 = scmp.lt.s32.totalorder %s9, 3
    %p139 = pnand %p137, %p138
    %p140 = pneg %p139
    // Predicated region
    $region29: #{densenet_forward.16} parent=5 // pred_check
      _
    $region30: #{densenet_forward.16} parent=5 // pred_check_branch
      %142 = sbr.rel (%p139) target = $region32
    $region31: #{densenet_forward.16} parent=5 // pred_region
      %s143 = ssub.s32 %s9, 1
      %s144 = smul.u32 8, %s14
      %p145 = scmp.lt.s32.totalorder %s144, 15
      %s146 = scalar_select %p145, %s144, 15
      %s147 = smul.addr %s146, 4
      %s148 = scalar_lea.vmem %s0, %s147
      %p149 = pneg %p35
      %p150 = pneg %p32
      %p151 = pneg %p56
      %p152 = pneg %p53
      %p153 = pneg %p77
      %p154 = pneg %p74
      %p155 = pneg %p103
      %p156 = pneg %p100
      %s157 = smul.u32 8, %s14
      %p158 = scmp.lt.s32.totalorder %s157, 15
      %s159 = scalar_select %p158, %s157, 15
      %s160 = smul.addr %s159, 4
      %s161 = scalar_lea.vmem %s3, %s160
      %s162 = smul.u32 8, %s14
      %p163 = scmp.lt.s32.totalorder %s162, 15
      %s164 = scalar_select %p163, %s162, 15
      %s165 = smul.addr %s164, 4
      %s166 = scalar_lea.vmem %s0, %s165
      %s167 = smul.u32 8, %s14
      %s168 = smul.u32 8, %s14
      %p169 = scmp.lt.s32.totalorder %s168, 15
      %s170 = scalar_select %p169, %s168, 15
      %s171 = smul.addr %s170, 4
      %s172 = scalar_lea.vmem %s3, %s171
      %s173 = smul.u32 8, %s14
      %v174 = vld [vmem:[%s166] sm:$0xf]
      %v175 = vld [vmem:[%s166 + $0x4] sm:$0xf]
      %v176 = vld [vmem:[%s166 + $0x8] sm:$0xf]
      %v177 = vld [vmem:[%s166 + $0xc] sm:$0xf]
      %v178 = vld [vmem:[%s166 + $0x10] sm:$0xf]
      %v179 = vld [vmem:[%s166 + $0x14] sm:$0xf]
      %v180 = vld [vmem:[%s166 + $0x18] sm:$0xf]
      %v181 = vld [vmem:[%s166 + $0x1c] sm:$0xf]
      %v182 = vunpack.c.l.bf16 %v174
      %v183 = vunpack.c.l.bf16 %v175
      %v184 = vunpack.c.l.bf16 %v176
      %v185 = vunpack.c.l.bf16 %v177
      %v186 = vunpack.c.l.bf16 %v178
      %v187 = vunpack.c.l.bf16 %v179
      %v188 = vunpack.c.l.bf16 %v180
      %v189 = vunpack.c.l.bf16 %v181
      %v190 = vld [vmem:[%s1] sm:$0x1]
      %v192 = vlaneseq
      %v193 = vshrl.u32 %v192, 7
      %v194 = vsub.s32 0, %v193
      %v195 = vrot.slane %v190, %v194
      %v197 = vmul.f32 %v182, %v195
      %v198 = vmul.f32 %v183, %v195
      %v199 = vmul.f32 %v184, %v195
      %v200 = vmul.f32 %v185, %v195
      %v201 = vmul.f32 %v186, %v195
      %v202 = vmul.f32 %v187, %v195
      %v203 = vmul.f32 %v188, %v195
      %v204 = vmul.f32 %v189, %v195
      %v205 = vld [vmem:[%s2] sm:$0x1]
      %v207 = vlaneseq
      %v208 = vshrl.u32 %v207, 7
      %v209 = vsub.s32 0, %v208
      %v210 = vrot.slane %v205, %v209
      %v212 = vadd.f32 %v197, %v210
      %v213 = vadd.f32 %v198, %v210
      %v214 = vadd.f32 %v199, %v210
      %v215 = vadd.f32 %v200, %v210
      %v216 = vadd.f32 %v201, %v210
      %v217 = vadd.f32 %v202, %v210
      %v218 = vadd.f32 %v203, %v210
      %v219 = vadd.f32 %v204, %v210
      %v220 = vmax.f32 %v212, 0.0
      %v221 = vmax.f32 %v213, 0.0
      %v222 = vmax.f32 %v214, 0.0
      %v223 = vmax.f32 %v215, 0.0
      %v224 = vmax.f32 %v216, 0.0
      %v225 = vmax.f32 %v217, 0.0
      %v226 = vmax.f32 %v218, 0.0
      %v227 = vmax.f32 %v219, 0.0
      %v228 = vpack.c.bf16 %v221, %v220
      %v229 = vpack.c.bf16 %v223, %v222
      %v230 = vpack.c.bf16 %v225, %v224
      %v231 = vpack.c.bf16 %v227, %v226
      %v236 = vunpack.c.l.b16 %v228
      %v237 = vunpack.c.h.b16 %v228
      %v238 = vunpack.c.l.b16 %v229
      %v239 = vunpack.c.h.b16 %v229
      %v240 = vunpack.c.l.b16 %v230
      %v241 = vunpack.c.h.b16 %v230
      %v242 = vunpack.c.l.b16 %v231
      %v243 = vunpack.c.h.b16 %v231
      %v244 = vpack.c.b16 %v236, %v236
      %v245 = vpack.c.b16 %v237, %v237
      %v246 = vpack.c.b16 %v238, %v238
      %v247 = vpack.c.b16 %v239, %v239
      %v248 = vpack.c.b16 %v240, %v240
      %v249 = vpack.c.b16 %v241, %v241
      %v250 = vpack.c.b16 %v242, %v242
      %v251 = vpack.c.b16 %v243, %v243
      %260 = vst [vmem:[%s172] sm:$0xf] %v244
      %261 = vst [vmem:[%s172 + $0x4] sm:$0xf] %v245
      %262 = vst [vmem:[%s172 + $0x8] sm:$0xf] %v246
      %263 = vst [vmem:[%s172 + $0xc] sm:$0xf] %v247
      %264 = vst [vmem:[%s172 + $0x10] sm:$0xf] %v248
      %265 = vst [vmem:[%s172 + $0x14] sm:$0xf] %v249
      %266 = vst [vmem:[%s172 + $0x18] sm:$0xf] %v250
      %267 = vst [vmem:[%s172 + $0x1c] sm:$0xf] %v251
      %s268 = smul.u32 8, %s14
      %p269 = scmp.lt.s32.totalorder %s268, 15
      %s270 = scalar_select %p269, %s268, 15
      %s271 = smul.addr %s270, 4
      %s272 = scalar_lea.vmem %s3, %s271
      // Predicated region
      $region33: #{densenet_forward.16} parent=31 // pred_check
        %p273 = pneg %p100
      $region34: #{densenet_forward.16} parent=31 // pred_check_branch
        %275 = sbr.rel (%p273) target = $region36
      $region35: #{densenet_forward.16} parent=31 // pred_region
        %s276 = smul.u32 8, %s14
      $region36: #{densenet_forward.16} parent=31 // pred_fallthru
        _
    $region32: #{densenet_forward.16} parent=5 // pred_fallthru
      _
    %p277 = scmp.le.s32.totalorder 2, %s9
    // Predicated region
    $region37: #{densenet_forward.16} parent=5 // pred_check
      %p278 = pneg %p277
    $region38: #{densenet_forward.16} parent=5 // pred_check_branch
      %280 = sbr.rel (%p278) target = $region40
    $region39: #{densenet_forward.16} parent=5 // pred_region
      %s281 = ssub.s32 %s9, 2
      // Predicated region
      $region41: #{densenet_forward.16} parent=39 // pred_check
        %p282 = pneg %p106
      $region42: #{densenet_forward.16} parent=39 // pred_check_branch
        %284 = sbr.rel (%p282) target = $region44
      $region43: #{densenet_forward.16} parent=39 // pred_region
        %s285 = smul.u32 8, %s15
        %p286 = scmp.lt.s32.totalorder %s285, 15
        %s287 = scalar_select %p286, %s285, 15
        %s288 = smul.addr %s287, 4
        %s289 = scalar_lea.vmem %s3, %s288
      $region44: #{densenet_forward.16} parent=39 // pred_fallthru
        _
    $region40: #{densenet_forward.16} parent=5 // pred_fallthru
      _
  $region6: #{densenet_forward.16} parent=0 // loop_footer
    %s13 = sadd.s32 1, %s9
  $region7: #{densenet_forward.16} parent=0 // loop_footer_branch
    %8 = sbr.rel target = $region3
  $region8: #{densenet_forward.16} parent=0 // loop_exit
    _

// kernel: densenet_forward.15
$region0: #{densenet_forward.15}
  #allocation0 [shape = 'u32[]', space=smem, size = 0x4, offset = 0x4, fixed_abs, tag = 'smem constant byte address 0x4 - core index']
  #allocation1 [shape = 'u32[144,128]{1,0:T(1,128)}', space=vmem, size = 0x12000, scoped, tag = 'internal scratch']
  %s0 = inlined_call_operand.vmem [shape: bf16[512,256], index: 0, kind: input, shape index: {}]
  %s1 = inlined_call_operand.vmem [shape: bf16[256,128], index: 1, kind: input, shape index: {}]
  %s2 = inlined_call_operand.vmem [shape: f32[1,128], index: 2, kind: input, shape index: {}]
  %s3 = inlined_call_operand.vmem [shape: f32[1,128], index: 3, kind: input, shape index: {}]
  %s4 = inlined_call_operand.vmem [shape: bf16[512,128], index: 4, kind: output, shape index: {}]
  %s5 = sld [smem:[#allocation0]]
  $region49: #{densenet_forward.15} parent=0
    _
  %s7 = ssub.s32 1, %s5
  %s8 = scalar_select 0, %s7, %s5
  loop: start=0, step=1, limit=6
  $region2: #{densenet_forward.15} parent=0 // loop_pre_header
    _
  $region3: #{densenet_forward.15} parent=0 // loop_header
    %s10 = sphi 0, %s14
    %p11 = scmp.ge.s32.totalorder %s10, 6
    %s20 = sphi 0, %s22
    %s23 = sphi 0, %s20
    %s24 = sphi 0, %s23
    %s40 = sphi 0, %s24
    %s44 = sphi 0, %s44
    %s46 = sphi 0, %s44
    %s47 = sphi 0, %s46
    %s61 = sphi 0, %s47
    %s65 = sphi 0, %s65
    %s67 = sphi 0, %s65
    %s68 = sphi 0, %s67
    %s82 = sphi 0, %s68
    %s86 = sphi 0, %s86
    %s88 = sphi 0, %s86
    %s89 = sphi 0, %s88
    %s103 = sphi 0, %s89
    %s109 = sphi 0, %s111
    %s112 = sphi 0, %s109
    %s113 = sphi 0, %s112
    %s129 = sphi 0, %s113
  $region4: #{densenet_forward.15} parent=0 // loop_header_branch
    %13 = sbr.rel (%p11) target = $region8
  $region5: #{densenet_forward.15} parent=0 // loop_body
    %s15 = ssub.s32 %s10, 1
    %s16 = ssub.s32 %s10, 2
    %s17 = sadd.s32 %s10, 1
    %s18 = ssub.s32 %s10, %s17
    %p19 = scmp.eq.s32.totalorder %s18, 0
    %s21 = sadd.s32 %s20, 1
    %s22 = scalar_select %p19, %s20, %s21
    %p25 = pneg %p19
    %p26 = scmp.eq.s32.totalorder %s10, 3
    %p27 = por %p25, %p26
    %p28 = scmp.ne.s32.totalorder %s20, %s23
    %p29 = scmp.eq.s32.totalorder %s10, 0
    %p30 = por %p28, %p29
    %p31 = scmp.ne.s32.totalorder %s20, %s23
    %p32 = scmp.eq.s32.totalorder %s15, 3
    %p33 = por %p31, %p32
    %p34 = scmp.ne.s32.totalorder %s23, %s24
    %p35 = scmp.eq.s32.totalorder %s15, 0
    %p36 = por %p34, %p35
    %p37 = scmp.ne.s32.totalorder %s23, %s24
    %p38 = scmp.eq.s32.totalorder %s16, 3
    %p39 = por %p37, %p38
    %p41 = scmp.ne.s32.totalorder %s24, %s40
    %p42 = scmp.eq.s32.totalorder %s16, 0
    %p43 = por %p41, %p42
    %s45 = sadd.s32 %s44, 1
    %p48 = scmp.eq.s32.totalorder %s10, 3
    %p49 = scmp.ne.s32.totalorder %s44, %s46
    %p50 = scmp.eq.s32.totalorder %s10, 0
    %p51 = por %p49, %p50
    %p52 = scmp.ne.s32.totalorder %s44, %s46
    %p53 = scmp.eq.s32.totalorder %s15, 3
    %p54 = por %p52, %p53
    %p55 = scmp.ne.s32.totalorder %s46, %s47
    %p56 = scmp.eq.s32.totalorder %s15, 0
    %p57 = por %p55, %p56
    %p58 = scmp.ne.s32.totalorder %s46, %s47
    %p59 = scmp.eq.s32.totalorder %s16, 3
    %p60 = por %p58, %p59
    %p62 = scmp.ne.s32.totalorder %s47, %s61
    %p63 = scmp.eq.s32.totalorder %s16, 0
    %p64 = por %p62, %p63
    %s66 = sadd.s32 %s65, 1
    %p69 = scmp.eq.s32.totalorder %s10, 3
    %p70 = scmp.ne.s32.totalorder %s65, %s67
    %p71 = scmp.eq.s32.totalorder %s10, 0
    %p72 = por %p70, %p71
    %p73 = scmp.ne.s32.totalorder %s65, %s67
    %p74 = scmp.eq.s32.totalorder %s15, 3
    %p75 = por %p73, %p74
    %p76 = scmp.ne.s32.totalorder %s67, %s68
    %p77 = scmp.eq.s32.totalorder %s15, 0
    %p78 = por %p76, %p77
    %p79 = scmp.ne.s32.totalorder %s67, %s68
    %p80 = scmp.eq.s32.totalorder %s16, 3
    %p81 = por %p79, %p80
    %p83 = scmp.ne.s32.totalorder %s68, %s82
    %p84 = scmp.eq.s32.totalorder %s16, 0
    %p85 = por %p83, %p84
    %s87 = sadd.s32 %s86, 1
    %p90 = scmp.eq.s32.totalorder %s10, 3
    %p91 = scmp.ne.s32.totalorder %s86, %s88
    %p92 = scmp.eq.s32.totalorder %s10, 0
    %p93 = por %p91, %p92
    %p94 = scmp.ne.s32.totalorder %s86, %s88
    %p95 = scmp.eq.s32.totalorder %s15, 3
    %p96 = por %p94, %p95
    %p97 = scmp.ne.s32.totalorder %s88, %s89
    %p98 = scmp.eq.s32.totalorder %s15, 0
    %p99 = por %p97, %p98
    %p100 = scmp.ne.s32.totalorder %s88, %s89
    %p101 = scmp.eq.s32.totalorder %s16, 3
    %p102 = por %p100, %p101
    %p104 = scmp.ne.s32.totalorder %s89, %s103
    %p105 = scmp.eq.s32.totalorder %s16, 0
    %p106 = por %p104, %p105
    %s107 = ssub.s32 %s10, %s17
    %p108 = scmp.eq.s32.totalorder %s107, 0
    %s110 = sadd.s32 %s109, 1
    %s111 = scalar_select %p108, %s109, %s110
    %p114 = pneg %p108
    %p115 = scmp.eq.s32.totalorder %s10, 3
    %p116 = por %p114, %p115
    %p117 = scmp.ne.s32.totalorder %s109, %s112
    %p118 = scmp.eq.s32.totalorder %s10, 0
    %p119 = por %p117, %p118
    %p120 = scmp.ne.s32.totalorder %s109, %s112
    %p121 = scmp.eq.s32.totalorder %s15, 3
    %p122 = por %p120, %p121
    %p123 = scmp.ne.s32.totalorder %s112, %s113
    %p124 = scmp.eq.s32.totalorder %s15, 0
    %p125 = por %p123, %p124
    %p126 = scmp.ne.s32.totalorder %s112, %s113
    %p127 = scmp.eq.s32.totalorder %s16, 3
    %p128 = por %p126, %p127
    %p130 = scmp.ne.s32.totalorder %s113, %s129
    %p131 = scmp.eq.s32.totalorder %s16, 0
    %p132 = por %p130, %p131
    %p133 = scmp.le.s32.totalorder 1, %s10
    %p134 = scmp.lt.s32.totalorder %s10, 5
    %p135 = pnand %p133, %p134
    %p136 = pneg %p135
    // Predicated region
    $region9: #{densenet_forward.15} parent=5 // pred_check
      _
    $region10: #{densenet_forward.15} parent=5 // pred_check_branch
      %138 = sbr.rel (%p135) target = $region12
    $region11: #{densenet_forward.15} parent=5 // pred_region
      %s139 = ssub.s32 %s10, 1
      // Predicated region
      $region13: #{densenet_forward.15} parent=11 // pred_check
        %p140 = pneg %p57
      $region14: #{densenet_forward.15} parent=11 // pred_check_branch
        %142 = sbr.rel (%p140) target = $region16
      $region15: #{densenet_forward.15} parent=11 // pred_region
        _
      $region16: #{densenet_forward.15} parent=11 // pred_fallthru
        _
      // Predicated region
      $region17: #{densenet_forward.15} parent=11 // pred_check
        %p143 = pneg %p78
      $region18: #{densenet_forward.15} parent=11 // pred_check_branch
        %145 = sbr.rel (%p143) target = $region20
      $region19: #{densenet_forward.15} parent=11 // pred_region
        _
      $region20: #{densenet_forward.15} parent=11 // pred_fallthru
        _
      // Predicated region
      $region21: #{densenet_forward.15} parent=11 // pred_check
        %p146 = pneg %p99
      $region22: #{densenet_forward.15} parent=11 // pred_check_branch
        %148 = sbr.rel (%p146) target = $region24
      $region23: #{densenet_forward.15} parent=11 // pred_region
        _
      $region24: #{densenet_forward.15} parent=11 // pred_fallthru
        _
    $region12: #{densenet_forward.15} parent=5 // pred_fallthru
      _
    %p149 = scmp.lt.s32.totalorder %s10, 4
    // Predicated region
    $region25: #{densenet_forward.15} parent=5 // pred_check
      %p150 = pneg %p149
    $region26: #{densenet_forward.15} parent=5 // pred_check_branch
      %152 = sbr.rel (%p150) target = $region28
    $region27: #{densenet_forward.15} parent=5 // pred_region
      // Predicated region
      $region29: #{densenet_forward.15} parent=27 // pred_check
        %p153 = pneg %p30
      $region30: #{densenet_forward.15} parent=27 // pred_check_branch
        %155 = sbr.rel (%p153) target = $region32
      $region31: #{densenet_forward.15} parent=27 // pred_region
        %s156 = smul.u32 16, %s10
        %p157 = scmp.lt.s32.totalorder %s156, 63
        %s158 = scalar_select %p157, %s156, 63
        %s159 = smul.addr %s158, 2
        %s160 = smul.addr %s159, 4
        %s161 = scalar_lea.vmem %s0, %s160
        %s162 = smul.u32 16, %s10
      $region32: #{densenet_forward.15} parent=27 // pred_fallthru
        _
    $region28: #{densenet_forward.15} parent=5 // pred_fallthru
      _
    %p163 = scmp.le.s32.totalorder 1, %s10
    %p164 = scmp.lt.s32.totalorder %s10, 5
    %p165 = pnand %p163, %p164
    %p166 = pneg %p165
    // Predicated region
    $region33: #{densenet_forward.15} parent=5 // pred_check
      _
    $region34: #{densenet_forward.15} parent=5 // pred_check_branch
      %168 = sbr.rel (%p165) target = $region36
    $region35: #{densenet_forward.15} parent=5 // pred_region
      %s169 = ssub.s32 %s10, 1
      %s170 = smul.u32 16, %s15
      %p171 = scmp.lt.s32.totalorder %s170, 63
      %s172 = scalar_select %p171, %s170, 63
      %s173 = smul.addr %s172, 2
      %s174 = smul.addr %s173, 4
      %s175 = scalar_lea.vmem %s0, %s174
      %p176 = pneg %p36
      %p177 = pneg %p33
      %p178 = pneg %p57
      %p179 = pneg %p54
      %p180 = pneg %p78
      %p181 = pneg %p75
      %p182 = pneg %p99
      %p183 = pneg %p96
      %p184 = pneg %p125
      %p185 = pneg %p122
      %s186 = smul.u32 16, %s15
      %p187 = scmp.lt.s32.totalorder %s186, 63
      %s188 = scalar_select %p187, %s186, 63
      %s189 = smul.addr %s188, 4
      %s190 = scalar_lea.vmem %s4, %s189
      %s191 = smul.u32 16, %s15
      %p192 = scmp.lt.s32.totalorder %s191, 63
      %s193 = scalar_select %p192, %s191, 63
      %s194 = smul.addr %s193, 2
      %s195 = smul.addr %s194, 4
      %s196 = scalar_lea.vmem %s0, %s195
      %s197 = smul.u32 16, %s15
      %s198 = smul.u32 16, %s15
      %p199 = scmp.lt.s32.totalorder %s198, 63
      %s200 = scalar_select %p199, %s198, 63
      %s201 = smul.addr %s200, 4
      %s202 = scalar_lea.vmem %s4, %s201
      %s203 = smul.u32 16, %s15
      %v205 = vld [vmem:[%s196] sm:$0xff]
      %v206 = vld [vmem:[%s196 + $0x8] sm:$0xff]
      %v207 = vld [vmem:[%s196 + $0x10] sm:$0xff]
      %v208 = vld [vmem:[%s196 + $0x18] sm:$0xff]
      %v209 = vld [vmem:[%s196 + $0x20] sm:$0xff]
      %v210 = vld [vmem:[%s196 + $0x28] sm:$0xff]
      %v211 = vld [vmem:[%s196 + $0x30] sm:$0xff]
      %v212 = vld [vmem:[%s196 + $0x38] sm:$0xff]
      %v213 = vld [vmem:[%s196 + $0x40] sm:$0xff]
      %v214 = vld [vmem:[%s196 + $0x48] sm:$0xff]
      %v215 = vld [vmem:[%s196 + $0x50] sm:$0xff]
      %v216 = vld [vmem:[%s196 + $0x58] sm:$0xff]
      %v217 = vld [vmem:[%s196 + $0x60] sm:$0xff]
      %v218 = vld [vmem:[%s196 + $0x68] sm:$0xff]
      %v219 = vld [vmem:[%s196 + $0x70] sm:$0xff]
      %v220 = vld [vmem:[%s196 + $0x78] sm:$0xff]
      %v221 = vld [vmem:[%s1] sm:$0xf]
      %v222 = vld [vmem:[%s1 + $0x4] sm:$0xf]
      %v223 = vld [vmem:[%s1 + $0x8] sm:$0xf]
      %v224 = vld [vmem:[%s1 + $0xc] sm:$0xf]
      %v225 = vld [vmem:[%s1 + $0x10] sm:$0xf]
      %v226 = vld [vmem:[%s1 + $0x14] sm:$0xf]
      %v227 = vld [vmem:[%s1 + $0x18] sm:$0xf]
      %v228 = vld [vmem:[%s1 + $0x1c] sm:$0xf]
      %v229 = vld [vmem:[%s1 + $0x20] sm:$0xf]
      %v230 = vld [vmem:[%s1 + $0x24] sm:$0xf]
      %v231 = vld [vmem:[%s1 + $0x28] sm:$0xf]
      %v232 = vld [vmem:[%s1 + $0x2c] sm:$0xf]
      %v233 = vld [vmem:[%s1 + $0x30] sm:$0xf]
      %v234 = vld [vmem:[%s1 + $0x34] sm:$0xf]
      %v235 = vld [vmem:[%s1 + $0x38] sm:$0xf]
      %v236 = vld [vmem:[%s1 + $0x3c] sm:$0xf]
      %v237 = vld [vmem:[%s1 + $0x40] sm:$0xf]
      %v238 = vld [vmem:[%s1 + $0x44] sm:$0xf]
      %v239 = vld [vmem:[%s1 + $0x48] sm:$0xf]
      %v240 = vld [vmem:[%s1 + $0x4c] sm:$0xf]
      %v241 = vld [vmem:[%s1 + $0x50] sm:$0xf]
      %v242 = vld [vmem:[%s1 + $0x54] sm:$0xf]
      %v243 = vld [vmem:[%s1 + $0x58] sm:$0xf]
      %v244 = vld [vmem:[%s1 + $0x5c] sm:$0xf]
      %v245 = vld [vmem:[%s1 + $0x60] sm:$0xf]
      %v246 = vld [vmem:[%s1 + $0x64] sm:$0xf]
      %v247 = vld [vmem:[%s1 + $0x68] sm:$0xf]
      %v248 = vld [vmem:[%s1 + $0x6c] sm:$0xf]
      %v249 = vld [vmem:[%s1 + $0x70] sm:$0xf]
      %v250 = vld [vmem:[%s1 + $0x74] sm:$0xf]
      %v251 = vld [vmem:[%s1 + $0x78] sm:$0xf]
      %v252 = vld [vmem:[%s1 + $0x7c] sm:$0xf]
      %v269 = vunpack.c.l.b16 %v205
      %v270 = vunpack.c.h.b16 %v205
      %v271 = vunpack.c.l.b16 %v206
      %v272 = vunpack.c.h.b16 %v206
      %v273 = vunpack.c.l.b16 %v207
      %v274 = vunpack.c.h.b16 %v207
      %v275 = vunpack.c.l.b16 %v208
      %v276 = vunpack.c.h.b16 %v208
      %v277 = vunpack.c.l.b16 %v209
      %v278 = vunpack.c.h.b16 %v209
      %v279 = vunpack.c.l.b16 %v210
      %v280 = vunpack.c.h.b16 %v210
      %v281 = vunpack.c.l.b16 %v211
      %v282 = vunpack.c.h.b16 %v211
      %v283 = vunpack.c.l.b16 %v212
      %v284 = vunpack.c.h.b16 %v212
      %v285 = vunpack.c.l.b16 %v213
      %v286 = vunpack.c.h.b16 %v213
      %v287 = vunpack.c.l.b16 %v214
      %v288 = vunpack.c.h.b16 %v214
      %v289 = vunpack.c.l.b16 %v215
      %v290 = vunpack.c.h.b16 %v215
      %v291 = vunpack.c.l.b16 %v216
      %v292 = vunpack.c.h.b16 %v216
      %v293 = vunpack.c.l.b16 %v217
      %v294 = vunpack.c.h.b16 %v217
      %v295 = vunpack.c.l.b16 %v218
      %v296 = vunpack.c.h.b16 %v218
      %v297 = vunpack.c.l.b16 %v219
      %v298 = vunpack.c.h.b16 %v219
      %v299 = vunpack.c.l.b16 %v220
      %v300 = vunpack.c.h.b16 %v220
      %v301 = vpack.c.b16 %v271, %v269
      %v302 = vpack.c.b16 %v272, %v270
      %v303 = vpack.c.b16 %v275, %v273
      %v304 = vpack.c.b16 %v276, %v274
      %v305 = vpack.c.b16 %v279, %v277
      %v306 = vpack.c.b16 %v280, %v278
      %v307 = vpack.c.b16 %v283, %v281
      %v308 = vpack.c.b16 %v284, %v282
      %v309 = vpack.c.b16 %v287, %v285
      %v310 = vpack.c.b16 %v288, %v286
      %v311 = vpack.c.b16 %v291, %v289
      %v312 = vpack.c.b16 %v292, %v290
      %v313 = vpack.c.b16 %v295, %v293
      %v314 = vpack.c.b16 %v296, %v294
      %v315 = vpack.c.b16 %v299, %v297
      %v316 = vpack.c.b16 %v300, %v298
      %v365 = vunpack.c.l.b16 %v221
      %v366 = vunpack.c.l.b16 %v222
      %v367 = vunpack.c.l.b16 %v223
      %v368 = vunpack.c.l.b16 %v224
      %v369 = vunpack.c.l.b16 %v225
      %v370 = vunpack.c.l.b16 %v226
      %v371 = vunpack.c.l.b16 %v227
      %v372 = vunpack.c.l.b16 %v228
      %v373 = vunpack.c.l.b16 %v229
      %v374 = vunpack.c.l.b16 %v230
      %v375 = vunpack.c.l.b16 %v231
      %v376 = vunpack.c.l.b16 %v232
      %v377 = vunpack.c.l.b16 %v233
      %v378 = vunpack.c.l.b16 %v234
      %v379 = vunpack.c.l.b16 %v235
      %v380 = vunpack.c.l.b16 %v236
      %v381 = vunpack.c.l.b16 %v237
      %v382 = vunpack.c.l.b16 %v238
      %v383 = vunpack.c.l.b16 %v239
      %v384 = vunpack.c.l.b16 %v240
      %v385 = vunpack.c.l.b16 %v241
      %v386 = vunpack.c.l.b16 %v242
      %v387 = vunpack.c.l.b16 %v243
      %v388 = vunpack.c.l.b16 %v244
      %v389 = vunpack.c.l.b16 %v245
      %v390 = vunpack.c.l.b16 %v246
      %v391 = vunpack.c.l.b16 %v247
      %v392 = vunpack.c.l.b16 %v248
      %v393 = vunpack.c.l.b16 %v249
      %v394 = vunpack.c.l.b16 %v250
      %v395 = vunpack.c.l.b16 %v251
      %v396 = vunpack.c.l.b16 %v252
      %v397 = vpack.c.b16 %v366, %v365
      %v398 = vpack.c.b16 %v368, %v367
      %v399 = vpack.c.b16 %v370, %v369
      %v400 = vpack.c.b16 %v372, %v371
      %v401 = vpack.c.b16 %v374, %v373
      %v402 = vpack.c.b16 %v376, %v375
      %v403 = vpack.c.b16 %v378, %v377
      %v404 = vpack.c.b16 %v380, %v379
      %v405 = vpack.c.b16 %v382, %v381
      %v406 = vpack.c.b16 %v384, %v383
      %v407 = vpack.c.b16 %v386, %v385
      %v408 = vpack.c.b16 %v388, %v387
      %v409 = vpack.c.b16 %v390, %v389
      %v410 = vpack.c.b16 %v392, %v391
      %v411 = vpack.c.b16 %v394, %v393
      %v412 = vpack.c.b16 %v396, %v395
      %429 = vmatprep.subr.bf16.mxu0 0
      %430 = vmatpush1.bf16.msra.mxu0 %v404
      %431 = vmatprep.subr.bf16.mxu0 0
      %432 = vmatpush1.bf16.msra.mxu0 %v403
      %433 = vmatprep.subr.bf16.mxu0 0
      %434 = vmatpush1.bf16.msra.mxu0 %v402
      %435 = vmatprep.subr.bf16.mxu0 0
      %436 = vmatpush1.bf16.msra.mxu0 %v401
      %437 = vmatprep.subr.bf16.mxu0 0
      %438 = vmatpush1.bf16.msra.mxu0 %v400
      %439 = vmatprep.subr.bf16.mxu0 0
      %440 = vmatpush1.bf16.msra.mxu0 %v399
      %441 = vmatprep.subr.bf16.mxu0 0
      %442 = vmatpush1.bf16.msra.mxu0 %v398
      %443 = vmatprep.subr.bf16.mxu0 0
      %444 = vmatpush1.bf16.msra.mxu0 %v397
      %445 = vmatprep.subr.bf16.mxu0 0
      %446 = vmatpush2.bf16.msra.mxu0 %v412
      %447 = vmatprep.subr.bf16.mxu0 0
      %448 = vmatpush2.bf16.msra.mxu0 %v411
      %449 = vmatprep.subr.bf16.mxu0 0
      %450 = vmatpush2.bf16.msra.mxu0 %v410
      %451 = vmatprep.subr.bf16.mxu0 0
      %452 = vmatpush2.bf16.msra.mxu0 %v409
      %453 = vmatprep.subr.bf16.mxu0 0
      %454 = vmatpush2.bf16.msra.mxu0 %v408
      %455 = vmatprep.subr.bf16.mxu0 0
      %456 = vmatpush2.bf16.msra.mxu0 %v407
      %457 = vmatprep.subr.bf16.mxu0 0
      %458 = vmatpush2.bf16.msra.mxu0 %v406
      %459 = vmatprep.subr.bf16.mxu0 0
      %460 = vmatpush2.bf16.msra.mxu0 %v405
      %461 = vmatprep.mubr.bf16.mxu0 %v302
      %462 = vmatmul.mubr.bf16.gmra.mxu0 %v301
      %v463 = vpop.f32.mrf.mxu0
      %v464 = vadd.f32 0.0, %v463
      %v465 = vpop.f32.mrf.mxu0
      %v466 = vpop.f32.mrf.mxu0
      %v467 = vadd.f32 0.0, %v466
      %v468 = vpop.f32.mrf.mxu0
      %469 = vmatprep.mubr.bf16.mxu0 %v304
      %470 = vmatmul.mubr.bf16.gmra.mxu0 %v303
      %v471 = vpop.f32.mrf.mxu0
      %v472 = vadd.f32 0.0, %v471
      %v473 = vpop.f32.mrf.mxu0
      %v474 = vpop.f32.mrf.mxu0
      %v475 = vadd.f32 0.0, %v474
      %v476 = vpop.f32.mrf.mxu0
      %477 = vmatprep.mubr.bf16.mxu0 %v306
      %478 = vmatmul.mubr.bf16.gmra.mxu0 %v305
      %v479 = vpop.f32.mrf.mxu0
      %v480 = vadd.f32 0.0, %v479
      %v481 = vpop.f32.mrf.mxu0
      %v482 = vpop.f32.mrf.mxu0
      %v483 = vadd.f32 0.0, %v482
      %v484 = vpop.f32.mrf.mxu0
      %485 = vmatprep.mubr.bf16.mxu0 %v308
      %486 = vmatmul.mubr.bf16.gmra.mxu0 %v307
      %v487 = vpop.f32.mrf.mxu0
      %v488 = vadd.f32 0.0, %v487
      %v489 = vpop.f32.mrf.mxu0
      %v490 = vpop.f32.mrf.mxu0
      %v491 = vadd.f32 0.0, %v490
      %v492 = vpop.f32.mrf.mxu0
      %493 = vmatprep.mubr.bf16.mxu0 %v310
      %494 = vmatmul.mubr.bf16.gmra.mxu0 %v309
      %v495 = vpop.f32.mrf.mxu0
      %v496 = vadd.f32 0.0, %v495
      %v497 = vpop.f32.mrf.mxu0
      %v498 = vpop.f32.mrf.mxu0
      %v499 = vadd.f32 0.0, %v498
      %v500 = vpop.f32.mrf.mxu0
      %501 = vmatprep.mubr.bf16.mxu0 %v312
      %502 = vmatmul.mubr.bf16.gmra.mxu0 %v311
      %v503 = vpop.f32.mrf.mxu0
      %v504 = vadd.f32 0.0, %v503
      %v505 = vpop.f32.mrf.mxu0
      %v506 = vpop.f32.mrf.mxu0
      %v507 = vadd.f32 0.0, %v506
      %v508 = vpop.f32.mrf.mxu0
      %509 = vmatprep.mubr.bf16.mxu0 %v314
      %510 = vmatmul.mubr.bf16.gmra.mxu0 %v313
      %v511 = vpop.f32.mrf.mxu0
      %v512 = vadd.f32 0.0, %v511
      %v513 = vpop.f32.mrf.mxu0
      %v514 = vpop.f32.mrf.mxu0
      %v515 = vadd.f32 0.0, %v514
      %v516 = vpop.f32.mrf.mxu0
      %517 = vmatprep.mubr.bf16.mxu0 %v316
      %518 = vmatmul.mubr.bf16.gmra.mxu0 %v315
      %v519 = vpop.f32.mrf.mxu0
      %v520 = vadd.f32 0.0, %v519
      %v521 = vpop.f32.mrf.mxu0
      %v522 = vpop.f32.mrf.mxu0
      %v523 = vadd.f32 0.0, %v522
      %v524 = vpop.f32.mrf.mxu0
      %525 = vdwg.mxu0
      %v526 = vld [vmem:[%s2] sm:$0x1]
      %v528 = vlaneseq
      %v529 = vshrl.u32 %v528, 7
      %v530 = vsub.s32 0, %v529
      %v531 = vrot.slane %v526, %v530
      %v533 = vmul.f32 %v464, %v531
      %v534 = vmul.f32 %v467, %v531
      %v535 = vmul.f32 %v472, %v531
      %v536 = vmul.f32 %v475, %v531
      %v537 = vmul.f32 %v480, %v531
      %v538 = vmul.f32 %v483, %v531
      %v539 = vmul.f32 %v488, %v531
      %v540 = vmul.f32 %v491, %v531
      %v541 = vmul.f32 %v496, %v531
      %v542 = vmul.f32 %v499, %v531
      %v543 = vmul.f32 %v504, %v531
      %v544 = vmul.f32 %v507, %v531
      %v545 = vmul.f32 %v512, %v531
      %v546 = vmul.f32 %v515, %v531
      %v547 = vmul.f32 %v520, %v531
      %v548 = vmul.f32 %v523, %v531
      %v549 = vld [vmem:[%s3] sm:$0x1]
      %v551 = vlaneseq
      %v552 = vshrl.u32 %v551, 7
      %v553 = vsub.s32 0, %v552
      %v554 = vrot.slane %v549, %v553
      %v556 = vadd.f32 %v533, %v554
      %v557 = vadd.f32 %v534, %v554
      %v558 = vadd.f32 %v535, %v554
      %v559 = vadd.f32 %v536, %v554
      %v560 = vadd.f32 %v537, %v554
      %v561 = vadd.f32 %v538, %v554
      %v562 = vadd.f32 %v539, %v554
      %v563 = vadd.f32 %v540, %v554
      %v564 = vadd.f32 %v541, %v554
      %v565 = vadd.f32 %v542, %v554
      %v566 = vadd.f32 %v543, %v554
      %v567 = vadd.f32 %v544, %v554
      %v568 = vadd.f32 %v545, %v554
      %v569 = vadd.f32 %v546, %v554
      %v570 = vadd.f32 %v547, %v554
      %v571 = vadd.f32 %v548, %v554
      %v572 = vmax.f32 %v556, 0.0
      %v573 = vmax.f32 %v557, 0.0
      %v574 = vmax.f32 %v558, 0.0
      %v575 = vmax.f32 %v559, 0.0
      %v576 = vmax.f32 %v560, 0.0
      %v577 = vmax.f32 %v561, 0.0
      %v578 = vmax.f32 %v562, 0.0
      %v579 = vmax.f32 %v563, 0.0
      %v580 = vmax.f32 %v564, 0.0
      %v581 = vmax.f32 %v565, 0.0
      %v582 = vmax.f32 %v566, 0.0
      %v583 = vmax.f32 %v567, 0.0
      %v584 = vmax.f32 %v568, 0.0
      %v585 = vmax.f32 %v569, 0.0
      %v586 = vmax.f32 %v570, 0.0
      %v587 = vmax.f32 %v571, 0.0
      %v588 = vpack.c.bf16 %v573, %v572
      %v589 = vpack.c.bf16 %v575, %v574
      %v590 = vpack.c.bf16 %v577, %v576
      %v591 = vpack.c.bf16 %v579, %v578
      %v592 = vpack.c.bf16 %v581, %v580
      %v593 = vpack.c.bf16 %v583, %v582
      %v594 = vpack.c.bf16 %v585, %v584
      %v595 = vpack.c.bf16 %v587, %v586
      %v604 = vunpack.c.l.b16 %v588
      %v605 = vunpack.c.h.b16 %v588
      %v606 = vunpack.c.l.b16 %v589
      %v607 = vunpack.c.h.b16 %v589
      %v608 = vunpack.c.l.b16 %v590
      %v609 = vunpack.c.h.b16 %v590
      %v610 = vunpack.c.l.b16 %v591
      %v611 = vunpack.c.h.b16 %v591
      %v612 = vunpack.c.l.b16 %v592
      %v613 = vunpack.c.h.b16 %v592
      %v614 = vunpack.c.l.b16 %v593
      %v615 = vunpack.c.h.b16 %v593
      %v616 = vunpack.c.l.b16 %v594
      %v617 = vunpack.c.h.b16 %v594
      %v618 = vunpack.c.l.b16 %v595
      %v619 = vunpack.c.h.b16 %v595
      %v620 = vpack.c.b16 %v604, %v604
      %v621 = vpack.c.b16 %v605, %v605
      %v622 = vpack.c.b16 %v606, %v606
      %v623 = vpack.c.b16 %v607, %v607
      %v624 = vpack.c.b16 %v608, %v608
      %v625 = vpack.c.b16 %v609, %v609
      %v626 = vpack.c.b16 %v610, %v610
      %v627 = vpack.c.b16 %v611, %v611
      %v628 = vpack.c.b16 %v612, %v612
      %v629 = vpack.c.b16 %v613, %v613
      %v630 = vpack.c.b16 %v614, %v614
      %v631 = vpack.c.b16 %v615, %v615
      %v632 = vpack.c.b16 %v616, %v616
      %v633 = vpack.c.b16 %v617, %v617
      %v634 = vpack.c.b16 %v618, %v618
      %v635 = vpack.c.b16 %v619, %v619
      %652 = vst [vmem:[%s202] sm:$0xf] %v620
      %653 = vst [vmem:[%s202 + $0x4] sm:$0xf] %v621
      %654 = vst [vmem:[%s202 + $0x8] sm:$0xf] %v622
      %655 = vst [vmem:[%s202 + $0xc] sm:$0xf] %v623
      %656 = vst [vmem:[%s202 + $0x10] sm:$0xf] %v624
      %657 = vst [vmem:[%s202 + $0x14] sm:$0xf] %v625
      %658 = vst [vmem:[%s202 + $0x18] sm:$0xf] %v626
      %659 = vst [vmem:[%s202 + $0x1c] sm:$0xf] %v627
      %660 = vst [vmem:[%s202 + $0x20] sm:$0xf] %v628
      %661 = vst [vmem:[%s202 + $0x24] sm:$0xf] %v629
      %662 = vst [vmem:[%s202 + $0x28] sm:$0xf] %v630
      %663 = vst [vmem:[%s202 + $0x2c] sm:$0xf] %v631
      %664 = vst [vmem:[%s202 + $0x30] sm:$0xf] %v632
      %665 = vst [vmem:[%s202 + $0x34] sm:$0xf] %v633
      %666 = vst [vmem:[%s202 + $0x38] sm:$0xf] %v634
      %667 = vst [vmem:[%s202 + $0x3c] sm:$0xf] %v635
      %s668 = smul.u32 16, %s15
      %p669 = scmp.lt.s32.totalorder %s668, 63
      %s670 = scalar_select %p669, %s668, 63
      %s671 = smul.addr %s670, 4
      %s672 = scalar_lea.vmem %s4, %s671
      // Predicated region
      $region37: #{densenet_forward.15} parent=35 // pred_check
        %p673 = pneg %p122
      $region38: #{densenet_forward.15} parent=35 // pred_check_branch
        %675 = sbr.rel (%p673) target = $region40
      $region39: #{densenet_forward.15} parent=35 // pred_region
        %s676 = smul.u32 16, %s15
      $region40: #{densenet_forward.15} parent=35 // pred_fallthru
        _
    $region36: #{densenet_forward.15} parent=5 // pred_fallthru
      _
    %p677 = scmp.le.s32.totalorder 2, %s10
    // Predicated region
    $region41: #{densenet_forward.15} parent=5 // pred_check
      %p678 = pneg %p677
    $region42: #{densenet_forward.15} parent=5 // pred_check_branch
      %680 = sbr.rel (%p678) target = $region44
    $region43: #{densenet_forward.15} parent=5 // pred_region
      %s681 = ssub.s32 %s10, 2
      // Predicated region
      $region45: #{densenet_forward.15} parent=43 // pred_check
        %p682 = pneg %p128
      $region46: #{densenet_forward.15} parent=43 // pred_check_branch
        %684 = sbr.rel (%p682) target = $region48
      $region47: #{densenet_forward.15} parent=43 // pred_region
        %s685 = smul.u32 16, %s16
        %p686 = scmp.lt.s32.totalorder %s685, 63
        %s687 = scalar_select %p686, %s685, 63
        %s688 = smul.addr %s687, 4
        %s689 = scalar_lea.vmem %s4, %s688
      $region48: #{densenet_forward.15} parent=43 // pred_fallthru
        _
    $region44: #{densenet_forward.15} parent=5 // pred_fallthru
      _
  $region6: #{densenet_forward.15} parent=0 // loop_footer
    %s14 = sadd.s32 1, %s10
  $region7: #{densenet_forward.15} parent=0 // loop_footer_branch
    %9 = sbr.rel target = $region3
  $region8: #{densenet_forward.15} parent=0 // loop_exit
    _

// kernel: densenet_forward.22
$region0: #{densenet_forward.22}
  #allocation0 [shape = 'u32[]', space=smem, size = 0x4, offset = 0x4, fixed_abs, tag = 'smem constant byte address 0x4 - core index']
  #allocation1 [shape = 'u32[144,128]{1,0:T(1,128)}', space=vmem, size = 0x12000, scoped, tag = 'internal scratch']
  %s0 = inlined_call_operand.vmem [shape: bf16[128,128], index: 0, kind: input, shape index: {}]
  %s1 = inlined_call_operand.vmem [shape: f32[1,128], index: 1, kind: input, shape index: {}]
  %s2 = inlined_call_operand.vmem [shape: f32[1,128], index: 2, kind: input, shape index: {}]
  %s3 = inlined_call_operand.vmem [shape: bf16[128,128], index: 3, kind: input, shape index: {}]
  %s4 = inlined_call_operand.vmem [shape: bf16[128,128], index: 4, kind: output, shape index: {}]
  %s5 = sld [smem:[#allocation0]]
  $region49: #{densenet_forward.22} parent=0
    _
  %s7 = ssub.s32 1, %s5
  %s8 = scalar_select 0, %s7, %s5
  loop: start=0, step=1, limit=4
  $region2: #{densenet_forward.22} parent=0 // loop_pre_header
    _
  $region3: #{densenet_forward.22} parent=0 // loop_header
    %s10 = sphi 0, %s14
    %p11 = scmp.ge.s32.totalorder %s10, 4
    %s20 = sphi 0, %s22
    %s23 = sphi 0, %s20
    %s24 = sphi 0, %s23
    %s40 = sphi 0, %s24
    %s44 = sphi 0, %s44
    %s46 = sphi 0, %s44
    %s47 = sphi 0, %s46
    %s61 = sphi 0, %s47
    %s65 = sphi 0, %s65
    %s67 = sphi 0, %s65
    %s68 = sphi 0, %s67
    %s82 = sphi 0, %s68
    %s86 = sphi 0, %s86
    %s88 = sphi 0, %s86
    %s89 = sphi 0, %s88
    %s103 = sphi 0, %s89
    %s109 = sphi 0, %s111
    %s112 = sphi 0, %s109
    %s113 = sphi 0, %s112
    %s129 = sphi 0, %s113
  $region4: #{densenet_forward.22} parent=0 // loop_header_branch
    %13 = sbr.rel (%p11) target = $region8
  $region5: #{densenet_forward.22} parent=0 // loop_body
    %s15 = ssub.s32 %s10, 1
    %s16 = ssub.s32 %s10, 2
    %s17 = sadd.s32 %s10, 1
    %s18 = ssub.s32 %s10, %s17
    %p19 = scmp.eq.s32.totalorder %s18, 0
    %s21 = sadd.s32 %s20, 1
    %s22 = scalar_select %p19, %s20, %s21
    %p25 = pneg %p19
    %p26 = scmp.eq.s32.totalorder %s10, 1
    %p27 = por %p25, %p26
    %p28 = scmp.ne.s32.totalorder %s20, %s23
    %p29 = scmp.eq.s32.totalorder %s10, 0
    %p30 = por %p28, %p29
    %p31 = scmp.ne.s32.totalorder %s20, %s23
    %p32 = scmp.eq.s32.totalorder %s15, 1
    %p33 = por %p31, %p32
    %p34 = scmp.ne.s32.totalorder %s23, %s24
    %p35 = scmp.eq.s32.totalorder %s15, 0
    %p36 = por %p34, %p35
    %p37 = scmp.ne.s32.totalorder %s23, %s24
    %p38 = scmp.eq.s32.totalorder %s16, 1
    %p39 = por %p37, %p38
    %p41 = scmp.ne.s32.totalorder %s24, %s40
    %p42 = scmp.eq.s32.totalorder %s16, 0
    %p43 = por %p41, %p42
    %s45 = sadd.s32 %s44, 1
    %p48 = scmp.eq.s32.totalorder %s10, 1
    %p49 = scmp.ne.s32.totalorder %s44, %s46
    %p50 = scmp.eq.s32.totalorder %s10, 0
    %p51 = por %p49, %p50
    %p52 = scmp.ne.s32.totalorder %s44, %s46
    %p53 = scmp.eq.s32.totalorder %s15, 1
    %p54 = por %p52, %p53
    %p55 = scmp.ne.s32.totalorder %s46, %s47
    %p56 = scmp.eq.s32.totalorder %s15, 0
    %p57 = por %p55, %p56
    %p58 = scmp.ne.s32.totalorder %s46, %s47
    %p59 = scmp.eq.s32.totalorder %s16, 1
    %p60 = por %p58, %p59
    %p62 = scmp.ne.s32.totalorder %s47, %s61
    %p63 = scmp.eq.s32.totalorder %s16, 0
    %p64 = por %p62, %p63
    %s66 = sadd.s32 %s65, 1
    %p69 = scmp.eq.s32.totalorder %s10, 1
    %p70 = scmp.ne.s32.totalorder %s65, %s67
    %p71 = scmp.eq.s32.totalorder %s10, 0
    %p72 = por %p70, %p71
    %p73 = scmp.ne.s32.totalorder %s65, %s67
    %p74 = scmp.eq.s32.totalorder %s15, 1
    %p75 = por %p73, %p74
    %p76 = scmp.ne.s32.totalorder %s67, %s68
    %p77 = scmp.eq.s32.totalorder %s15, 0
    %p78 = por %p76, %p77
    %p79 = scmp.ne.s32.totalorder %s67, %s68
    %p80 = scmp.eq.s32.totalorder %s16, 1
    %p81 = por %p79, %p80
    %p83 = scmp.ne.s32.totalorder %s68, %s82
    %p84 = scmp.eq.s32.totalorder %s16, 0
    %p85 = por %p83, %p84
    %s87 = sadd.s32 %s86, 1
    %p90 = scmp.eq.s32.totalorder %s10, 1
    %p91 = scmp.ne.s32.totalorder %s86, %s88
    %p92 = scmp.eq.s32.totalorder %s10, 0
    %p93 = por %p91, %p92
    %p94 = scmp.ne.s32.totalorder %s86, %s88
    %p95 = scmp.eq.s32.totalorder %s15, 1
    %p96 = por %p94, %p95
    %p97 = scmp.ne.s32.totalorder %s88, %s89
    %p98 = scmp.eq.s32.totalorder %s15, 0
    %p99 = por %p97, %p98
    %p100 = scmp.ne.s32.totalorder %s88, %s89
    %p101 = scmp.eq.s32.totalorder %s16, 1
    %p102 = por %p100, %p101
    %p104 = scmp.ne.s32.totalorder %s89, %s103
    %p105 = scmp.eq.s32.totalorder %s16, 0
    %p106 = por %p104, %p105
    %s107 = ssub.s32 %s10, %s17
    %p108 = scmp.eq.s32.totalorder %s107, 0
    %s110 = sadd.s32 %s109, 1
    %s111 = scalar_select %p108, %s109, %s110
    %p114 = pneg %p108
    %p115 = scmp.eq.s32.totalorder %s10, 1
    %p116 = por %p114, %p115
    %p117 = scmp.ne.s32.totalorder %s109, %s112
    %p118 = scmp.eq.s32.totalorder %s10, 0
    %p119 = por %p117, %p118
    %p120 = scmp.ne.s32.totalorder %s109, %s112
    %p121 = scmp.eq.s32.totalorder %s15, 1
    %p122 = por %p120, %p121
    %p123 = scmp.ne.s32.totalorder %s112, %s113
    %p124 = scmp.eq.s32.totalorder %s15, 0
    %p125 = por %p123, %p124
    %p126 = scmp.ne.s32.totalorder %s112, %s113
    %p127 = scmp.eq.s32.totalorder %s16, 1
    %p128 = por %p126, %p127
    %p130 = scmp.ne.s32.totalorder %s113, %s129
    %p131 = scmp.eq.s32.totalorder %s16, 0
    %p132 = por %p130, %p131
    %p133 = scmp.le.s32.totalorder 1, %s10
    %p134 = scmp.lt.s32.totalorder %s10, 3
    %p135 = pnand %p133, %p134
    %p136 = pneg %p135
    // Predicated region
    $region9: #{densenet_forward.22} parent=5 // pred_check
      _
    $region10: #{densenet_forward.22} parent=5 // pred_check_branch
      %138 = sbr.rel (%p135) target = $region12
    $region11: #{densenet_forward.22} parent=5 // pred_region
      %s139 = ssub.s32 %s10, 1
      // Predicated region
      $region13: #{densenet_forward.22} parent=11 // pred_check
        %p140 = pneg %p57
      $region14: #{densenet_forward.22} parent=11 // pred_check_branch
        %142 = sbr.rel (%p140) target = $region16
      $region15: #{densenet_forward.22} parent=11 // pred_region
        _
      $region16: #{densenet_forward.22} parent=11 // pred_fallthru
        _
      // Predicated region
      $region17: #{densenet_forward.22} parent=11 // pred_check
        %p143 = pneg %p78
      $region18: #{densenet_forward.22} parent=11 // pred_check_branch
        %145 = sbr.rel (%p143) target = $region20
      $region19: #{densenet_forward.22} parent=11 // pred_region
        _
      $region20: #{densenet_forward.22} parent=11 // pred_fallthru
        _
      // Predicated region
      $region21: #{densenet_forward.22} parent=11 // pred_check
        %p146 = pneg %p99
      $region22: #{densenet_forward.22} parent=11 // pred_check_branch
        %148 = sbr.rel (%p146) target = $region24
      $region23: #{densenet_forward.22} parent=11 // pred_region
        _
      $region24: #{densenet_forward.22} parent=11 // pred_fallthru
        _
    $region12: #{densenet_forward.22} parent=5 // pred_fallthru
      _
    %p149 = scmp.lt.s32.totalorder %s10, 2
    // Predicated region
    $region25: #{densenet_forward.22} parent=5 // pred_check
      %p150 = pneg %p149
    $region26: #{densenet_forward.22} parent=5 // pred_check_branch
      %152 = sbr.rel (%p150) target = $region28
    $region27: #{densenet_forward.22} parent=5 // pred_region
      // Predicated region
      $region29: #{densenet_forward.22} parent=27 // pred_check
        %p153 = pneg %p30
      $region30: #{densenet_forward.22} parent=27 // pred_check_branch
        %155 = sbr.rel (%p153) target = $region32
      $region31: #{densenet_forward.22} parent=27 // pred_region
        %s156 = smul.u32 8, %s10
        %p157 = scmp.lt.s32.totalorder %s156, 15
        %s158 = scalar_select %p157, %s156, 15
        %s159 = smul.addr %s158, 4
        %s160 = scalar_lea.vmem %s0, %s159
        %s161 = smul.u32 8, %s10
      $region32: #{densenet_forward.22} parent=27 // pred_fallthru
        _
    $region28: #{densenet_forward.22} parent=5 // pred_fallthru
      _
    %p162 = scmp.le.s32.totalorder 1, %s10
    %p163 = scmp.lt.s32.totalorder %s10, 3
    %p164 = pnand %p162, %p163
    %p165 = pneg %p164
    // Predicated region
    $region33: #{densenet_forward.22} parent=5 // pred_check
      _
    $region34: #{densenet_forward.22} parent=5 // pred_check_branch
      %167 = sbr.rel (%p164) target = $region36
    $region35: #{densenet_forward.22} parent=5 // pred_region
      %s168 = ssub.s32 %s10, 1
      %s169 = smul.u32 8, %s15
      %p170 = scmp.lt.s32.totalorder %s169, 15
      %s171 = scalar_select %p170, %s169, 15
      %s172 = smul.addr %s171, 4
      %s173 = scalar_lea.vmem %s0, %s172
      %p174 = pneg %p36
      %p175 = pneg %p33
      %p176 = pneg %p57
      %p177 = pneg %p54
      %p178 = pneg %p78
      %p179 = pneg %p75
      %p180 = pneg %p99
      %p181 = pneg %p96
      %p182 = pneg %p125
      %p183 = pneg %p122
      %s184 = smul.u32 8, %s15
      %p185 = scmp.lt.s32.totalorder %s184, 15
      %s186 = scalar_select %p185, %s184, 15
      %s187 = smul.addr %s186, 4
      %s188 = scalar_lea.vmem %s4, %s187
      %s189 = smul.u32 8, %s15
      %p190 = scmp.lt.s32.totalorder %s189, 15
      %s191 = scalar_select %p190, %s189, 15
      %s192 = smul.addr %s191, 4
      %s193 = scalar_lea.vmem %s0, %s192
      %s194 = smul.u32 8, %s15
      %s195 = smul.u32 8, %s15
      %p196 = scmp.lt.s32.totalorder %s195, 15
      %s197 = scalar_select %p196, %s195, 15
      %s198 = smul.addr %s197, 4
      %s199 = scalar_lea.vmem %s4, %s198
      %s200 = smul.u32 8, %s15
      %v202 = vld [vmem:[%s193] sm:$0xf]
      %v203 = vld [vmem:[%s193 + $0x4] sm:$0xf]
      %v204 = vld [vmem:[%s193 + $0x8] sm:$0xf]
      %v205 = vld [vmem:[%s193 + $0xc] sm:$0xf]
      %v206 = vld [vmem:[%s193 + $0x10] sm:$0xf]
      %v207 = vld [vmem:[%s193 + $0x14] sm:$0xf]
      %v208 = vld [vmem:[%s193 + $0x18] sm:$0xf]
      %v209 = vld [vmem:[%s193 + $0x1c] sm:$0xf]
      %v210 = vunpack.c.l.bf16 %v202
      %v211 = vunpack.c.l.bf16 %v203
      %v212 = vunpack.c.l.bf16 %v204
      %v213 = vunpack.c.l.bf16 %v205
      %v214 = vunpack.c.l.bf16 %v206
      %v215 = vunpack.c.l.bf16 %v207
      %v216 = vunpack.c.l.bf16 %v208
      %v217 = vunpack.c.l.bf16 %v209
      %v218 = vld [vmem:[%s1] sm:$0x1]
      %v220 = vlaneseq
      %v221 = vshrl.u32 %v220, 7
      %v222 = vsub.s32 0, %v221
      %v223 = vrot.slane %v218, %v222
      %v225 = vmul.f32 %v210, %v223
      %v226 = vmul.f32 %v211, %v223
      %v227 = vmul.f32 %v212, %v223
      %v228 = vmul.f32 %v213, %v223
      %v229 = vmul.f32 %v214, %v223
      %v230 = vmul.f32 %v215, %v223
      %v231 = vmul.f32 %v216, %v223
      %v232 = vmul.f32 %v217, %v223
      %v233 = vld [vmem:[%s2] sm:$0x1]
      %v235 = vlaneseq
      %v236 = vshrl.u32 %v235, 7
      %v237 = vsub.s32 0, %v236
      %v238 = vrot.slane %v233, %v237
      %v240 = vadd.f32 %v225, %v238
      %v241 = vadd.f32 %v226, %v238
      %v242 = vadd.f32 %v227, %v238
      %v243 = vadd.f32 %v228, %v238
      %v244 = vadd.f32 %v229, %v238
      %v245 = vadd.f32 %v230, %v238
      %v246 = vadd.f32 %v231, %v238
      %v247 = vadd.f32 %v232, %v238
      %v248 = vmax.f32 %v240, 0.0
      %v249 = vmax.f32 %v241, 0.0
      %v250 = vmax.f32 %v242, 0.0
      %v251 = vmax.f32 %v243, 0.0
      %v252 = vmax.f32 %v244, 0.0
      %v253 = vmax.f32 %v245, 0.0
      %v254 = vmax.f32 %v246, 0.0
      %v255 = vmax.f32 %v247, 0.0
      %v256 = vpack.c.bf16 %v249, %v248
      %v257 = vpack.c.bf16 %v251, %v250
      %v258 = vpack.c.bf16 %v253, %v252
      %v259 = vpack.c.bf16 %v255, %v254
      %v260 = vld [vmem:[%s3] sm:$0xf]
      %v261 = vld [vmem:[%s3 + $0x4] sm:$0xf]
      %v262 = vld [vmem:[%s3 + $0x8] sm:$0xf]
      %v263 = vld [vmem:[%s3 + $0xc] sm:$0xf]
      %v264 = vld [vmem:[%s3 + $0x10] sm:$0xf]
      %v265 = vld [vmem:[%s3 + $0x14] sm:$0xf]
      %v266 = vld [vmem:[%s3 + $0x18] sm:$0xf]
      %v267 = vld [vmem:[%s3 + $0x1c] sm:$0xf]
      %v268 = vld [vmem:[%s3 + $0x20] sm:$0xf]
      %v269 = vld [vmem:[%s3 + $0x24] sm:$0xf]
      %v270 = vld [vmem:[%s3 + $0x28] sm:$0xf]
      %v271 = vld [vmem:[%s3 + $0x2c] sm:$0xf]
      %v272 = vld [vmem:[%s3 + $0x30] sm:$0xf]
      %v273 = vld [vmem:[%s3 + $0x34] sm:$0xf]
      %v274 = vld [vmem:[%s3 + $0x38] sm:$0xf]
      %v275 = vld [vmem:[%s3 + $0x3c] sm:$0xf]
      %v292 = vunpack.c.l.b16 %v260
      %v293 = vunpack.c.l.b16 %v261
      %v294 = vunpack.c.l.b16 %v262
      %v295 = vunpack.c.l.b16 %v263
      %v296 = vunpack.c.l.b16 %v264
      %v297 = vunpack.c.l.b16 %v265
      %v298 = vunpack.c.l.b16 %v266
      %v299 = vunpack.c.l.b16 %v267
      %v300 = vunpack.c.l.b16 %v268
      %v301 = vunpack.c.l.b16 %v269
      %v302 = vunpack.c.l.b16 %v270
      %v303 = vunpack.c.l.b16 %v271
      %v304 = vunpack.c.l.b16 %v272
      %v305 = vunpack.c.l.b16 %v273
      %v306 = vunpack.c.l.b16 %v274
      %v307 = vunpack.c.l.b16 %v275
      %v308 = vpack.c.b16 %v293, %v292
      %v309 = vpack.c.b16 %v295, %v294
      %v310 = vpack.c.b16 %v297, %v296
      %v311 = vpack.c.b16 %v299, %v298
      %v312 = vpack.c.b16 %v301, %v300
      %v313 = vpack.c.b16 %v303, %v302
      %v314 = vpack.c.b16 %v305, %v304
      %v315 = vpack.c.b16 %v307, %v306
      %324 = vmatprep.subr.bf16.mxu0 0
      %325 = vmatpush1.bf16.msra.mxu0 %v315
      %326 = vmatprep.subr.bf16.mxu0 0
      %327 = vmatpush1.bf16.msra.mxu0 %v314
      %328 = vmatprep.subr.bf16.mxu0 0
      %329 = vmatpush1.bf16.msra.mxu0 %v313
      %330 = vmatprep.subr.bf16.mxu0 0
      %331 = vmatpush1.bf16.msra.mxu0 %v312
      %332 = vmatprep.subr.bf16.mxu0 0
      %333 = vmatpush1.bf16.msra.mxu0 %v311
      %334 = vmatprep.subr.bf16.mxu0 0
      %335 = vmatpush1.bf16.msra.mxu0 %v310
      %336 = vmatprep.subr.bf16.mxu0 0
      %337 = vmatpush1.bf16.msra.mxu0 %v309
      %338 = vmatprep.subr.bf16.mxu0 0
      %339 = vmatpush1.bf16.msra.mxu0 %v308
      %340 = vmatprep.subr.bf16.mxu0 0
      %341 = vmatpush2.bf16.msra.mxu0 0
      %342 = vmatprep.subr.bf16.mxu0 0
      %343 = vmatpush2.bf16.msra.mxu0 0
      %344 = vmatprep.subr.bf16.mxu0 0
      %345 = vmatpush2.bf16.msra.mxu0 0
      %346 = vmatprep.subr.bf16.mxu0 0
      %347 = vmatpush2.bf16.msra.mxu0 0
      %348 = vmatprep.subr.bf16.mxu0 0
      %349 = vmatpush2.bf16.msra.mxu0 0
      %350 = vmatprep.subr.bf16.mxu0 0
      %351 = vmatpush2.bf16.msra.mxu0 0
      %352 = vmatprep.subr.bf16.mxu0 0
      %353 = vmatpush2.bf16.msra.mxu0 0
      %354 = vmatprep.subr.bf16.mxu0 0
      %355 = vmatpush2.bf16.msra.mxu0 0
      %356 = vmatprep.mubr.bf16.mxu0 0
      %357 = vmatmul.mubr.bf16.gmra.mxu0 %v256
      %v358 = vpop.f32.mrf.mxu0
      %v359 = vadd.f32 0.0, %v358
      %v360 = vpop.f32.mrf.mxu0
      %v361 = vpop.f32.mrf.mxu0
      %v362 = vadd.f32 0.0, %v361
      %v363 = vpop.f32.mrf.mxu0
      %364 = vmatprep.mubr.bf16.mxu0 0
      %365 = vmatmul.mubr.bf16.gmra.mxu0 %v257
      %v366 = vpop.f32.mrf.mxu0
      %v367 = vadd.f32 0.0, %v366
      %v368 = vpop.f32.mrf.mxu0
      %v369 = vpop.f32.mrf.mxu0
      %v370 = vadd.f32 0.0, %v369
      %v371 = vpop.f32.mrf.mxu0
      %372 = vmatprep.mubr.bf16.mxu0 0
      %373 = vmatmul.mubr.bf16.gmra.mxu0 %v258
      %v374 = vpop.f32.mrf.mxu0
      %v375 = vadd.f32 0.0, %v374
      %v376 = vpop.f32.mrf.mxu0
      %v377 = vpop.f32.mrf.mxu0
      %v378 = vadd.f32 0.0, %v377
      %v379 = vpop.f32.mrf.mxu0
      %380 = vmatprep.mubr.bf16.mxu0 0
      %381 = vmatmul.mubr.bf16.gmra.mxu0 %v259
      %v382 = vpop.f32.mrf.mxu0
      %v383 = vadd.f32 0.0, %v382
      %v384 = vpop.f32.mrf.mxu0
      %v385 = vpop.f32.mrf.mxu0
      %v386 = vadd.f32 0.0, %v385
      %v387 = vpop.f32.mrf.mxu0
      %388 = vdwg.mxu0
      %v389 = vpack.c.bf16 %v362, %v359
      %v390 = vpack.c.bf16 %v370, %v367
      %v391 = vpack.c.bf16 %v378, %v375
      %v392 = vpack.c.bf16 %v386, %v383
      %v397 = vunpack.c.l.b16 %v389
      %v398 = vunpack.c.h.b16 %v389
      %v399 = vunpack.c.l.b16 %v390
      %v400 = vunpack.c.h.b16 %v390
      %v401 = vunpack.c.l.b16 %v391
      %v402 = vunpack.c.h.b16 %v391
      %v403 = vunpack.c.l.b16 %v392
      %v404 = vunpack.c.h.b16 %v392
      %v405 = vpack.c.b16 %v397, %v397
      %v406 = vpack.c.b16 %v398, %v398
      %v407 = vpack.c.b16 %v399, %v399
      %v408 = vpack.c.b16 %v400, %v400
      %v409 = vpack.c.b16 %v401, %v401
      %v410 = vpack.c.b16 %v402, %v402
      %v411 = vpack.c.b16 %v403, %v403
      %v412 = vpack.c.b16 %v404, %v404
      %421 = vst [vmem:[%s199] sm:$0xf] %v405
      %422 = vst [vmem:[%s199 + $0x4] sm:$0xf] %v406
      %423 = vst [vmem:[%s199 + $0x8] sm:$0xf] %v407
      %424 = vst [vmem:[%s199 + $0xc] sm:$0xf] %v408
      %425 = vst [vmem:[%s199 + $0x10] sm:$0xf] %v409
      %426 = vst [vmem:[%s199 + $0x14] sm:$0xf] %v410
      %427 = vst [vmem:[%s199 + $0x18] sm:$0xf] %v411
      %428 = vst [vmem:[%s199 + $0x1c] sm:$0xf] %v412
      %s429 = smul.u32 8, %s15
      %p430 = scmp.lt.s32.totalorder %s429, 15
      %s431 = scalar_select %p430, %s429, 15
      %s432 = smul.addr %s431, 4
      %s433 = scalar_lea.vmem %s4, %s432
      // Predicated region
      $region37: #{densenet_forward.22} parent=35 // pred_check
        %p434 = pneg %p122
      $region38: #{densenet_forward.22} parent=35 // pred_check_branch
        %436 = sbr.rel (%p434) target = $region40
      $region39: #{densenet_forward.22} parent=35 // pred_region
        %s437 = smul.u32 8, %s15
      $region40: #{densenet_forward.22} parent=35 // pred_fallthru
        _
    $region36: #{densenet_forward.22} parent=5 // pred_fallthru
      _
    %p438 = scmp.le.s32.totalorder 2, %s10
    // Predicated region
    $region41: #{densenet_forward.22} parent=5 // pred_check
      %p439 = pneg %p438
    $region42: #{densenet_forward.22} parent=5 // pred_check_branch
      %441 = sbr.rel (%p439) target = $region44
    $region43: #{densenet_forward.22} parent=5 // pred_region
      %s442 = ssub.s32 %s10, 2
      // Predicated region
      $region45: #{densenet_forward.22} parent=43 // pred_check
        %p443 = pneg %p128
      $region46: #{densenet_forward.22} parent=43 // pred_check_branch
        %445 = sbr.rel (%p443) target = $region48
      $region47: #{densenet_forward.22} parent=43 // pred_region
        %s446 = smul.u32 8, %s16
        %p447 = scmp.lt.s32.totalorder %s446, 15
        %s448 = scalar_select %p447, %s446, 15
        %s449 = smul.addr %s448, 4
        %s450 = scalar_lea.vmem %s4, %s449
      $region48: #{densenet_forward.22} parent=43 // pred_fallthru
        _
    $region44: #{densenet_forward.22} parent=5 // pred_fallthru
      _
  $region6: #{densenet_forward.22} parent=0 // loop_footer
    %s14 = sadd.s32 1, %s10
  $region7: #{densenet_forward.22} parent=0 // loop_footer_branch
    %9 = sbr.rel target = $region3
  $region8: #{densenet_forward.22} parent=0 // loop_exit
    _

// kernel: densenet_forward.23
$region0: #{densenet_forward.23}
  #allocation0 [shape = 'u32[]', space=smem, size = 0x4, offset = 0x4, fixed_abs, tag = 'smem constant byte address 0x4 - core index']
  #allocation1 [shape = 'u32[144,128]{1,0:T(1,128)}', space=vmem, size = 0x12000, scoped, tag = 'internal scratch']
  %s0 = inlined_call_operand.vmem [shape: bf16[32,128], index: 0, kind: input, shape index: {}]
  %s1 = inlined_call_operand.vmem [shape: f32[1,128], index: 1, kind: input, shape index: {}]
  %s2 = inlined_call_operand.vmem [shape: f32[1,128], index: 2, kind: input, shape index: {}]
  %s3 = inlined_call_operand.vmem [shape: bf16[128,128], index: 3, kind: input, shape index: {}]
  %s4 = inlined_call_operand.vmem [shape: f32[1,128], index: 4, kind: input, shape index: {}]
  %s5 = inlined_call_operand.vmem [shape: f32[1,128], index: 5, kind: input, shape index: {}]
  %s6 = inlined_call_operand.vmem [shape: bf16[32,128], index: 6, kind: output, shape index: {}]
  %s7 = sld [smem:[#allocation0]]
  $region57: #{densenet_forward.23} parent=0
    _
  %s9 = ssub.s32 1, %s7
  %s10 = scalar_select 0, %s9, %s7
  loop: start=0, step=1, limit=4
  $region2: #{densenet_forward.23} parent=0 // loop_pre_header
    _
  $region3: #{densenet_forward.23} parent=0 // loop_header
    %s12 = sphi 0, %s16
    %p13 = scmp.ge.s32.totalorder %s12, 4
    %s22 = sphi 0, %s24
    %s25 = sphi 0, %s22
    %s26 = sphi 0, %s25
    %s42 = sphi 0, %s26
    %s46 = sphi 0, %s46
    %s48 = sphi 0, %s46
    %s49 = sphi 0, %s48
    %s63 = sphi 0, %s49
    %s67 = sphi 0, %s67
    %s69 = sphi 0, %s67
    %s70 = sphi 0, %s69
    %s84 = sphi 0, %s70
    %s88 = sphi 0, %s88
    %s90 = sphi 0, %s88
    %s91 = sphi 0, %s90
    %s105 = sphi 0, %s91
    %s109 = sphi 0, %s109
    %s111 = sphi 0, %s109
    %s112 = sphi 0, %s111
    %s126 = sphi 0, %s112
    %s130 = sphi 0, %s130
    %s132 = sphi 0, %s130
    %s133 = sphi 0, %s132
    %s147 = sphi 0, %s133
    %s153 = sphi 0, %s155
    %s156 = sphi 0, %s153
    %s157 = sphi 0, %s156
    %s173 = sphi 0, %s157
  $region4: #{densenet_forward.23} parent=0 // loop_header_branch
    %15 = sbr.rel (%p13) target = $region8
  $region5: #{densenet_forward.23} parent=0 // loop_body
    %s17 = ssub.s32 %s12, 1
    %s18 = ssub.s32 %s12, 2
    %s19 = sadd.s32 %s12, 1
    %s20 = ssub.s32 %s12, %s19
    %p21 = scmp.eq.s32.totalorder %s20, 0
    %s23 = sadd.s32 %s22, 1
    %s24 = scalar_select %p21, %s22, %s23
    %p27 = pneg %p21
    %p28 = scmp.eq.s32.totalorder %s12, 1
    %p29 = por %p27, %p28
    %p30 = scmp.ne.s32.totalorder %s22, %s25
    %p31 = scmp.eq.s32.totalorder %s12, 0
    %p32 = por %p30, %p31
    %p33 = scmp.ne.s32.totalorder %s22, %s25
    %p34 = scmp.eq.s32.totalorder %s17, 1
    %p35 = por %p33, %p34
    %p36 = scmp.ne.s32.totalorder %s25, %s26
    %p37 = scmp.eq.s32.totalorder %s17, 0
    %p38 = por %p36, %p37
    %p39 = scmp.ne.s32.totalorder %s25, %s26
    %p40 = scmp.eq.s32.totalorder %s18, 1
    %p41 = por %p39, %p40
    %p43 = scmp.ne.s32.totalorder %s26, %s42
    %p44 = scmp.eq.s32.totalorder %s18, 0
    %p45 = por %p43, %p44
    %s47 = sadd.s32 %s46, 1
    %p50 = scmp.eq.s32.totalorder %s12, 1
    %p51 = scmp.ne.s32.totalorder %s46, %s48
    %p52 = scmp.eq.s32.totalorder %s12, 0
    %p53 = por %p51, %p52
    %p54 = scmp.ne.s32.totalorder %s46, %s48
    %p55 = scmp.eq.s32.totalorder %s17, 1
    %p56 = por %p54, %p55
    %p57 = scmp.ne.s32.totalorder %s48, %s49
    %p58 = scmp.eq.s32.totalorder %s17, 0
    %p59 = por %p57, %p58
    %p60 = scmp.ne.s32.totalorder %s48, %s49
    %p61 = scmp.eq.s32.totalorder %s18, 1
    %p62 = por %p60, %p61
    %p64 = scmp.ne.s32.totalorder %s49, %s63
    %p65 = scmp.eq.s32.totalorder %s18, 0
    %p66 = por %p64, %p65
    %s68 = sadd.s32 %s67, 1
    %p71 = scmp.eq.s32.totalorder %s12, 1
    %p72 = scmp.ne.s32.totalorder %s67, %s69
    %p73 = scmp.eq.s32.totalorder %s12, 0
    %p74 = por %p72, %p73
    %p75 = scmp.ne.s32.totalorder %s67, %s69
    %p76 = scmp.eq.s32.totalorder %s17, 1
    %p77 = por %p75, %p76
    %p78 = scmp.ne.s32.totalorder %s69, %s70
    %p79 = scmp.eq.s32.totalorder %s17, 0
    %p80 = por %p78, %p79
    %p81 = scmp.ne.s32.totalorder %s69, %s70
    %p82 = scmp.eq.s32.totalorder %s18, 1
    %p83 = por %p81, %p82
    %p85 = scmp.ne.s32.totalorder %s70, %s84
    %p86 = scmp.eq.s32.totalorder %s18, 0
    %p87 = por %p85, %p86
    %s89 = sadd.s32 %s88, 1
    %p92 = scmp.eq.s32.totalorder %s12, 1
    %p93 = scmp.ne.s32.totalorder %s88, %s90
    %p94 = scmp.eq.s32.totalorder %s12, 0
    %p95 = por %p93, %p94
    %p96 = scmp.ne.s32.totalorder %s88, %s90
    %p97 = scmp.eq.s32.totalorder %s17, 1
    %p98 = por %p96, %p97
    %p99 = scmp.ne.s32.totalorder %s90, %s91
    %p100 = scmp.eq.s32.totalorder %s17, 0
    %p101 = por %p99, %p100
    %p102 = scmp.ne.s32.totalorder %s90, %s91
    %p103 = scmp.eq.s32.totalorder %s18, 1
    %p104 = por %p102, %p103
    %p106 = scmp.ne.s32.totalorder %s91, %s105
    %p107 = scmp.eq.s32.totalorder %s18, 0
    %p108 = por %p106, %p107
    %s110 = sadd.s32 %s109, 1
    %p113 = scmp.eq.s32.totalorder %s12, 1
    %p114 = scmp.ne.s32.totalorder %s109, %s111
    %p115 = scmp.eq.s32.totalorder %s12, 0
    %p116 = por %p114, %p115
    %p117 = scmp.ne.s32.totalorder %s109, %s111
    %p118 = scmp.eq.s32.totalorder %s17, 1
    %p119 = por %p117, %p118
    %p120 = scmp.ne.s32.totalorder %s111, %s112
    %p121 = scmp.eq.s32.totalorder %s17, 0
    %p122 = por %p120, %p121
    %p123 = scmp.ne.s32.totalorder %s111, %s112
    %p124 = scmp.eq.s32.totalorder %s18, 1
    %p125 = por %p123, %p124
    %p127 = scmp.ne.s32.totalorder %s112, %s126
    %p128 = scmp.eq.s32.totalorder %s18, 0
    %p129 = por %p127, %p128
    %s131 = sadd.s32 %s130, 1
    %p134 = scmp.eq.s32.totalorder %s12, 1
    %p135 = scmp.ne.s32.totalorder %s130, %s132
    %p136 = scmp.eq.s32.totalorder %s12, 0
    %p137 = por %p135, %p136
    %p138 = scmp.ne.s32.totalorder %s130, %s132
    %p139 = scmp.eq.s32.totalorder %s17, 1
    %p140 = por %p138, %p139
    %p141 = scmp.ne.s32.totalorder %s132, %s133
    %p142 = scmp.eq.s32.totalorder %s17, 0
    %p143 = por %p141, %p142
    %p144 = scmp.ne.s32.totalorder %s132, %s133
    %p145 = scmp.eq.s32.totalorder %s18, 1
    %p146 = por %p144, %p145
    %p148 = scmp.ne.s32.totalorder %s133, %s147
    %p149 = scmp.eq.s32.totalorder %s18, 0
    %p150 = por %p148, %p149
    %s151 = ssub.s32 %s12, %s19
    %p152 = scmp.eq.s32.totalorder %s151, 0
    %s154 = sadd.s32 %s153, 1
    %s155 = scalar_select %p152, %s153, %s154
    %p158 = pneg %p152
    %p159 = scmp.eq.s32.totalorder %s12, 1
    %p160 = por %p158, %p159
    %p161 = scmp.ne.s32.totalorder %s153, %s156
    %p162 = scmp.eq.s32.totalorder %s12, 0
    %p163 = por %p161, %p162
    %p164 = scmp.ne.s32.totalorder %s153, %s156
    %p165 = scmp.eq.s32.totalorder %s17, 1
    %p166 = por %p164, %p165
    %p167 = scmp.ne.s32.totalorder %s156, %s157
    %p168 = scmp.eq.s32.totalorder %s17, 0
    %p169 = por %p167, %p168
    %p170 = scmp.ne.s32.totalorder %s156, %s157
    %p171 = scmp.eq.s32.totalorder %s18, 1
    %p172 = por %p170, %p171
    %p174 = scmp.ne.s32.totalorder %s157, %s173
    %p175 = scmp.eq.s32.totalorder %s18, 0
    %p176 = por %p174, %p175
    %p177 = scmp.le.s32.totalorder 1, %s12
    %p178 = scmp.lt.s32.totalorder %s12, 3
    %p179 = pnand %p177, %p178
    %p180 = pneg %p179
    // Predicated region
    $region9: #{densenet_forward.23} parent=5 // pred_check
      _
    $region10: #{densenet_forward.23} parent=5 // pred_check_branch
      %182 = sbr.rel (%p179) target = $region12
    $region11: #{densenet_forward.23} parent=5 // pred_region
      %s183 = ssub.s32 %s12, 1
      // Predicated region
      $region13: #{densenet_forward.23} parent=11 // pred_check
        %p184 = pneg %p59
      $region14: #{densenet_forward.23} parent=11 // pred_check_branch
        %186 = sbr.rel (%p184) target = $region16
      $region15: #{densenet_forward.23} parent=11 // pred_region
        _
      $region16: #{densenet_forward.23} parent=11 // pred_fallthru
        _
      // Predicated region
      $region17: #{densenet_forward.23} parent=11 // pred_check
        %p187 = pneg %p80
      $region18: #{densenet_forward.23} parent=11 // pred_check_branch
        %189 = sbr.rel (%p187) target = $region20
      $region19: #{densenet_forward.23} parent=11 // pred_region
        _
      $region20: #{densenet_forward.23} parent=11 // pred_fallthru
        _
      // Predicated region
      $region21: #{densenet_forward.23} parent=11 // pred_check
        %p190 = pneg %p101
      $region22: #{densenet_forward.23} parent=11 // pred_check_branch
        %192 = sbr.rel (%p190) target = $region24
      $region23: #{densenet_forward.23} parent=11 // pred_region
        _
      $region24: #{densenet_forward.23} parent=11 // pred_fallthru
        _
      // Predicated region
      $region25: #{densenet_forward.23} parent=11 // pred_check
        %p193 = pneg %p122
      $region26: #{densenet_forward.23} parent=11 // pred_check_branch
        %195 = sbr.rel (%p193) target = $region28
      $region27: #{densenet_forward.23} parent=11 // pred_region
        _
      $region28: #{densenet_forward.23} parent=11 // pred_fallthru
        _
      // Predicated region
      $region29: #{densenet_forward.23} parent=11 // pred_check
        %p196 = pneg %p143
      $region30: #{densenet_forward.23} parent=11 // pred_check_branch
        %198 = sbr.rel (%p196) target = $region32
      $region31: #{densenet_forward.23} parent=11 // pred_region
        _
      $region32: #{densenet_forward.23} parent=11 // pred_fallthru
        _
    $region12: #{densenet_forward.23} parent=5 // pred_fallthru
      _
    %p199 = scmp.lt.s32.totalorder %s12, 2
    // Predicated region
    $region33: #{densenet_forward.23} parent=5 // pred_check
      %p200 = pneg %p199
    $region34: #{densenet_forward.23} parent=5 // pred_check_branch
      %202 = sbr.rel (%p200) target = $region36
    $region35: #{densenet_forward.23} parent=5 // pred_region
      // Predicated region
      $region37: #{densenet_forward.23} parent=35 // pred_check
        %p203 = pneg %p32
      $region38: #{densenet_forward.23} parent=35 // pred_check_branch
        %205 = sbr.rel (%p203) target = $region40
      $region39: #{densenet_forward.23} parent=35 // pred_region
        %s206 = smul.u32 2, %s12
        %p207 = scmp.lt.s32.totalorder %s206, 3
        %s208 = scalar_select %p207, %s206, 3
        %s209 = smul.addr %s208, 4
        %s210 = scalar_lea.vmem %s0, %s209
        %s211 = smul.u32 2, %s12
      $region40: #{densenet_forward.23} parent=35 // pred_fallthru
        _
    $region36: #{densenet_forward.23} parent=5 // pred_fallthru
      _
    %p212 = scmp.le.s32.totalorder 1, %s12
    %p213 = scmp.lt.s32.totalorder %s12, 3
    %p214 = pnand %p212, %p213
    %p215 = pneg %p214
    // Predicated region
    $region41: #{densenet_forward.23} parent=5 // pred_check
      _
    $region42: #{densenet_forward.23} parent=5 // pred_check_branch
      %217 = sbr.rel (%p214) target = $region44
    $region43: #{densenet_forward.23} parent=5 // pred_region
      %s218 = ssub.s32 %s12, 1
      %s219 = smul.u32 2, %s17
      %p220 = scmp.lt.s32.totalorder %s219, 3
      %s221 = scalar_select %p220, %s219, 3
      %s222 = smul.addr %s221, 4
      %s223 = scalar_lea.vmem %s0, %s222
      %p224 = pneg %p38
      %p225 = pneg %p35
      %p226 = pneg %p59
      %p227 = pneg %p56
      %p228 = pneg %p80
      %p229 = pneg %p77
      %p230 = pneg %p101
      %p231 = pneg %p98
      %p232 = pneg %p122
      %p233 = pneg %p119
      %p234 = pneg %p143
      %p235 = pneg %p140
      %p236 = pneg %p169
      %p237 = pneg %p166
      %s238 = smul.u32 2, %s17
      %p239 = scmp.lt.s32.totalorder %s238, 3
      %s240 = scalar_select %p239, %s238, 3
      %s241 = smul.addr %s240, 4
      %s242 = scalar_lea.vmem %s6, %s241
      %s243 = smul.u32 2, %s17
      %p244 = scmp.lt.s32.totalorder %s243, 3
      %s245 = scalar_select %p244, %s243, 3
      %s246 = smul.addr %s245, 4
      %s247 = scalar_lea.vmem %s0, %s246
      %s248 = smul.u32 2, %s17
      %s249 = smul.u32 2, %s17
      %p250 = scmp.lt.s32.totalorder %s249, 3
      %s251 = scalar_select %p250, %s249, 3
      %s252 = smul.addr %s251, 4
      %s253 = scalar_lea.vmem %s6, %s252
      %s254 = smul.u32 2, %s17
      %v256 = vld [vmem:[%s247] sm:$0xf]
      %v257 = vld [vmem:[%s247 + $0x4] sm:$0xf]
      %v258 = vunpack.c.l.bf16 %v256
      %v259 = vunpack.c.l.bf16 %v257
      %v260 = vld [vmem:[%s1] sm:$0x1]
      %v262 = vlaneseq
      %v263 = vshrl.u32 %v262, 7
      %v264 = vsub.s32 0, %v263
      %v265 = vrot.slane %v260, %v264
      %v267 = vmul.f32 %v258, %v265
      %v268 = vmul.f32 %v259, %v265
      %v269 = vld [vmem:[%s2] sm:$0x1]
      %v271 = vlaneseq
      %v272 = vshrl.u32 %v271, 7
      %v273 = vsub.s32 0, %v272
      %v274 = vrot.slane %v269, %v273
      %v276 = vadd.f32 %v267, %v274
      %v277 = vadd.f32 %v268, %v274
      %v278 = vmax.f32 %v276, 0.0
      %v279 = vmax.f32 %v277, 0.0
      %v280 = vpack.c.bf16 %v279, %v278
      %v281 = vld [vmem:[%s3] sm:$0xf]
      %v282 = vld [vmem:[%s3 + $0x4] sm:$0xf]
      %v283 = vld [vmem:[%s3 + $0x8] sm:$0xf]
      %v284 = vld [vmem:[%s3 + $0xc] sm:$0xf]
      %v285 = vld [vmem:[%s3 + $0x10] sm:$0xf]
      %v286 = vld [vmem:[%s3 + $0x14] sm:$0xf]
      %v287 = vld [vmem:[%s3 + $0x18] sm:$0xf]
      %v288 = vld [vmem:[%s3 + $0x1c] sm:$0xf]
      %v289 = vld [vmem:[%s3 + $0x20] sm:$0xf]
      %v290 = vld [vmem:[%s3 + $0x24] sm:$0xf]
      %v291 = vld [vmem:[%s3 + $0x28] sm:$0xf]
      %v292 = vld [vmem:[%s3 + $0x2c] sm:$0xf]
      %v293 = vld [vmem:[%s3 + $0x30] sm:$0xf]
      %v294 = vld [vmem:[%s3 + $0x34] sm:$0xf]
      %v295 = vld [vmem:[%s3 + $0x38] sm:$0xf]
      %v296 = vld [vmem:[%s3 + $0x3c] sm:$0xf]
      %v313 = vunpack.c.l.b16 %v281
      %v314 = vunpack.c.l.b16 %v282
      %v315 = vunpack.c.l.b16 %v283
      %v316 = vunpack.c.l.b16 %v284
      %v317 = vunpack.c.l.b16 %v285
      %v318 = vunpack.c.l.b16 %v286
      %v319 = vunpack.c.l.b16 %v287
      %v320 = vunpack.c.l.b16 %v288
      %v321 = vunpack.c.l.b16 %v289
      %v322 = vunpack.c.l.b16 %v290
      %v323 = vunpack.c.l.b16 %v291
      %v324 = vunpack.c.l.b16 %v292
      %v325 = vunpack.c.l.b16 %v293
      %v326 = vunpack.c.l.b16 %v294
      %v327 = vunpack.c.l.b16 %v295
      %v328 = vunpack.c.l.b16 %v296
      %v329 = vpack.c.b16 %v314, %v313
      %v330 = vpack.c.b16 %v316, %v315
      %v331 = vpack.c.b16 %v318, %v317
      %v332 = vpack.c.b16 %v320, %v319
      %v333 = vpack.c.b16 %v322, %v321
      %v334 = vpack.c.b16 %v324, %v323
      %v335 = vpack.c.b16 %v326, %v325
      %v336 = vpack.c.b16 %v328, %v327
      %345 = vmatprep.subr.bf16.mxu0 0
      %346 = vmatpush1.bf16.msra.mxu0 %v336
      %347 = vmatprep.subr.bf16.mxu0 0
      %348 = vmatpush1.bf16.msra.mxu0 %v335
      %349 = vmatprep.subr.bf16.mxu0 0
      %350 = vmatpush1.bf16.msra.mxu0 %v334
      %351 = vmatprep.subr.bf16.mxu0 0
      %352 = vmatpush1.bf16.msra.mxu0 %v333
      %353 = vmatprep.subr.bf16.mxu0 0
      %354 = vmatpush1.bf16.msra.mxu0 %v332
      %355 = vmatprep.subr.bf16.mxu0 0
      %356 = vmatpush1.bf16.msra.mxu0 %v331
      %357 = vmatprep.subr.bf16.mxu0 0
      %358 = vmatpush1.bf16.msra.mxu0 %v330
      %359 = vmatprep.subr.bf16.mxu0 0
      %360 = vmatpush1.bf16.msra.mxu0 %v329
      %361 = vmatprep.subr.bf16.mxu0 0
      %362 = vmatpush2.bf16.msra.mxu0 0
      %363 = vmatprep.subr.bf16.mxu0 0
      %364 = vmatpush2.bf16.msra.mxu0 0
      %365 = vmatprep.subr.bf16.mxu0 0
      %366 = vmatpush2.bf16.msra.mxu0 0
      %367 = vmatprep.subr.bf16.mxu0 0
      %368 = vmatpush2.bf16.msra.mxu0 0
      %369 = vmatprep.subr.bf16.mxu0 0
      %370 = vmatpush2.bf16.msra.mxu0 0
      %371 = vmatprep.subr.bf16.mxu0 0
      %372 = vmatpush2.bf16.msra.mxu0 0
      %373 = vmatprep.subr.bf16.mxu0 0
      %374 = vmatpush2.bf16.msra.mxu0 0
      %375 = vmatprep.subr.bf16.mxu0 0
      %376 = vmatpush2.bf16.msra.mxu0 0
      %377 = vmatprep.mubr.bf16.mxu0 0
      %378 = vmatmul.mubr.bf16.gmra.mxu0 %v280
      %v379 = vpop.f32.mrf.mxu0
      %v380 = vadd.f32 0.0, %v379
      %v381 = vpop.f32.mrf.mxu0
      %v382 = vpop.f32.mrf.mxu0
      %v383 = vadd.f32 0.0, %v382
      %v384 = vpop.f32.mrf.mxu0
      %385 = vdwg.mxu0
      %v386 = vld [vmem:[%s4] sm:$0x1]
      %v388 = vlaneseq
      %v389 = vshrl.u32 %v388, 7
      %v390 = vsub.s32 0, %v389
      %v391 = vrot.slane %v386, %v390
      %v393 = vmul.f32 %v380, %v391
      %v394 = vmul.f32 %v383, %v391
      %v395 = vld [vmem:[%s5] sm:$0x1]
      %v397 = vlaneseq
      %v398 = vshrl.u32 %v397, 7
      %v399 = vsub.s32 0, %v398
      %v400 = vrot.slane %v395, %v399
      %v402 = vadd.f32 %v393, %v400
      %v403 = vadd.f32 %v394, %v400
      %v404 = vmax.f32 %v402, 0.0
      %v405 = vmax.f32 %v403, 0.0
      %v406 = vpack.c.bf16 %v405, %v404
      %v408 = vunpack.c.l.b16 %v406
      %v409 = vunpack.c.h.b16 %v406
      %v410 = vpack.c.b16 %v408, %v408
      %v411 = vpack.c.b16 %v409, %v409
      %414 = vst [vmem:[%s253] sm:$0xf] %v410
      %415 = vst [vmem:[%s253 + $0x4] sm:$0xf] %v411
      %s416 = smul.u32 2, %s17
      %p417 = scmp.lt.s32.totalorder %s416, 3
      %s418 = scalar_select %p417, %s416, 3
      %s419 = smul.addr %s418, 4
      %s420 = scalar_lea.vmem %s6, %s419
      // Predicated region
      $region45: #{densenet_forward.23} parent=43 // pred_check
        %p421 = pneg %p166
      $region46: #{densenet_forward.23} parent=43 // pred_check_branch
        %423 = sbr.rel (%p421) target = $region48
      $region47: #{densenet_forward.23} parent=43 // pred_region
        %s424 = smul.u32 2, %s17
      $region48: #{densenet_forward.23} parent=43 // pred_fallthru
        _
    $region44: #{densenet_forward.23} parent=5 // pred_fallthru
      _
    %p425 = scmp.le.s32.totalorder 2, %s12
    // Predicated region
    $region49: #{densenet_forward.23} parent=5 // pred_check
      %p426 = pneg %p425
    $region50: #{densenet_forward.23} parent=5 // pred_check_branch
      %428 = sbr.rel (%p426) target = $region52
    $region51: #{densenet_forward.23} parent=5 // pred_region
      %s429 = ssub.s32 %s12, 2
      // Predicated region
      $region53: #{densenet_forward.23} parent=51 // pred_check
        %p430 = pneg %p172
      $region54: #{densenet_forward.23} parent=51 // pred_check_branch
        %432 = sbr.rel (%p430) target = $region56
      $region55: #{densenet_forward.23} parent=51 // pred_region
        %s433 = smul.u32 2, %s18
        %p434 = scmp.lt.s32.totalorder %s433, 3
        %s435 = scalar_select %p434, %s433, 3
        %s436 = smul.addr %s435, 4
        %s437 = scalar_lea.vmem %s6, %s436
      $region56: #{densenet_forward.23} parent=51 // pred_fallthru
        _
    $region52: #{densenet_forward.23} parent=5 // pred_fallthru
      _
  $region6: #{densenet_forward.23} parent=0 // loop_footer
    %s16 = sadd.s32 1, %s12
  $region7: #{densenet_forward.23} parent=0 // loop_footer_branch
    %11 = sbr.rel target = $region3
  $region8: #{densenet_forward.23} parent=0 // loop_exit
    _

// kernel: densenet_forward.17
$region0: #{densenet_forward.17}
  #allocation0 [shape = 'u32[]', space=smem, size = 0x4, offset = 0x4, fixed_abs, tag = 'smem constant byte address 0x4 - core index']
  #allocation1 [shape = 'u32[144,128]{1,0:T(1,128)}', space=vmem, size = 0x12000, scoped, tag = 'internal scratch']
  %s0 = inlined_call_operand.vmem [shape: bf16[128,1152], index: 0, kind: input, shape index: {}]
  %s1 = inlined_call_operand.vmem [shape: bf16[1152,128], index: 1, kind: input, shape index: {}]
  %s2 = inlined_call_operand.vmem [shape: bf16[128,128], index: 2, kind: input, shape index: {}]
  %s3 = inlined_call_operand.vmem [shape: bf16[128,128], index: 3, kind: output, shape index: {}]
  %s4 = sld [smem:[#allocation0]]
  $region45: #{densenet_forward.17} parent=0
    _
  %s6 = ssub.s32 1, %s4
  %s7 = scalar_select 0, %s6, %s4
  loop: start=0, step=1, limit=4
  $region2: #{densenet_forward.17} parent=0 // loop_pre_header
    _
  $region3: #{densenet_forward.17} parent=0 // loop_header
    %s9 = sphi 0, %s13
    %p10 = scmp.ge.s32.totalorder %s9, 4
    %s19 = sphi 0, %s21
    %s22 = sphi 0, %s19
    %s23 = sphi 0, %s22
    %s39 = sphi 0, %s23
    %s43 = sphi 0, %s43
    %s45 = sphi 0, %s43
    %s46 = sphi 0, %s45
    %s60 = sphi 0, %s46
    %s66 = sphi 0, %s68
    %s69 = sphi 0, %s66
    %s70 = sphi 0, %s69
    %s86 = sphi 0, %s70
    %s92 = sphi 0, %s94
    %s95 = sphi 0, %s92
    %s96 = sphi 0, %s95
    %s112 = sphi 0, %s96
  $region4: #{densenet_forward.17} parent=0 // loop_header_branch
    %12 = sbr.rel (%p10) target = $region8
  $region5: #{densenet_forward.17} parent=0 // loop_body
    %s14 = ssub.s32 %s9, 1
    %s15 = ssub.s32 %s9, 2
    %s16 = sadd.s32 %s9, 1
    %s17 = ssub.s32 %s9, %s16
    %p18 = scmp.eq.s32.totalorder %s17, 0
    %s20 = sadd.s32 %s19, 1
    %s21 = scalar_select %p18, %s19, %s20
    %p24 = pneg %p18
    %p25 = scmp.eq.s32.totalorder %s9, 1
    %p26 = por %p24, %p25
    %p27 = scmp.ne.s32.totalorder %s19, %s22
    %p28 = scmp.eq.s32.totalorder %s9, 0
    %p29 = por %p27, %p28
    %p30 = scmp.ne.s32.totalorder %s19, %s22
    %p31 = scmp.eq.s32.totalorder %s14, 1
    %p32 = por %p30, %p31
    %p33 = scmp.ne.s32.totalorder %s22, %s23
    %p34 = scmp.eq.s32.totalorder %s14, 0
    %p35 = por %p33, %p34
    %p36 = scmp.ne.s32.totalorder %s22, %s23
    %p37 = scmp.eq.s32.totalorder %s15, 1
    %p38 = por %p36, %p37
    %p40 = scmp.ne.s32.totalorder %s23, %s39
    %p41 = scmp.eq.s32.totalorder %s15, 0
    %p42 = por %p40, %p41
    %s44 = sadd.s32 %s43, 1
    %p47 = scmp.eq.s32.totalorder %s9, 1
    %p48 = scmp.ne.s32.totalorder %s43, %s45
    %p49 = scmp.eq.s32.totalorder %s9, 0
    %p50 = por %p48, %p49
    %p51 = scmp.ne.s32.totalorder %s43, %s45
    %p52 = scmp.eq.s32.totalorder %s14, 1
    %p53 = por %p51, %p52
    %p54 = scmp.ne.s32.totalorder %s45, %s46
    %p55 = scmp.eq.s32.totalorder %s14, 0
    %p56 = por %p54, %p55
    %p57 = scmp.ne.s32.totalorder %s45, %s46
    %p58 = scmp.eq.s32.totalorder %s15, 1
    %p59 = por %p57, %p58
    %p61 = scmp.ne.s32.totalorder %s46, %s60
    %p62 = scmp.eq.s32.totalorder %s15, 0
    %p63 = por %p61, %p62
    %s64 = ssub.s32 %s9, %s16
    %p65 = scmp.eq.s32.totalorder %s64, 0
    %s67 = sadd.s32 %s66, 1
    %s68 = scalar_select %p65, %s66, %s67
    %p71 = pneg %p65
    %p72 = scmp.eq.s32.totalorder %s9, 1
    %p73 = por %p71, %p72
    %p74 = scmp.ne.s32.totalorder %s66, %s69
    %p75 = scmp.eq.s32.totalorder %s9, 0
    %p76 = por %p74, %p75
    %p77 = scmp.ne.s32.totalorder %s66, %s69
    %p78 = scmp.eq.s32.totalorder %s14, 1
    %p79 = por %p77, %p78
    %p80 = scmp.ne.s32.totalorder %s69, %s70
    %p81 = scmp.eq.s32.totalorder %s14, 0
    %p82 = por %p80, %p81
    %p83 = scmp.ne.s32.totalorder %s69, %s70
    %p84 = scmp.eq.s32.totalorder %s15, 1
    %p85 = por %p83, %p84
    %p87 = scmp.ne.s32.totalorder %s70, %s86
    %p88 = scmp.eq.s32.totalorder %s15, 0
    %p89 = por %p87, %p88
    %s90 = ssub.s32 %s9, %s16
    %p91 = scmp.eq.s32.totalorder %s90, 0
    %s93 = sadd.s32 %s92, 1
    %s94 = scalar_select %p91, %s92, %s93
    %p97 = pneg %p91
    %p98 = scmp.eq.s32.totalorder %s9, 1
    %p99 = por %p97, %p98
    %p100 = scmp.ne.s32.totalorder %s92, %s95
    %p101 = scmp.eq.s32.totalorder %s9, 0
    %p102 = por %p100, %p101
    %p103 = scmp.ne.s32.totalorder %s92, %s95
    %p104 = scmp.eq.s32.totalorder %s14, 1
    %p105 = por %p103, %p104
    %p106 = scmp.ne.s32.totalorder %s95, %s96
    %p107 = scmp.eq.s32.totalorder %s14, 0
    %p108 = por %p106, %p107
    %p109 = scmp.ne.s32.totalorder %s95, %s96
    %p110 = scmp.eq.s32.totalorder %s15, 1
    %p111 = por %p109, %p110
    %p113 = scmp.ne.s32.totalorder %s96, %s112
    %p114 = scmp.eq.s32.totalorder %s15, 0
    %p115 = por %p113, %p114
    %p116 = scmp.le.s32.totalorder 1, %s9
    %p117 = scmp.lt.s32.totalorder %s9, 3
    %p118 = pnand %p116, %p117
    %p119 = pneg %p118
    // Predicated region
    $region9: #{densenet_forward.17} parent=5 // pred_check
      _
    $region10: #{densenet_forward.17} parent=5 // pred_check_branch
      %121 = sbr.rel (%p118) target = $region12
    $region11: #{densenet_forward.17} parent=5 // pred_region
      %s122 = ssub.s32 %s9, 1
      // Predicated region
      $region13: #{densenet_forward.17} parent=11 // pred_check
        %p123 = pneg %p56
      $region14: #{densenet_forward.17} parent=11 // pred_check_branch
        %125 = sbr.rel (%p123) target = $region16
      $region15: #{densenet_forward.17} parent=11 // pred_region
        _
      $region16: #{densenet_forward.17} parent=11 // pred_fallthru
        _
    $region12: #{densenet_forward.17} parent=5 // pred_fallthru
      _
    %p126 = scmp.lt.s32.totalorder %s9, 2
    // Predicated region
    $region17: #{densenet_forward.17} parent=5 // pred_check
      %p127 = pneg %p126
    $region18: #{densenet_forward.17} parent=5 // pred_check_branch
      %129 = sbr.rel (%p127) target = $region20
    $region19: #{densenet_forward.17} parent=5 // pred_region
      // Predicated region
      $region21: #{densenet_forward.17} parent=19 // pred_check
        %p130 = pneg %p29
      $region22: #{densenet_forward.17} parent=19 // pred_check_branch
        %132 = sbr.rel (%p130) target = $region24
      $region23: #{densenet_forward.17} parent=19 // pred_region
        %s133 = smul.u32 8, %s9
        %p134 = scmp.lt.s32.totalorder %s133, 15
        %s135 = scalar_select %p134, %s133, 15
        %s136 = smul.addr %s135, 9
        %s137 = smul.addr %s136, 4
        %s138 = scalar_lea.vmem %s0, %s137
        %s139 = smul.u32 8, %s9
      $region24: #{densenet_forward.17} parent=19 // pred_fallthru
        _
      // Predicated region
      $region25: #{densenet_forward.17} parent=19 // pred_check
        %p140 = pneg %p76
      $region26: #{densenet_forward.17} parent=19 // pred_check_branch
        %142 = sbr.rel (%p140) target = $region28
      $region27: #{densenet_forward.17} parent=19 // pred_region
        %s143 = smul.u32 8, %s9
        %p144 = scmp.lt.s32.totalorder %s143, 15
        %s145 = scalar_select %p144, %s143, 15
        %s146 = smul.addr %s145, 4
        %s147 = scalar_lea.vmem %s2, %s146
        %s148 = smul.u32 8, %s9
      $region28: #{densenet_forward.17} parent=19 // pred_fallthru
        _
    $region20: #{densenet_forward.17} parent=5 // pred_fallthru
      _
    %p149 = scmp.le.s32.totalorder 1, %s9
    %p150 = scmp.lt.s32.totalorder %s9, 3
    %p151 = pnand %p149, %p150
    %p152 = pneg %p151
    // Predicated region
    $region29: #{densenet_forward.17} parent=5 // pred_check
      _
    $region30: #{densenet_forward.17} parent=5 // pred_check_branch
      %154 = sbr.rel (%p151) target = $region32
    $region31: #{densenet_forward.17} parent=5 // pred_region
      %s155 = ssub.s32 %s9, 1
      %s156 = smul.u32 8, %s14
      %p157 = scmp.lt.s32.totalorder %s156, 15
      %s158 = scalar_select %p157, %s156, 15
      %s159 = smul.addr %s158, 9
      %s160 = smul.addr %s159, 4
      %s161 = scalar_lea.vmem %s0, %s160
      %p162 = pneg %p35
      %p163 = pneg %p32
      %p164 = pneg %p56
      %p165 = pneg %p53
      %s166 = smul.u32 8, %s14
      %p167 = scmp.lt.s32.totalorder %s166, 15
      %s168 = scalar_select %p167, %s166, 15
      %s169 = smul.addr %s168, 4
      %s170 = scalar_lea.vmem %s2, %s169
      %p171 = pneg %p82
      %p172 = pneg %p79
      %p173 = pneg %p108
      %p174 = pneg %p105
      %s175 = smul.u32 8, %s14
      %p176 = scmp.lt.s32.totalorder %s175, 15
      %s177 = scalar_select %p176, %s175, 15
      %s178 = smul.addr %s177, 4
      %s179 = scalar_lea.vmem %s3, %s178
      %s180 = smul.u32 8, %s14
      %p181 = scmp.lt.s32.totalorder %s180, 15
      %s182 = scalar_select %p181, %s180, 15
      %s183 = smul.addr %s182, 9
      %s184 = smul.addr %s183, 4
      %s185 = scalar_lea.vmem %s0, %s184
      %s186 = smul.u32 8, %s14
      %s187 = smul.u32 8, %s14
      %p188 = scmp.lt.s32.totalorder %s187, 15
      %s189 = scalar_select %p188, %s187, 15
      %s190 = smul.addr %s189, 4
      %s191 = scalar_lea.vmem %s2, %s190
      %s192 = smul.u32 8, %s14
      %s193 = smul.u32 8, %s14
      %p194 = scmp.lt.s32.totalorder %s193, 15
      %s195 = scalar_select %p194, %s193, 15
      %s196 = smul.addr %s195, 4
      %s197 = scalar_lea.vmem %s3, %s196
      %s198 = smul.u32 8, %s14
      %v200 = vld [vmem:[%s185] sm:$0xff]
      %v201 = vld [vmem:[%s185 + $0x8] sm:$0xff]
      %v202 = vld [vmem:[%s185 + $0x10] sm:$0xff]
      %v203 = vld [vmem:[%s185 + $0x18] sm:$0xff]
      %v204 = vld [vmem:[%s185 + $0x20] sm:$0xf]
      %v205 = vld [vmem:[%s185 + $0x24] sm:$0xff]
      %v206 = vld [vmem:[%s185 + $0x2c] sm:$0xff]
      %v207 = vld [vmem:[%s185 + $0x34] sm:$0xff]
      %v208 = vld [vmem:[%s185 + $0x3c] sm:$0xff]
      %v209 = vld [vmem:[%s185 + $0x44] sm:$0xf]
      %v210 = vld [vmem:[%s185 + $0x48] sm:$0xff]
      %v211 = vld [vmem:[%s185 + $0x50] sm:$0xff]
      %v212 = vld [vmem:[%s185 + $0x58] sm:$0xff]
      %v213 = vld [vmem:[%s185 + $0x60] sm:$0xff]
      %v214 = vld [vmem:[%s185 + $0x68] sm:$0xf]
      %v215 = vld [vmem:[%s185 + $0x6c] sm:$0xff]
      %v216 = vld [vmem:[%s185 + $0x74] sm:$0xff]
      %v217 = vld [vmem:[%s185 + $0x7c] sm:$0xff]
      %v218 = vld [vmem:[%s185 + $0x84] sm:$0xff]
      %v219 = vld [vmem:[%s185 + $0x8c] sm:$0xf]
      %v220 = vld [vmem:[%s185 + $0x90] sm:$0xff]
      %v221 = vld [vmem:[%s185 + $0x98] sm:$0xff]
      %v222 = vld [vmem:[%s185 + $0xa0] sm:$0xff]
      %v223 = vld [vmem:[%s185 + $0xa8] sm:$0xff]
      %v224 = vld [vmem:[%s185 + $0xb0] sm:$0xf]
      %v225 = vld [vmem:[%s185 + $0xb4] sm:$0xff]
      %v226 = vld [vmem:[%s185 + $0xbc] sm:$0xff]
      %v227 = vld [vmem:[%s185 + $0xc4] sm:$0xff]
      %v228 = vld [vmem:[%s185 + $0xcc] sm:$0xff]
      %v229 = vld [vmem:[%s185 + $0xd4] sm:$0xf]
      %v230 = vld [vmem:[%s185 + $0xd8] sm:$0xff]
      %v231 = vld [vmem:[%s185 + $0xe0] sm:$0xff]
      %v232 = vld [vmem:[%s185 + $0xe8] sm:$0xff]
      %v233 = vld [vmem:[%s185 + $0xf0] sm:$0xff]
      %v234 = vld [vmem:[%s185 + $0xf8] sm:$0xf]
      %v235 = vld [vmem:[%s185 + $0xfc] sm:$0xff]
      %v236 = vld [vmem:[%s185 + $0x104] sm:$0xff]
      %v237 = vld [vmem:[%s185 + $0x10c] sm:$0xff]
      %v238 = vld [vmem:[%s185 + $0x114] sm:$0xff]
      %v239 = vld [vmem:[%s185 + $0x11c] sm:$0xf]
      %v240 = vld [vmem:[%s1] sm:$0xf]
      %v241 = vld [vmem:[%s1 + $0x4] sm:$0xf]
      %v242 = vld [vmem:[%s1 + $0x8] sm:$0xf]
      %v243 = vld [vmem:[%s1 + $0xc] sm:$0xf]
      %v244 = vld [vmem:[%s1 + $0x10] sm:$0xf]
      %v245 = vld [vmem:[%s1 + $0x14] sm:$0xf]
      %v246 = vld [vmem:[%s1 + $0x18] sm:$0xf]
      %v247 = vld [vmem:[%s1 + $0x1c] sm:$0xf]
      %v248 = vld [vmem:[%s1 + $0x20] sm:$0xf]
      %v249 = vld [vmem:[%s1 + $0x24] sm:$0xf]
      %v250 = vld [vmem:[%s1 + $0x28] sm:$0xf]
      %v251 = vld [vmem:[%s1 + $0x2c] sm:$0xf]
      %v252 = vld [vmem:[%s1 + $0x30] sm:$0xf]
      %v253 = vld [vmem:[%s1 + $0x34] sm:$0xf]
      %v254 = vld [vmem:[%s1 + $0x38] sm:$0xf]
      %v255 = vld [vmem:[%s1 + $0x3c] sm:$0xf]
      %v256 = vld [vmem:[%s1 + $0x40] sm:$0xf]
      %v257 = vld [vmem:[%s1 + $0x44] sm:$0xf]
      %v258 = vld [vmem:[%s1 + $0x48] sm:$0xf]
      %v259 = vld [vmem:[%s1 + $0x4c] sm:$0xf]
      %v260 = vld [vmem:[%s1 + $0x50] sm:$0xf]
      %v261 = vld [vmem:[%s1 + $0x54] sm:$0xf]
      %v262 = vld [vmem:[%s1 + $0x58] sm:$0xf]
      %v263 = vld [vmem:[%s1 + $0x5c] sm:$0xf]
      %v264 = vld [vmem:[%s1 + $0x60] sm:$0xf]
      %v265 = vld [vmem:[%s1 + $0x64] sm:$0xf]
      %v266 = vld [vmem:[%s1 + $0x68] sm:$0xf]
      %v267 = vld [vmem:[%s1 + $0x6c] sm:$0xf]
      %v268 = vld [vmem:[%s1 + $0x70] sm:$0xf]
      %v269 = vld [vmem:[%s1 + $0x74] sm:$0xf]
      %v270 = vld [vmem:[%s1 + $0x78] sm:$0xf]
      %v271 = vld [vmem:[%s1 + $0x7c] sm:$0xf]
      %v272 = vld [vmem:[%s1 + $0x80] sm:$0xf]
      %v273 = vld [vmem:[%s1 + $0x84] sm:$0xf]
      %v274 = vld [vmem:[%s1 + $0x88] sm:$0xf]
      %v275 = vld [vmem:[%s1 + $0x8c] sm:$0xf]
      %v276 = vld [vmem:[%s1 + $0x90] sm:$0xf]
      %v277 = vld [vmem:[%s1 + $0x94] sm:$0xf]
      %v278 = vld [vmem:[%s1 + $0x98] sm:$0xf]
      %v279 = vld [vmem:[%s1 + $0x9c] sm:$0xf]
      %v280 = vld [vmem:[%s1 + $0xa0] sm:$0xf]
      %v281 = vld [vmem:[%s1 + $0xa4] sm:$0xf]
      %v282 = vld [vmem:[%s1 + $0xa8] sm:$0xf]
      %v283 = vld [vmem:[%s1 + $0xac] sm:$0xf]
      %v284 = vld [vmem:[%s1 + $0xb0] sm:$0xf]
      %v285 = vld [vmem:[%s1 + $0xb4] sm:$0xf]
      %v286 = vld [vmem:[%s1 + $0xb8] sm:$0xf]
      %v287 = vld [vmem:[%s1 + $0xbc] sm:$0xf]
      %v288 = vld [vmem:[%s1 + $0xc0] sm:$0xf]
      %v289 = vld [vmem:[%s1 + $0xc4] sm:$0xf]
      %v290 = vld [vmem:[%s1 + $0xc8] sm:$0xf]
      %v291 = vld [vmem:[%s1 + $0xcc] sm:$0xf]
      %v292 = vld [vmem:[%s1 + $0xd0] sm:$0xf]
      %v293 = vld [vmem:[%s1 + $0xd4] sm:$0xf]
      %v294 = vld [vmem:[%s1 + $0xd8] sm:$0xf]
      %v295 = vld [vmem:[%s1 + $0xdc] sm:$0xf]
      %v296 = vld [vmem:[%s1 + $0xe0] sm:$0xf]
      %v297 = vld [vmem:[%s1 + $0xe4] sm:$0xf]
      %v298 = vld [vmem:[%s1 + $0xe8] sm:$0xf]
      %v299 = vld [vmem:[%s1 + $0xec] sm:$0xf]
      %v300 = vld [vmem:[%s1 + $0xf0] sm:$0xf]
      %v301 = vld [vmem:[%s1 + $0xf4] sm:$0xf]
      %v302 = vld [vmem:[%s1 + $0xf8] sm:$0xf]
      %v303 = vld [vmem:[%s1 + $0xfc] sm:$0xf]
      %v304 = vld [vmem:[%s1 + $0x100] sm:$0xf]
      %v305 = vld [vmem:[%s1 + $0x104] sm:$0xf]
      %v306 = vld [vmem:[%s1 + $0x108] sm:$0xf]
      %v307 = vld [vmem:[%s1 + $0x10c] sm:$0xf]
      %v308 = vld [vmem:[%s1 + $0x110] sm:$0xf]
      %v309 = vld [vmem:[%s1 + $0x114] sm:$0xf]
      %v310 = vld [vmem:[%s1 + $0x118] sm:$0xf]
      %v311 = vld [vmem:[%s1 + $0x11c] sm:$0xf]
      %v312 = vld [vmem:[%s1 + $0x120] sm:$0xf]
      %v313 = vld [vmem:[%s1 + $0x124] sm:$0xf]
      %v314 = vld [vmem:[%s1 + $0x128] sm:$0xf]
      %v315 = vld [vmem:[%s1 + $0x12c] sm:$0xf]
      %v316 = vld [vmem:[%s1 + $0x130] sm:$0xf]
      %v317 = vld [vmem:[%s1 + $0x134] sm:$0xf]
      %v318 = vld [vmem:[%s1 + $0x138] sm:$0xf]
      %v319 = vld [vmem:[%s1 + $0x13c] sm:$0xf]
      %v320 = vld [vmem:[%s1 + $0x140] sm:$0xf]
      %v321 = vld [vmem:[%s1 + $0x144] sm:$0xf]
      %v322 = vld [vmem:[%s1 + $0x148] sm:$0xf]
      %v323 = vld [vmem:[%s1 + $0x14c] sm:$0xf]
      %v324 = vld [vmem:[%s1 + $0x150] sm:$0xf]
      %v325 = vld [vmem:[%s1 + $0x154] sm:$0xf]
      %v326 = vld [vmem:[%s1 + $0x158] sm:$0xf]
      %v327 = vld [vmem:[%s1 + $0x15c] sm:$0xf]
      %v328 = vld [vmem:[%s1 + $0x160] sm:$0xf]
      %v329 = vld [vmem:[%s1 + $0x164] sm:$0xf]
      %v330 = vld [vmem:[%s1 + $0x168] sm:$0xf]
      %v331 = vld [vmem:[%s1 + $0x16c] sm:$0xf]
      %v332 = vld [vmem:[%s1 + $0x170] sm:$0xf]
      %v333 = vld [vmem:[%s1 + $0x174] sm:$0xf]
      %v334 = vld [vmem:[%s1 + $0x178] sm:$0xf]
      %v335 = vld [vmem:[%s1 + $0x17c] sm:$0xf]
      %v336 = vld [vmem:[%s1 + $0x180] sm:$0xf]
      %v337 = vld [vmem:[%s1 + $0x184] sm:$0xf]
      %v338 = vld [vmem:[%s1 + $0x188] sm:$0xf]
      %v339 = vld [vmem:[%s1 + $0x18c] sm:$0xf]
      %v340 = vld [vmem:[%s1 + $0x190] sm:$0xf]
      %v341 = vld [vmem:[%s1 + $0x194] sm:$0xf]
      %v342 = vld [vmem:[%s1 + $0x198] sm:$0xf]
      %v343 = vld [vmem:[%s1 + $0x19c] sm:$0xf]
      %v344 = vld [vmem:[%s1 + $0x1a0] sm:$0xf]
      %v345 = vld [vmem:[%s1 + $0x1a4] sm:$0xf]
      %v346 = vld [vmem:[%s1 + $0x1a8] sm:$0xf]
      %v347 = vld [vmem:[%s1 + $0x1ac] sm:$0xf]
      %v348 = vld [vmem:[%s1 + $0x1b0] sm:$0xf]
      %v349 = vld [vmem:[%s1 + $0x1b4] sm:$0xf]
      %v350 = vld [vmem:[%s1 + $0x1b8] sm:$0xf]
      %v351 = vld [vmem:[%s1 + $0x1bc] sm:$0xf]
      %v352 = vld [vmem:[%s1 + $0x1c0] sm:$0xf]
      %v353 = vld [vmem:[%s1 + $0x1c4] sm:$0xf]
      %v354 = vld [vmem:[%s1 + $0x1c8] sm:$0xf]
      %v355 = vld [vmem:[%s1 + $0x1cc] sm:$0xf]
      %v356 = vld [vmem:[%s1 + $0x1d0] sm:$0xf]
      %v357 = vld [vmem:[%s1 + $0x1d4] sm:$0xf]
      %v358 = vld [vmem:[%s1 + $0x1d8] sm:$0xf]
      %v359 = vld [vmem:[%s1 + $0x1dc] sm:$0xf]
      %v360 = vld [vmem:[%s1 + $0x1e0] sm:$0xf]
      %v361 = vld [vmem:[%s1 + $0x1e4] sm:$0xf]
      %v362 = vld [vmem:[%s1 + $0x1e8] sm:$0xf]
      %v363 = vld [vmem:[%s1 + $0x1ec] sm:$0xf]
      %v364 = vld [vmem:[%s1 + $0x1f0] sm:$0xf]
      %v365 = vld [vmem:[%s1 + $0x1f4] sm:$0xf]
      %v366 = vld [vmem:[%s1 + $0x1f8] sm:$0xf]
      %v367 = vld [vmem:[%s1 + $0x1fc] sm:$0xf]
      %v368 = vld [vmem:[%s1 + $0x200] sm:$0xf]
      %v369 = vld [vmem:[%s1 + $0x204] sm:$0xf]
      %v370 = vld [vmem:[%s1 + $0x208] sm:$0xf]
      %v371 = vld [vmem:[%s1 + $0x20c] sm:$0xf]
      %v372 = vld [vmem:[%s1 + $0x210] sm:$0xf]
      %v373 = vld [vmem:[%s1 + $0x214] sm:$0xf]
      %v374 = vld [vmem:[%s1 + $0x218] sm:$0xf]
      %v375 = vld [vmem:[%s1 + $0x21c] sm:$0xf]
      %v376 = vld [vmem:[%s1 + $0x220] sm:$0xf]
      %v377 = vld [vmem:[%s1 + $0x224] sm:$0xf]
      %v378 = vld [vmem:[%s1 + $0x228] sm:$0xf]
      %v379 = vld [vmem:[%s1 + $0x22c] sm:$0xf]
      %v380 = vld [vmem:[%s1 + $0x230] sm:$0xf]
      %v381 = vld [vmem:[%s1 + $0x234] sm:$0xf]
      %v382 = vld [vmem:[%s1 + $0x238] sm:$0xf]
      %v383 = vld [vmem:[%s1 + $0x23c] sm:$0xf]
      %v384 = vld [vmem:[%s191] sm:$0xf]
      %v385 = vld [vmem:[%s191 + $0x4] sm:$0xf]
      %v386 = vld [vmem:[%s191 + $0x8] sm:$0xf]
      %v387 = vld [vmem:[%s191 + $0xc] sm:$0xf]
      %v388 = vld [vmem:[%s191 + $0x10] sm:$0xf]
      %v389 = vld [vmem:[%s191 + $0x14] sm:$0xf]
      %v390 = vld [vmem:[%s191 + $0x18] sm:$0xf]
      %v391 = vld [vmem:[%s191 + $0x1c] sm:$0xf]
      %v392 = vunpack.c.l.bf16 %v384
      %v393 = vunpack.c.l.bf16 %v385
      %v394 = vunpack.c.l.bf16 %v386
      %v395 = vunpack.c.l.bf16 %v387
      %v396 = vunpack.c.l.bf16 %v388
      %v397 = vunpack.c.l.bf16 %v389
      %v398 = vunpack.c.l.bf16 %v390
      %v399 = vunpack.c.l.bf16 %v391
      %v440 = vunpack.c.l.b16 %v200
      %v441 = vunpack.c.h.b16 %v200
      %v442 = vunpack.c.l.b16 %v201
      %v443 = vunpack.c.h.b16 %v201
      %v444 = vunpack.c.l.b16 %v202
      %v445 = vunpack.c.h.b16 %v202
      %v446 = vunpack.c.l.b16 %v203
      %v447 = vunpack.c.h.b16 %v203
      %v448 = vunpack.c.l.b16 %v204
      %v449 = vunpack.c.l.b16 %v205
      %v450 = vunpack.c.h.b16 %v205
      %v451 = vunpack.c.l.b16 %v206
      %v452 = vunpack.c.h.b16 %v206
      %v453 = vunpack.c.l.b16 %v207
      %v454 = vunpack.c.h.b16 %v207
      %v455 = vunpack.c.l.b16 %v208
      %v456 = vunpack.c.h.b16 %v208
      %v457 = vunpack.c.l.b16 %v209
      %v458 = vunpack.c.l.b16 %v210
      %v459 = vunpack.c.h.b16 %v210
      %v460 = vunpack.c.l.b16 %v211
      %v461 = vunpack.c.h.b16 %v211
      %v462 = vunpack.c.l.b16 %v212
      %v463 = vunpack.c.h.b16 %v212
      %v464 = vunpack.c.l.b16 %v213
      %v465 = vunpack.c.h.b16 %v213
      %v466 = vunpack.c.l.b16 %v214
      %v467 = vunpack.c.l.b16 %v215
      %v468 = vunpack.c.h.b16 %v215
      %v469 = vunpack.c.l.b16 %v216
      %v470 = vunpack.c.h.b16 %v216
      %v471 = vunpack.c.l.b16 %v217
      %v472 = vunpack.c.h.b16 %v217
      %v473 = vunpack.c.l.b16 %v218
      %v474 = vunpack.c.h.b16 %v218
      %v475 = vunpack.c.l.b16 %v219
      %v476 = vunpack.c.l.b16 %v220
      %v477 = vunpack.c.h.b16 %v220
      %v478 = vunpack.c.l.b16 %v221
      %v479 = vunpack.c.h.b16 %v221
      %v480 = vunpack.c.l.b16 %v222
      %v481 = vunpack.c.h.b16 %v222
      %v482 = vunpack.c.l.b16 %v223
      %v483 = vunpack.c.h.b16 %v223
      %v484 = vunpack.c.l.b16 %v224
      %v485 = vunpack.c.l.b16 %v225
      %v486 = vunpack.c.h.b16 %v225
      %v487 = vunpack.c.l.b16 %v226
      %v488 = vunpack.c.h.b16 %v226
      %v489 = vunpack.c.l.b16 %v227
      %v490 = vunpack.c.h.b16 %v227
      %v491 = vunpack.c.l.b16 %v228
      %v492 = vunpack.c.h.b16 %v228
      %v493 = vunpack.c.l.b16 %v229
      %v494 = vunpack.c.l.b16 %v230
      %v495 = vunpack.c.h.b16 %v230
      %v496 = vunpack.c.l.b16 %v231
      %v497 = vunpack.c.h.b16 %v231
      %v498 = vunpack.c.l.b16 %v232
      %v499 = vunpack.c.h.b16 %v232
      %v500 = vunpack.c.l.b16 %v233
      %v501 = vunpack.c.h.b16 %v233
      %v502 = vunpack.c.l.b16 %v234
      %v503 = vunpack.c.l.b16 %v235
      %v504 = vunpack.c.h.b16 %v235
      %v505 = vunpack.c.l.b16 %v236
      %v506 = vunpack.c.h.b16 %v236
      %v507 = vunpack.c.l.b16 %v237
      %v508 = vunpack.c.h.b16 %v237
      %v509 = vunpack.c.l.b16 %v238
      %v510 = vunpack.c.h.b16 %v238
      %v511 = vunpack.c.l.b16 %v239
      %v512 = vpack.c.b16 %v449, %v440
      %v513 = vpack.c.b16 %v450, %v441
      %v514 = vpack.c.b16 %v451, %v442
      %v515 = vpack.c.b16 %v452, %v443
      %v516 = vpack.c.b16 %v453, %v444
      %v517 = vpack.c.b16 %v454, %v445
      %v518 = vpack.c.b16 %v455, %v446
      %v519 = vpack.c.b16 %v456, %v447
      %v520 = vpack.c.b16 %v457, %v448
      %v521 = vpack.c.b16 %v467, %v458
      %v522 = vpack.c.b16 %v468, %v459
      %v523 = vpack.c.b16 %v469, %v460
      %v524 = vpack.c.b16 %v470, %v461
      %v525 = vpack.c.b16 %v471, %v462
      %v526 = vpack.c.b16 %v472, %v463
      %v527 = vpack.c.b16 %v473, %v464
      %v528 = vpack.c.b16 %v474, %v465
      %v529 = vpack.c.b16 %v475, %v466
      %v530 = vpack.c.b16 %v485, %v476
      %v531 = vpack.c.b16 %v486, %v477
      %v532 = vpack.c.b16 %v487, %v478
      %v533 = vpack.c.b16 %v488, %v479
      %v534 = vpack.c.b16 %v489, %v480
      %v535 = vpack.c.b16 %v490, %v481
      %v536 = vpack.c.b16 %v491, %v482
      %v537 = vpack.c.b16 %v492, %v483
      %v538 = vpack.c.b16 %v493, %v484
      %v539 = vpack.c.b16 %v503, %v494
      %v540 = vpack.c.b16 %v504, %v495
      %v541 = vpack.c.b16 %v505, %v496
      %v542 = vpack.c.b16 %v506, %v497
      %v543 = vpack.c.b16 %v507, %v498
      %v544 = vpack.c.b16 %v508, %v499
      %v545 = vpack.c.b16 %v509, %v500
      %v546 = vpack.c.b16 %v510, %v501
      %v547 = vpack.c.b16 %v511, %v502
      %v728 = vunpack.c.l.b16 %v240
      %v729 = vunpack.c.l.b16 %v241
      %v730 = vunpack.c.l.b16 %v242
      %v731 = vunpack.c.l.b16 %v243
      %v732 = vunpack.c.l.b16 %v244
      %v733 = vunpack.c.l.b16 %v245
      %v734 = vunpack.c.l.b16 %v246
      %v735 = vunpack.c.l.b16 %v247
      %v736 = vunpack.c.l.b16 %v248
      %v737 = vunpack.c.l.b16 %v249
      %v738 = vunpack.c.l.b16 %v250
      %v739 = vunpack.c.l.b16 %v251
      %v740 = vunpack.c.l.b16 %v252
      %v741 = vunpack.c.l.b16 %v253
      %v742 = vunpack.c.l.b16 %v254
      %v743 = vunpack.c.l.b16 %v255
      %v744 = vunpack.c.l.b16 %v256
      %v745 = vunpack.c.l.b16 %v257
      %v746 = vunpack.c.l.b16 %v258
      %v747 = vunpack.c.l.b16 %v259
      %v748 = vunpack.c.l.b16 %v260
      %v749 = vunpack.c.l.b16 %v261
      %v750 = vunpack.c.l.b16 %v262
      %v751 = vunpack.c.l.b16 %v263
      %v752 = vunpack.c.l.b16 %v264
      %v753 = vunpack.c.l.b16 %v265
      %v754 = vunpack.c.l.b16 %v266
      %v755 = vunpack.c.l.b16 %v267
      %v756 = vunpack.c.l.b16 %v268
      %v757 = vunpack.c.l.b16 %v269
      %v758 = vunpack.c.l.b16 %v270
      %v759 = vunpack.c.l.b16 %v271
      %v760 = vunpack.c.l.b16 %v272
      %v761 = vunpack.c.l.b16 %v273
      %v762 = vunpack.c.l.b16 %v274
      %v763 = vunpack.c.l.b16 %v275
      %v764 = vunpack.c.l.b16 %v276
      %v765 = vunpack.c.l.b16 %v277
      %v766 = vunpack.c.l.b16 %v278
      %v767 = vunpack.c.l.b16 %v279
      %v768 = vunpack.c.l.b16 %v280
      %v769 = vunpack.c.l.b16 %v281
      %v770 = vunpack.c.l.b16 %v282
      %v771 = vunpack.c.l.b16 %v283
      %v772 = vunpack.c.l.b16 %v284
      %v773 = vunpack.c.l.b16 %v285
      %v774 = vunpack.c.l.b16 %v286
      %v775 = vunpack.c.l.b16 %v287
      %v776 = vunpack.c.l.b16 %v288
      %v777 = vunpack.c.l.b16 %v289
      %v778 = vunpack.c.l.b16 %v290
      %v779 = vunpack.c.l.b16 %v291
      %v780 = vunpack.c.l.b16 %v292
      %v781 = vunpack.c.l.b16 %v293
      %v782 = vunpack.c.l.b16 %v294
      %v783 = vunpack.c.l.b16 %v295
      %v784 = vunpack.c.l.b16 %v296
      %v785 = vunpack.c.l.b16 %v297
      %v786 = vunpack.c.l.b16 %v298
      %v787 = vunpack.c.l.b16 %v299
      %v788 = vunpack.c.l.b16 %v300
      %v789 = vunpack.c.l.b16 %v301
      %v790 = vunpack.c.l.b16 %v302
      %v791 = vunpack.c.l.b16 %v303
      %v792 = vunpack.c.l.b16 %v304
      %v793 = vunpack.c.l.b16 %v305
      %v794 = vunpack.c.l.b16 %v306
      %v795 = vunpack.c.l.b16 %v307
      %v796 = vunpack.c.l.b16 %v308
      %v797 = vunpack.c.l.b16 %v309
      %v798 = vunpack.c.l.b16 %v310
      %v799 = vunpack.c.l.b16 %v311
      %v800 = vunpack.c.l.b16 %v312
      %v801 = vunpack.c.l.b16 %v313
      %v802 = vunpack.c.l.b16 %v314
      %v803 = vunpack.c.l.b16 %v315
      %v804 = vunpack.c.l.b16 %v316
      %v805 = vunpack.c.l.b16 %v317
      %v806 = vunpack.c.l.b16 %v318
      %v807 = vunpack.c.l.b16 %v319
      %v808 = vunpack.c.l.b16 %v320
      %v809 = vunpack.c.l.b16 %v321
      %v810 = vunpack.c.l.b16 %v322
      %v811 = vunpack.c.l.b16 %v323
      %v812 = vunpack.c.l.b16 %v324
      %v813 = vunpack.c.l.b16 %v325
      %v814 = vunpack.c.l.b16 %v326
      %v815 = vunpack.c.l.b16 %v327
      %v816 = vunpack.c.l.b16 %v328
      %v817 = vunpack.c.l.b16 %v329
      %v818 = vunpack.c.l.b16 %v330
      %v819 = vunpack.c.l.b16 %v331
      %v820 = vunpack.c.l.b16 %v332
      %v821 = vunpack.c.l.b16 %v333
      %v822 = vunpack.c.l.b16 %v334
      %v823 = vunpack.c.l.b16 %v335
      %v824 = vunpack.c.l.b16 %v336
      %v825 = vunpack.c.l.b16 %v337
      %v826 = vunpack.c.l.b16 %v338
      %v827 = vunpack.c.l.b16 %v339
      %v828 = vunpack.c.l.b16 %v340
      %v829 = vunpack.c.l.b16 %v341
      %v830 = vunpack.c.l.b16 %v342
      %v831 = vunpack.c.l.b16 %v343
      %v832 = vunpack.c.l.b16 %v344
      %v833 = vunpack.c.l.b16 %v345
      %v834 = vunpack.c.l.b16 %v346
      %v835 = vunpack.c.l.b16 %v347
      %v836 = vunpack.c.l.b16 %v348
      %v837 = vunpack.c.l.b16 %v349
      %v838 = vunpack.c.l.b16 %v350
      %v839 = vunpack.c.l.b16 %v351
      %v840 = vunpack.c.l.b16 %v352
      %v841 = vunpack.c.l.b16 %v353
      %v842 = vunpack.c.l.b16 %v354
      %v843 = vunpack.c.l.b16 %v355
      %v844 = vunpack.c.l.b16 %v356
      %v845 = vunpack.c.l.b16 %v357
      %v846 = vunpack.c.l.b16 %v358
      %v847 = vunpack.c.l.b16 %v359
      %v848 = vunpack.c.l.b16 %v360
      %v849 = vunpack.c.l.b16 %v361
      %v850 = vunpack.c.l.b16 %v362
      %v851 = vunpack.c.l.b16 %v363
      %v852 = vunpack.c.l.b16 %v364
      %v853 = vunpack.c.l.b16 %v365
      %v854 = vunpack.c.l.b16 %v366
      %v855 = vunpack.c.l.b16 %v367
      %v856 = vunpack.c.l.b16 %v368
      %v857 = vunpack.c.l.b16 %v369
      %v858 = vunpack.c.l.b16 %v370
      %v859 = vunpack.c.l.b16 %v371
      %v860 = vunpack.c.l.b16 %v372
      %v861 = vunpack.c.l.b16 %v373
      %v862 = vunpack.c.l.b16 %v374
      %v863 = vunpack.c.l.b16 %v375
      %v864 = vunpack.c.l.b16 %v376
      %v865 = vunpack.c.l.b16 %v377
      %v866 = vunpack.c.l.b16 %v378
      %v867 = vunpack.c.l.b16 %v379
      %v868 = vunpack.c.l.b16 %v380
      %v869 = vunpack.c.l.b16 %v381
      %v870 = vunpack.c.l.b16 %v382
      %v871 = vunpack.c.l.b16 %v383
      %v872 = vpack.c.b16 %v729, %v728
      %v873 = vpack.c.b16 %v731, %v730
      %v874 = vpack.c.b16 %v733, %v732
      %v875 = vpack.c.b16 %v735, %v734
      %v876 = vpack.c.b16 %v737, %v736
      %v877 = vpack.c.b16 %v739, %v738
      %v878 = vpack.c.b16 %v741, %v740
      %v879 = vpack.c.b16 %v743, %v742
      %v880 = vpack.c.b16 %v745, %v744
      %v881 = vpack.c.b16 %v747, %v746
      %v882 = vpack.c.b16 %v749, %v748
      %v883 = vpack.c.b16 %v751, %v750
      %v884 = vpack.c.b16 %v753, %v752
      %v885 = vpack.c.b16 %v755, %v754
      %v886 = vpack.c.b16 %v757, %v756
      %v887 = vpack.c.b16 %v759, %v758
      %v888 = vpack.c.b16 %v761, %v760
      %v889 = vpack.c.b16 %v763, %v762
      %v890 = vpack.c.b16 %v765, %v764
      %v891 = vpack.c.b16 %v767, %v766
      %v892 = vpack.c.b16 %v769, %v768
      %v893 = vpack.c.b16 %v771, %v770
      %v894 = vpack.c.b16 %v773, %v772
      %v895 = vpack.c.b16 %v775, %v774
      %v896 = vpack.c.b16 %v777, %v776
      %v897 = vpack.c.b16 %v779, %v778
      %v898 = vpack.c.b16 %v781, %v780
      %v899 = vpack.c.b16 %v783, %v782
      %v900 = vpack.c.b16 %v785, %v784
      %v901 = vpack.c.b16 %v787, %v786
      %v902 = vpack.c.b16 %v789, %v788
      %v903 = vpack.c.b16 %v791, %v790
      %v904 = vpack.c.b16 %v793, %v792
      %v905 = vpack.c.b16 %v795, %v794
      %v906 = vpack.c.b16 %v797, %v796
      %v907 = vpack.c.b16 %v799, %v798
      %v908 = vpack.c.b16 %v801, %v800
      %v909 = vpack.c.b16 %v803, %v802
      %v910 = vpack.c.b16 %v805, %v804
      %v911 = vpack.c.b16 %v807, %v806
      %v912 = vpack.c.b16 %v809, %v808
      %v913 = vpack.c.b16 %v811, %v810
      %v914 = vpack.c.b16 %v813, %v812
      %v915 = vpack.c.b16 %v815, %v814
      %v916 = vpack.c.b16 %v817, %v816
      %v917 = vpack.c.b16 %v819, %v818
      %v918 = vpack.c.b16 %v821, %v820
      %v919 = vpack.c.b16 %v823, %v822
      %v920 = vpack.c.b16 %v825, %v824
      %v921 = vpack.c.b16 %v827, %v826
      %v922 = vpack.c.b16 %v829, %v828
      %v923 = vpack.c.b16 %v831, %v830
      %v924 = vpack.c.b16 %v833, %v832
      %v925 = vpack.c.b16 %v835, %v834
      %v926 = vpack.c.b16 %v837, %v836
      %v927 = vpack.c.b16 %v839, %v838
      %v928 = vpack.c.b16 %v841, %v840
      %v929 = vpack.c.b16 %v843, %v842
      %v930 = vpack.c.b16 %v845, %v844
      %v931 = vpack.c.b16 %v847, %v846
      %v932 = vpack.c.b16 %v849, %v848
      %v933 = vpack.c.b16 %v851, %v850
      %v934 = vpack.c.b16 %v853, %v852
      %v935 = vpack.c.b16 %v855, %v854
      %v936 = vpack.c.b16 %v857, %v856
      %v937 = vpack.c.b16 %v859, %v858
      %v938 = vpack.c.b16 %v861, %v860
      %v939 = vpack.c.b16 %v863, %v862
      %v940 = vpack.c.b16 %v865, %v864
      %v941 = vpack.c.b16 %v867, %v866
      %v942 = vpack.c.b16 %v869, %v868
      %v943 = vpack.c.b16 %v871, %v870
      %1016 = vmatprep.subr.bf16.mxu0 0
      %1017 = vmatpush1.bf16.msra.mxu0 %v879
      %1018 = vmatprep.subr.bf16.mxu0 0
      %1019 = vmatpush1.bf16.msra.mxu0 %v878
      %1020 = vmatprep.subr.bf16.mxu0 0
      %1021 = vmatpush1.bf16.msra.mxu0 %v877
      %1022 = vmatprep.subr.bf16.mxu0 0
      %1023 = vmatpush1.bf16.msra.mxu0 %v876
      %1024 = vmatprep.subr.bf16.mxu0 0
      %1025 = vmatpush1.bf16.msra.mxu0 %v875
      %1026 = vmatprep.subr.bf16.mxu0 0
      %1027 = vmatpush1.bf16.msra.mxu0 %v874
      %1028 = vmatprep.subr.bf16.mxu0 0
      %1029 = vmatpush1.bf16.msra.mxu0 %v873
      %1030 = vmatprep.subr.bf16.mxu0 0
      %1031 = vmatpush1.bf16.msra.mxu0 %v872
      %1032 = vmatprep.subr.bf16.mxu0 0
      %1033 = vmatpush2.bf16.msra.mxu0 %v887
      %1034 = vmatprep.subr.bf16.mxu0 0
      %1035 = vmatpush2.bf16.msra.mxu0 %v886
      %1036 = vmatprep.subr.bf16.mxu0 0
      %1037 = vmatpush2.bf16.msra.mxu0 %v885
      %1038 = vmatprep.subr.bf16.mxu0 0
      %1039 = vmatpush2.bf16.msra.mxu0 %v884
      %1040 = vmatprep.subr.bf16.mxu0 0
      %1041 = vmatpush2.bf16.msra.mxu0 %v883
      %1042 = vmatprep.subr.bf16.mxu0 0
      %1043 = vmatpush2.bf16.msra.mxu0 %v882
      %1044 = vmatprep.subr.bf16.mxu0 0
      %1045 = vmatpush2.bf16.msra.mxu0 %v881
      %1046 = vmatprep.subr.bf16.mxu0 0
      %1047 = vmatpush2.bf16.msra.mxu0 %v880
      %1048 = vmatprep.mubr.bf16.mxu0 %v513
      %1049 = vmatmul.mubr.bf16.gmra.mxu0 %v512
      %v1050 = vpop.f32.mrf.mxu0
      %v1051 = vadd.f32 %v392, %v1050
      %v1052 = vpop.f32.mrf.mxu0
      %v1053 = vpop.f32.mrf.mxu0
      %v1054 = vadd.f32 %v393, %v1053
      %v1055 = vpop.f32.mrf.mxu0
      %1056 = vmatprep.mubr.bf16.mxu0 %v522
      %1057 = vmatmul.mubr.bf16.gmra.mxu0 %v521
      %v1058 = vpop.f32.mrf.mxu0
      %v1059 = vadd.f32 %v394, %v1058
      %v1060 = vpop.f32.mrf.mxu0
      %v1061 = vpop.f32.mrf.mxu0
      %v1062 = vadd.f32 %v395, %v1061
      %v1063 = vpop.f32.mrf.mxu0
      %1064 = vmatprep.mubr.bf16.mxu0 %v531
      %1065 = vmatmul.mubr.bf16.gmra.mxu0 %v530
      %v1066 = vpop.f32.mrf.mxu0
      %v1067 = vadd.f32 %v396, %v1066
      %v1068 = vpop.f32.mrf.mxu0
      %v1069 = vpop.f32.mrf.mxu0
      %v1070 = vadd.f32 %v397, %v1069
      %v1071 = vpop.f32.mrf.mxu0
      %1072 = vmatprep.mubr.bf16.mxu0 %v540
      %1073 = vmatmul.mubr.bf16.gmra.mxu0 %v539
      %v1074 = vpop.f32.mrf.mxu0
      %v1075 = vadd.f32 %v398, %v1074
      %v1076 = vpop.f32.mrf.mxu0
      %v1077 = vpop.f32.mrf.mxu0
      %v1078 = vadd.f32 %v399, %v1077
      %v1079 = vpop.f32.mrf.mxu0
      %1080 = vdwg.mxu0
      %1081 = vmatprep.subr.bf16.mxu0 0
      %1082 = vmatpush1.bf16.msra.mxu0 %v895
      %1083 = vmatprep.subr.bf16.mxu0 0
      %1084 = vmatpush1.bf16.msra.mxu0 %v894
      %1085 = vmatprep.subr.bf16.mxu0 0
      %1086 = vmatpush1.bf16.msra.mxu0 %v893
      %1087 = vmatprep.subr.bf16.mxu0 0
      %1088 = vmatpush1.bf16.msra.mxu0 %v892
      %1089 = vmatprep.subr.bf16.mxu0 0
      %1090 = vmatpush1.bf16.msra.mxu0 %v891
      %1091 = vmatprep.subr.bf16.mxu0 0
      %1092 = vmatpush1.bf16.msra.mxu0 %v890
      %1093 = vmatprep.subr.bf16.mxu0 0
      %1094 = vmatpush1.bf16.msra.mxu0 %v889
      %1095 = vmatprep.subr.bf16.mxu0 0
      %1096 = vmatpush1.bf16.msra.mxu0 %v888
      %1097 = vmatprep.subr.bf16.mxu0 0
      %1098 = vmatpush2.bf16.msra.mxu0 %v903
      %1099 = vmatprep.subr.bf16.mxu0 0
      %1100 = vmatpush2.bf16.msra.mxu0 %v902
      %1101 = vmatprep.subr.bf16.mxu0 0
      %1102 = vmatpush2.bf16.msra.mxu0 %v901
      %1103 = vmatprep.subr.bf16.mxu0 0
      %1104 = vmatpush2.bf16.msra.mxu0 %v900
      %1105 = vmatprep.subr.bf16.mxu0 0
      %1106 = vmatpush2.bf16.msra.mxu0 %v899
      %1107 = vmatprep.subr.bf16.mxu0 0
      %1108 = vmatpush2.bf16.msra.mxu0 %v898
      %1109 = vmatprep.subr.bf16.mxu0 0
      %1110 = vmatpush2.bf16.msra.mxu0 %v897
      %1111 = vmatprep.subr.bf16.mxu0 0
      %1112 = vmatpush2.bf16.msra.mxu0 %v896
      %1113 = vmatprep.mubr.bf16.mxu0 %v515
      %1114 = vmatmul.mubr.bf16.gmra.mxu0 %v514
      %v1115 = vpop.f32.mrf.mxu0
      %v1116 = vadd.f32 %v1051, %v1115
      %v1117 = vpop.f32.mrf.mxu0
      %v1118 = vpop.f32.mrf.mxu0
      %v1119 = vadd.f32 %v1054, %v1118
      %v1120 = vpop.f32.mrf.mxu0
      %1121 = vmatprep.mubr.bf16.mxu0 %v524
      %1122 = vmatmul.mubr.bf16.gmra.mxu0 %v523
      %v1123 = vpop.f32.mrf.mxu0
      %v1124 = vadd.f32 %v1059, %v1123
      %v1125 = vpop.f32.mrf.mxu0
      %v1126 = vpop.f32.mrf.mxu0
      %v1127 = vadd.f32 %v1062, %v1126
      %v1128 = vpop.f32.mrf.mxu0
      %1129 = vmatprep.mubr.bf16.mxu0 %v533
      %1130 = vmatmul.mubr.bf16.gmra.mxu0 %v532
      %v1131 = vpop.f32.mrf.mxu0
      %v1132 = vadd.f32 %v1067, %v1131
      %v1133 = vpop.f32.mrf.mxu0
      %v1134 = vpop.f32.mrf.mxu0
      %v1135 = vadd.f32 %v1070, %v1134
      %v1136 = vpop.f32.mrf.mxu0
      %1137 = vmatprep.mubr.bf16.mxu0 %v542
      %1138 = vmatmul.mubr.bf16.gmra.mxu0 %v541
      %v1139 = vpop.f32.mrf.mxu0
      %v1140 = vadd.f32 %v1075, %v1139
      %v1141 = vpop.f32.mrf.mxu0
      %v1142 = vpop.f32.mrf.mxu0
      %v1143 = vadd.f32 %v1078, %v1142
      %v1144 = vpop.f32.mrf.mxu0
      %1145 = vdwg.mxu0
      %1146 = vmatprep.subr.bf16.mxu0 0
      %1147 = vmatpush1.bf16.msra.mxu0 %v911
      %1148 = vmatprep.subr.bf16.mxu0 0
      %1149 = vmatpush1.bf16.msra.mxu0 %v910
      %1150 = vmatprep.subr.bf16.mxu0 0
      %1151 = vmatpush1.bf16.msra.mxu0 %v909
      %1152 = vmatprep.subr.bf16.mxu0 0
      %1153 = vmatpush1.bf16.msra.mxu0 %v908
      %1154 = vmatprep.subr.bf16.mxu0 0
      %1155 = vmatpush1.bf16.msra.mxu0 %v907
      %1156 = vmatprep.subr.bf16.mxu0 0
      %1157 = vmatpush1.bf16.msra.mxu0 %v906
      %1158 = vmatprep.subr.bf16.mxu0 0
      %1159 = vmatpush1.bf16.msra.mxu0 %v905
      %1160 = vmatprep.subr.bf16.mxu0 0
      %1161 = vmatpush1.bf16.msra.mxu0 %v904
      %1162 = vmatprep.subr.bf16.mxu0 0
      %1163 = vmatpush2.bf16.msra.mxu0 %v919
      %1164 = vmatprep.subr.bf16.mxu0 0
      %1165 = vmatpush2.bf16.msra.mxu0 %v918
      %1166 = vmatprep.subr.bf16.mxu0 0
      %1167 = vmatpush2.bf16.msra.mxu0 %v917
      %1168 = vmatprep.subr.bf16.mxu0 0
      %1169 = vmatpush2.bf16.msra.mxu0 %v916
      %1170 = vmatprep.subr.bf16.mxu0 0
      %1171 = vmatpush2.bf16.msra.mxu0 %v915
      %1172 = vmatprep.subr.bf16.mxu0 0
      %1173 = vmatpush2.bf16.msra.mxu0 %v914
      %1174 = vmatprep.subr.bf16.mxu0 0
      %1175 = vmatpush2.bf16.msra.mxu0 %v913
      %1176 = vmatprep.subr.bf16.mxu0 0
      %1177 = vmatpush2.bf16.msra.mxu0 %v912
      %1178 = vmatprep.mubr.bf16.mxu0 %v517
      %1179 = vmatmul.mubr.bf16.gmra.mxu0 %v516
      %v1180 = vpop.f32.mrf.mxu0
      %v1181 = vadd.f32 %v1116, %v1180
      %v1182 = vpop.f32.mrf.mxu0
      %v1183 = vpop.f32.mrf.mxu0
      %v1184 = vadd.f32 %v1119, %v1183
      %v1185 = vpop.f32.mrf.mxu0
      %1186 = vmatprep.mubr.bf16.mxu0 %v526
      %1187 = vmatmul.mubr.bf16.gmra.mxu0 %v525
      %v1188 = vpop.f32.mrf.mxu0
      %v1189 = vadd.f32 %v1124, %v1188
      %v1190 = vpop.f32.mrf.mxu0
      %v1191 = vpop.f32.mrf.mxu0
      %v1192 = vadd.f32 %v1127, %v1191
      %v1193 = vpop.f32.mrf.mxu0
      %1194 = vmatprep.mubr.bf16.mxu0 %v535
      %1195 = vmatmul.mubr.bf16.gmra.mxu0 %v534
      %v1196 = vpop.f32.mrf.mxu0
      %v1197 = vadd.f32 %v1132, %v1196
      %v1198 = vpop.f32.mrf.mxu0
      %v1199 = vpop.f32.mrf.mxu0
      %v1200 = vadd.f32 %v1135, %v1199
      %v1201 = vpop.f32.mrf.mxu0
      %1202 = vmatprep.mubr.bf16.mxu0 %v544
      %1203 = vmatmul.mubr.bf16.gmra.mxu0 %v543
      %v1204 = vpop.f32.mrf.mxu0
      %v1205 = vadd.f32 %v1140, %v1204
      %v1206 = vpop.f32.mrf.mxu0
      %v1207 = vpop.f32.mrf.mxu0
      %v1208 = vadd.f32 %v1143, %v1207
      %v1209 = vpop.f32.mrf.mxu0
      %1210 = vdwg.mxu0
      %1211 = vmatprep.subr.bf16.mxu0 0
      %1212 = vmatpush1.bf16.msra.mxu0 %v927
      %1213 = vmatprep.subr.bf16.mxu0 0
      %1214 = vmatpush1.bf16.msra.mxu0 %v926
      %1215 = vmatprep.subr.bf16.mxu0 0
      %1216 = vmatpush1.bf16.msra.mxu0 %v925
      %1217 = vmatprep.subr.bf16.mxu0 0
      %1218 = vmatpush1.bf16.msra.mxu0 %v924
      %1219 = vmatprep.subr.bf16.mxu0 0
      %1220 = vmatpush1.bf16.msra.mxu0 %v923
      %1221 = vmatprep.subr.bf16.mxu0 0
      %1222 = vmatpush1.bf16.msra.mxu0 %v922
      %1223 = vmatprep.subr.bf16.mxu0 0
      %1224 = vmatpush1.bf16.msra.mxu0 %v921
      %1225 = vmatprep.subr.bf16.mxu0 0
      %1226 = vmatpush1.bf16.msra.mxu0 %v920
      %1227 = vmatprep.subr.bf16.mxu0 0
      %1228 = vmatpush2.bf16.msra.mxu0 %v935
      %1229 = vmatprep.subr.bf16.mxu0 0
      %1230 = vmatpush2.bf16.msra.mxu0 %v934
      %1231 = vmatprep.subr.bf16.mxu0 0
      %1232 = vmatpush2.bf16.msra.mxu0 %v933
      %1233 = vmatprep.subr.bf16.mxu0 0
      %1234 = vmatpush2.bf16.msra.mxu0 %v932
      %1235 = vmatprep.subr.bf16.mxu0 0
      %1236 = vmatpush2.bf16.msra.mxu0 %v931
      %1237 = vmatprep.subr.bf16.mxu0 0
      %1238 = vmatpush2.bf16.msra.mxu0 %v930
      %1239 = vmatprep.subr.bf16.mxu0 0
      %1240 = vmatpush2.bf16.msra.mxu0 %v929
      %1241 = vmatprep.subr.bf16.mxu0 0
      %1242 = vmatpush2.bf16.msra.mxu0 %v928
      %1243 = vmatprep.mubr.bf16.mxu0 %v519
      %1244 = vmatmul.mubr.bf16.gmra.mxu0 %v518
      %v1245 = vpop.f32.mrf.mxu0
      %v1246 = vadd.f32 %v1181, %v1245
      %v1247 = vpop.f32.mrf.mxu0
      %v1248 = vpop.f32.mrf.mxu0
      %v1249 = vadd.f32 %v1184, %v1248
      %v1250 = vpop.f32.mrf.mxu0
      %1251 = vmatprep.mubr.bf16.mxu0 %v528
      %1252 = vmatmul.mubr.bf16.gmra.mxu0 %v527
      %v1253 = vpop.f32.mrf.mxu0
      %v1254 = vadd.f32 %v1189, %v1253
      %v1255 = vpop.f32.mrf.mxu0
      %v1256 = vpop.f32.mrf.mxu0
      %v1257 = vadd.f32 %v1192, %v1256
      %v1258 = vpop.f32.mrf.mxu0
      %1259 = vmatprep.mubr.bf16.mxu0 %v537
      %1260 = vmatmul.mubr.bf16.gmra.mxu0 %v536
      %v1261 = vpop.f32.mrf.mxu0
      %v1262 = vadd.f32 %v1197, %v1261
      %v1263 = vpop.f32.mrf.mxu0
      %v1264 = vpop.f32.mrf.mxu0
      %v1265 = vadd.f32 %v1200, %v1264
      %v1266 = vpop.f32.mrf.mxu0
      %1267 = vmatprep.mubr.bf16.mxu0 %v546
      %1268 = vmatmul.mubr.bf16.gmra.mxu0 %v545
      %v1269 = vpop.f32.mrf.mxu0
      %v1270 = vadd.f32 %v1205, %v1269
      %v1271 = vpop.f32.mrf.mxu0
      %v1272 = vpop.f32.mrf.mxu0
      %v1273 = vadd.f32 %v1208, %v1272
      %v1274 = vpop.f32.mrf.mxu0
      %1275 = vdwg.mxu0
      %1276 = vmatprep.subr.bf16.mxu0 0
      %1277 = vmatpush1.bf16.msra.mxu0 %v943
      %1278 = vmatprep.subr.bf16.mxu0 0
      %1279 = vmatpush1.bf16.msra.mxu0 %v942
      %1280 = vmatprep.subr.bf16.mxu0 0
      %1281 = vmatpush1.bf16.msra.mxu0 %v941
      %1282 = vmatprep.subr.bf16.mxu0 0
      %1283 = vmatpush1.bf16.msra.mxu0 %v940
      %1284 = vmatprep.subr.bf16.mxu0 0
      %1285 = vmatpush1.bf16.msra.mxu0 %v939
      %1286 = vmatprep.subr.bf16.mxu0 0
      %1287 = vmatpush1.bf16.msra.mxu0 %v938
      %1288 = vmatprep.subr.bf16.mxu0 0
      %1289 = vmatpush1.bf16.msra.mxu0 %v937
      %1290 = vmatprep.subr.bf16.mxu0 0
      %1291 = vmatpush1.bf16.msra.mxu0 %v936
      %1292 = vmatprep.subr.bf16.mxu0 0
      %1293 = vmatpush2.bf16.msra.mxu0 0
      %1294 = vmatprep.subr.bf16.mxu0 0
      %1295 = vmatpush2.bf16.msra.mxu0 0
      %1296 = vmatprep.subr.bf16.mxu0 0
      %1297 = vmatpush2.bf16.msra.mxu0 0
      %1298 = vmatprep.subr.bf16.mxu0 0
      %1299 = vmatpush2.bf16.msra.mxu0 0
      %1300 = vmatprep.subr.bf16.mxu0 0
      %1301 = vmatpush2.bf16.msra.mxu0 0
      %1302 = vmatprep.subr.bf16.mxu0 0
      %1303 = vmatpush2.bf16.msra.mxu0 0
      %1304 = vmatprep.subr.bf16.mxu0 0
      %1305 = vmatpush2.bf16.msra.mxu0 0
      %1306 = vmatprep.subr.bf16.mxu0 0
      %1307 = vmatpush2.bf16.msra.mxu0 0
      %1308 = vmatprep.mubr.bf16.mxu0 0
      %1309 = vmatmul.mubr.bf16.gmra.mxu0 %v520
      %v1310 = vpop.f32.mrf.mxu0
      %v1311 = vadd.f32 %v1246, %v1310
      %v1312 = vpop.f32.mrf.mxu0
      %v1313 = vpop.f32.mrf.mxu0
      %v1314 = vadd.f32 %v1249, %v1313
      %v1315 = vpop.f32.mrf.mxu0
      %1316 = vmatprep.mubr.bf16.mxu0 0
      %1317 = vmatmul.mubr.bf16.gmra.mxu0 %v529
      %v1318 = vpop.f32.mrf.mxu0
      %v1319 = vadd.f32 %v1254, %v1318
      %v1320 = vpop.f32.mrf.mxu0
      %v1321 = vpop.f32.mrf.mxu0
      %v1322 = vadd.f32 %v1257, %v1321
      %v1323 = vpop.f32.mrf.mxu0
      %1324 = vmatprep.mubr.bf16.mxu0 0
      %1325 = vmatmul.mubr.bf16.gmra.mxu0 %v538
      %v1326 = vpop.f32.mrf.mxu0
      %v1327 = vadd.f32 %v1262, %v1326
      %v1328 = vpop.f32.mrf.mxu0
      %v1329 = vpop.f32.mrf.mxu0
      %v1330 = vadd.f32 %v1265, %v1329
      %v1331 = vpop.f32.mrf.mxu0
      %1332 = vmatprep.mubr.bf16.mxu0 0
      %1333 = vmatmul.mubr.bf16.gmra.mxu0 %v547
      %v1334 = vpop.f32.mrf.mxu0
      %v1335 = vadd.f32 %v1270, %v1334
      %v1336 = vpop.f32.mrf.mxu0
      %v1337 = vpop.f32.mrf.mxu0
      %v1338 = vadd.f32 %v1273, %v1337
      %v1339 = vpop.f32.mrf.mxu0
      %1340 = vdwg.mxu0
      %v1341 = vpack.c.bf16 %v1314, %v1311
      %v1342 = vpack.c.bf16 %v1322, %v1319
      %v1343 = vpack.c.bf16 %v1330, %v1327
      %v1344 = vpack.c.bf16 %v1338, %v1335
      %v1349 = vunpack.c.l.b16 %v1341
      %v1350 = vunpack.c.h.b16 %v1341
      %v1351 = vunpack.c.l.b16 %v1342
      %v1352 = vunpack.c.h.b16 %v1342
      %v1353 = vunpack.c.l.b16 %v1343
      %v1354 = vunpack.c.h.b16 %v1343
      %v1355 = vunpack.c.l.b16 %v1344
      %v1356 = vunpack.c.h.b16 %v1344
      %v1357 = vpack.c.b16 %v1349, %v1349
      %v1358 = vpack.c.b16 %v1350, %v1350
      %v1359 = vpack.c.b16 %v1351, %v1351
      %v1360 = vpack.c.b16 %v1352, %v1352
      %v1361 = vpack.c.b16 %v1353, %v1353
      %v1362 = vpack.c.b16 %v1354, %v1354
      %v1363 = vpack.c.b16 %v1355, %v1355
      %v1364 = vpack.c.b16 %v1356, %v1356
      %1373 = vst [vmem:[%s197] sm:$0xf] %v1357
      %1374 = vst [vmem:[%s197 + $0x4] sm:$0xf] %v1358
      %1375 = vst [vmem:[%s197 + $0x8] sm:$0xf] %v1359
      %1376 = vst [vmem:[%s197 + $0xc] sm:$0xf] %v1360
      %1377 = vst [vmem:[%s197 + $0x10] sm:$0xf] %v1361
      %1378 = vst [vmem:[%s197 + $0x14] sm:$0xf] %v1362
      %1379 = vst [vmem:[%s197 + $0x18] sm:$0xf] %v1363
      %1380 = vst [vmem:[%s197 + $0x1c] sm:$0xf] %v1364
      %s1381 = smul.u32 8, %s14
      %p1382 = scmp.lt.s32.totalorder %s1381, 15
      %s1383 = scalar_select %p1382, %s1381, 15
      %s1384 = smul.addr %s1383, 4
      %s1385 = scalar_lea.vmem %s3, %s1384
      // Predicated region
      $region33: #{densenet_forward.17} parent=31 // pred_check
        %p1386 = pneg %p105
      $region34: #{densenet_forward.17} parent=31 // pred_check_branch
        %1388 = sbr.rel (%p1386) target = $region36
      $region35: #{densenet_forward.17} parent=31 // pred_region
        %s1389 = smul.u32 8, %s14
      $region36: #{densenet_forward.17} parent=31 // pred_fallthru
        _
    $region32: #{densenet_forward.17} parent=5 // pred_fallthru
      _
    %p1390 = scmp.le.s32.totalorder 2, %s9
    // Predicated region
    $region37: #{densenet_forward.17} parent=5 // pred_check
      %p1391 = pneg %p1390
    $region38: #{densenet_forward.17} parent=5 // pred_check_branch
      %1393 = sbr.rel (%p1391) target = $region40
    $region39: #{densenet_forward.17} parent=5 // pred_region
      %s1394 = ssub.s32 %s9, 2
      // Predicated region
      $region41: #{densenet_forward.17} parent=39 // pred_check
        %p1395 = pneg %p111
      $region42: #{densenet_forward.17} parent=39 // pred_check_branch
        %1397 = sbr.rel (%p1395) target = $region44
      $region43: #{densenet_forward.17} parent=39 // pred_region
        %s1398 = smul.u32 8, %s15
        %p1399 = scmp.lt.s32.totalorder %s1398, 15
        %s1400 = scalar_select %p1399, %s1398, 15
        %s1401 = smul.addr %s1400, 4
        %s1402 = scalar_lea.vmem %s3, %s1401
      $region44: #{densenet_forward.17} parent=39 // pred_fallthru
        _
    $region40: #{densenet_forward.17} parent=5 // pred_fallthru
      _
  $region6: #{densenet_forward.17} parent=0 // loop_footer
    %s13 = sadd.s32 1, %s9
  $region7: #{densenet_forward.17} parent=0 // loop_footer_branch
    %8 = sbr.rel target = $region3
  $region8: #{densenet_forward.17} parent=0 // loop_exit
    _

// kernel: densenet_forward.29
$region0: #{densenet_forward.29}
  #allocation0 [shape = 'u32[]', space=smem, size = 0x4, offset = 0x4, fixed_abs, tag = 'smem constant byte address 0x4 - core index']
  #allocation1 [shape = 'u32[144,128]{1,0:T(1,128)}', space=vmem, size = 0x12000, scoped, tag = 'internal scratch']
  %s0 = inlined_call_operand.vmem [shape: bf16[2,16,128], index: 0, kind: input, shape index: {}]
  %s1 = inlined_call_operand.vmem [shape: f32[1,1,128], index: 1, kind: input, shape index: {}]
  %s2 = inlined_call_operand.vmem [shape: f32[1,1,128], index: 2, kind: input, shape index: {}]
  %s3 = inlined_call_operand.vmem [shape: f32[128,128], index: 3, kind: input, shape index: {}]
  %s4 = inlined_call_operand.vmem [shape: f32[1,128], index: 4, kind: input, shape index: {}]
  %s5 = inlined_call_operand.hbm [shape: f32[2,128], index: 5, kind: output, shape index: {}]
  %s6 = sld [smem:[#allocation0]]
  $region30: #{densenet_forward.29} parent=0
    _
  %s8 = ssub.s32 1, %s6
  %s9 = scalar_select 0, %s8, %s6
  $region1: #{densenet_forward.29} parent=0
    #allocation2 [shape = 'u8[1024]{0}', space=vmem, size = 0x400, scoped, tag = 'output window, operand 0, single buffered']
    #allocation3 [shape = 's32[1]{0}', space=sflag, size = 0x4, scoped, tag = 'scoped memory for densenet_forward.29']
    %10 = vsyncpa [#allocation3], 0
    // Predicated region
    $region2: #{densenet_forward.29} parent=1 // pred_check
      _
    $region3: #{densenet_forward.29} parent=1 // pred_check_branch
      %12 = sbr.rel (0) target = $region5
    $region4: #{densenet_forward.29} parent=1 // pred_region
      _
    $region5: #{densenet_forward.29} parent=1 // pred_fallthru
      _
    // Predicated region
    $region6: #{densenet_forward.29} parent=1 // pred_check
      _
    $region7: #{densenet_forward.29} parent=1 // pred_check_branch
      %14 = sbr.rel (0) target = $region9
    $region8: #{densenet_forward.29} parent=1 // pred_region
      _
    $region9: #{densenet_forward.29} parent=1 // pred_fallthru
      _
    // Predicated region
    $region10: #{densenet_forward.29} parent=1 // pred_check
      _
    $region11: #{densenet_forward.29} parent=1 // pred_check_branch
      %16 = sbr.rel (0) target = $region13
    $region12: #{densenet_forward.29} parent=1 // pred_region
      _
    $region13: #{densenet_forward.29} parent=1 // pred_fallthru
      _
    // Predicated region
    $region14: #{densenet_forward.29} parent=1 // pred_check
      _
    $region15: #{densenet_forward.29} parent=1 // pred_check_branch
      %18 = sbr.rel (0) target = $region17
    $region16: #{densenet_forward.29} parent=1 // pred_region
      _
    $region17: #{densenet_forward.29} parent=1 // pred_fallthru
      _
    // Predicated region
    $region18: #{densenet_forward.29} parent=1 // pred_check
      _
    $region19: #{densenet_forward.29} parent=1 // pred_check_branch
      %20 = sbr.rel (0) target = $region21
    $region20: #{densenet_forward.29} parent=1 // pred_region
      _
    $region21: #{densenet_forward.29} parent=1 // pred_fallthru
      _
    %v21 = vld [vmem:[%s0] sm:$0xf]
    %v22 = vld [vmem:[%s0 + $0x4] sm:$0xf]
    %v23 = vld [vmem:[%s0 + $0x8] sm:$0xf]
    %v24 = vld [vmem:[%s0 + $0xc] sm:$0xf]
    %v25 = vunpack.c.l.bf16 %v21
    %v26 = vunpack.c.l.bf16 %v22
    %v27 = vunpack.c.l.bf16 %v23
    %v28 = vunpack.c.l.bf16 %v24
    %v29 = vld [vmem:[%s1] sm:$0x1]
    %v31 = vlaneseq
    %v32 = vshrl.u32 %v31, 7
    %v33 = vsub.s32 0, %v32
    %v34 = vrot.slane %v29, %v33
    %v36 = vmul.f32 %v25, %v34
    %v37 = vmul.f32 %v26, %v34
    %v38 = vmul.f32 %v27, %v34
    %v39 = vmul.f32 %v28, %v34
    %v40 = vld [vmem:[%s2] sm:$0x1]
    %v42 = vlaneseq
    %v43 = vshrl.u32 %v42, 7
    %v44 = vsub.s32 0, %v43
    %v45 = vrot.slane %v40, %v44
    %v47 = vadd.f32 %v36, %v45
    %v48 = vadd.f32 %v37, %v45
    %v49 = vadd.f32 %v38, %v45
    %v50 = vadd.f32 %v39, %v45
    %v51 = vmax.f32 %v47, 0.0
    %v52 = vmax.f32 %v48, 0.0
    %v53 = vmax.f32 %v49, 0.0
    %v54 = vmax.f32 %v50, 0.0
    %v55 = vadd.f32 %v51, %v52
    %v56 = vrot.slane %v55, 4
    %v57 = vadd.f32 %v55, %v56
    %v58 = vrot.slane %v57, 2
    %v59 = vadd.f32 %v57, %v58
    %v60 = vrot.slane %v59, 1
    %v61 = vadd.f32 %v59, %v60
    %v62 = vadd.f32 %v53, %v54
    %v63 = vrot.slane %v62, 4
    %v64 = vadd.f32 %v62, %v63
    %v65 = vrot.slane %v64, 2
    %v66 = vadd.f32 %v64, %v65
    %v67 = vrot.slane %v66, 1
    %v68 = vadd.f32 %v66, %v67
    %v69 = vrcp.pop 16.0
    %v70 = vmul.f32 %v61, %v69
    %v71 = vmul.f32 %v68, %v69
    %v72 = vld [vmem:[%s3] sm:$0xff]
    %v73 = vld [vmem:[%s3 + $0x8] sm:$0xff]
    %v74 = vld [vmem:[%s3 + $0x10] sm:$0xff]
    %v75 = vld [vmem:[%s3 + $0x18] sm:$0xff]
    %v76 = vld [vmem:[%s3 + $0x20] sm:$0xff]
    %v77 = vld [vmem:[%s3 + $0x28] sm:$0xff]
    %v78 = vld [vmem:[%s3 + $0x30] sm:$0xff]
    %v79 = vld [vmem:[%s3 + $0x38] sm:$0xff]
    %v80 = vld [vmem:[%s3 + $0x40] sm:$0xff]
    %v81 = vld [vmem:[%s3 + $0x48] sm:$0xff]
    %v82 = vld [vmem:[%s3 + $0x50] sm:$0xff]
    %v83 = vld [vmem:[%s3 + $0x58] sm:$0xff]
    %v84 = vld [vmem:[%s3 + $0x60] sm:$0xff]
    %v85 = vld [vmem:[%s3 + $0x68] sm:$0xff]
    %v86 = vld [vmem:[%s3 + $0x70] sm:$0xff]
    %v87 = vld [vmem:[%s3 + $0x78] sm:$0xff]
    %v88 = vld [vmem:[%s4] sm:$0x1]
    %v90 = vlaneseq
    %v91 = vshrl.u32 %v90, 7
    %v92 = vsub.s32 0, %v91
    %v93 = vrot.slane %v88, %v92
    %vm97 = vcmask 1041409
    %v98 = vsel %vm97, %v71, %v70
    %100 = vmatprep.subr.mxu0 0.0
    %101 = vmatpush1.msra.mxu0 %v87
    %102 = vmatprep.subr.mxu0 0.0
    %103 = vmatpush1.msra.mxu0 %v86
    %104 = vmatprep.subr.mxu0 0.0
    %105 = vmatpush1.msra.mxu0 %v85
    %106 = vmatprep.subr.mxu0 0.0
    %107 = vmatpush1.msra.mxu0 %v84
    %108 = vmatprep.subr.mxu0 0.0
    %109 = vmatpush1.msra.mxu0 %v83
    %110 = vmatprep.subr.mxu0 0.0
    %111 = vmatpush1.msra.mxu0 %v82
    %112 = vmatprep.subr.mxu0 0.0
    %113 = vmatpush1.msra.mxu0 %v81
    %114 = vmatprep.subr.mxu0 0.0
    %115 = vmatpush1.msra.mxu0 %v80
    %116 = vmatprep.subr.mxu0 0.0
    %117 = vmatpush1.msra.mxu0 %v79
    %118 = vmatprep.subr.mxu0 0.0
    %119 = vmatpush1.msra.mxu0 %v78
    %120 = vmatprep.subr.mxu0 0.0
    %121 = vmatpush1.msra.mxu0 %v77
    %122 = vmatprep.subr.mxu0 0.0
    %123 = vmatpush1.msra.mxu0 %v76
    %124 = vmatprep.subr.mxu0 0.0
    %125 = vmatpush1.msra.mxu0 %v75
    %126 = vmatprep.subr.mxu0 0.0
    %127 = vmatpush1.msra.mxu0 %v74
    %128 = vmatprep.subr.mxu0 0.0
    %129 = vmatpush1.msra.mxu0 %v73
    %130 = vmatprep.subr.mxu0 0.0
    %131 = vmatpush1.msra.mxu0 %v72
    %132 = vmatprep.subr.mxu0 0.0
    %133 = vmatpush2.msra.mxu0 0.0
    %134 = vmatprep.subr.mxu0 0.0
    %135 = vmatpush2.msra.mxu0 0.0
    %136 = vmatprep.subr.mxu0 0.0
    %137 = vmatpush2.msra.mxu0 0.0
    %138 = vmatprep.subr.mxu0 0.0
    %139 = vmatpush2.msra.mxu0 0.0
    %140 = vmatprep.subr.mxu0 0.0
    %141 = vmatpush2.msra.mxu0 0.0
    %142 = vmatprep.subr.mxu0 0.0
    %143 = vmatpush2.msra.mxu0 0.0
    %144 = vmatprep.subr.mxu0 0.0
    %145 = vmatpush2.msra.mxu0 0.0
    %146 = vmatprep.subr.mxu0 0.0
    %147 = vmatpush2.msra.mxu0 0.0
    %148 = vmatprep.subr.mxu0 0.0
    %149 = vmatpush2.msra.mxu0 0.0
    %150 = vmatprep.subr.mxu0 0.0
    %151 = vmatpush2.msra.mxu0 0.0
    %152 = vmatprep.subr.mxu0 0.0
    %153 = vmatpush2.msra.mxu0 0.0
    %154 = vmatprep.subr.mxu0 0.0
    %155 = vmatpush2.msra.mxu0 0.0
    %156 = vmatprep.subr.mxu0 0.0
    %157 = vmatpush2.msra.mxu0 0.0
    %158 = vmatprep.subr.mxu0 0.0
    %159 = vmatpush2.msra.mxu0 0.0
    %160 = vmatprep.subr.mxu0 0.0
    %161 = vmatpush2.msra.mxu0 0.0
    %162 = vmatprep.subr.mxu0 0.0
    %163 = vmatpush2.msra.mxu0 0.0
    %164 = vmatprep.mubr.f32.mxu0 0.0
    %165 = vmatmul.mubr.f32.gmra.mxu0 %v98
    %v166 = vpop.f32.mrf.mxu0
    %v167 = vadd.f32 %v93, %v166
    %v168 = vpop.f32.mrf.mxu0
    %169 = vdwg.mxu0
    %170 = vst [vmem:[#allocation2] sm:$0x3] %v167
    // Predicated region
    $region22: #{densenet_forward.29} parent=1 // pred_check
      _
    $region23: #{densenet_forward.29} parent=1 // pred_check_branch
      %172 = sbr.rel (0) target = $region25
    $region24: #{densenet_forward.29} parent=1 // pred_region
      %s174 = ssub.s32 32, 32
      %175 = vsyncadd [#allocation3], %s174
      %s177 = sshll.u32 [#allocation2], 4
      %s178 = int_to_ptr.vmem [resolvable:$true] %s177
      %180 = dma.vmem_to_hbm [thread:$0]  %s178, 32, %s5, [#allocation3]
    $region25: #{densenet_forward.29} parent=1 // pred_fallthru
      _
    // Predicated region
    $region26: #{densenet_forward.29} parent=1 // pred_check
      _
    $region27: #{densenet_forward.29} parent=1 // pred_check_branch
      %182 = sbr.rel (0) target = $region29
    $region28: #{densenet_forward.29} parent=1 // pred_region
      %183 = dma.done [#allocation3], 32
    $region29: #{densenet_forward.29} parent=1 // pred_fallthru
      _
    %184 = vsyncpa [#allocation3], 1

// kernel: densenet_forward.24
$region0: #{densenet_forward.24}
  #allocation0 [shape = 'u32[]', space=smem, size = 0x4, offset = 0x4, fixed_abs, tag = 'smem constant byte address 0x4 - core index']
  #allocation1 [shape = 'u32[144,128]{1,0:T(1,128)}', space=vmem, size = 0x12000, scoped, tag = 'internal scratch']
  %s0 = inlined_call_operand.vmem [shape: bf16[32,1152], index: 0, kind: input, shape index: {}]
  %s1 = inlined_call_operand.vmem [shape: bf16[1152,128], index: 1, kind: input, shape index: {}]
  %s2 = inlined_call_operand.vmem [shape: bf16[32,128], index: 2, kind: input, shape index: {}]
  %s3 = inlined_call_operand.vmem [shape: bf16[32,128], index: 3, kind: output, shape index: {}]
  %s4 = sld [smem:[#allocation0]]
  $region45: #{densenet_forward.24} parent=0
    _
  %s6 = ssub.s32 1, %s4
  %s7 = scalar_select 0, %s6, %s4
  loop: start=0, step=1, limit=4
  $region2: #{densenet_forward.24} parent=0 // loop_pre_header
    _
  $region3: #{densenet_forward.24} parent=0 // loop_header
    %s9 = sphi 0, %s13
    %p10 = scmp.ge.s32.totalorder %s9, 4
    %s19 = sphi 0, %s21
    %s22 = sphi 0, %s19
    %s23 = sphi 0, %s22
    %s39 = sphi 0, %s23
    %s43 = sphi 0, %s43
    %s45 = sphi 0, %s43
    %s46 = sphi 0, %s45
    %s60 = sphi 0, %s46
    %s66 = sphi 0, %s68
    %s69 = sphi 0, %s66
    %s70 = sphi 0, %s69
    %s86 = sphi 0, %s70
    %s92 = sphi 0, %s94
    %s95 = sphi 0, %s92
    %s96 = sphi 0, %s95
    %s112 = sphi 0, %s96
  $region4: #{densenet_forward.24} parent=0 // loop_header_branch
    %12 = sbr.rel (%p10) target = $region8
  $region5: #{densenet_forward.24} parent=0 // loop_body
    %s14 = ssub.s32 %s9, 1
    %s15 = ssub.s32 %s9, 2
    %s16 = sadd.s32 %s9, 1
    %s17 = ssub.s32 %s9, %s16
    %p18 = scmp.eq.s32.totalorder %s17, 0
    %s20 = sadd.s32 %s19, 1
    %s21 = scalar_select %p18, %s19, %s20
    %p24 = pneg %p18
    %p25 = scmp.eq.s32.totalorder %s9, 1
    %p26 = por %p24, %p25
    %p27 = scmp.ne.s32.totalorder %s19, %s22
    %p28 = scmp.eq.s32.totalorder %s9, 0
    %p29 = por %p27, %p28
    %p30 = scmp.ne.s32.totalorder %s19, %s22
    %p31 = scmp.eq.s32.totalorder %s14, 1
    %p32 = por %p30, %p31
    %p33 = scmp.ne.s32.totalorder %s22, %s23
    %p34 = scmp.eq.s32.totalorder %s14, 0
    %p35 = por %p33, %p34
    %p36 = scmp.ne.s32.totalorder %s22, %s23
    %p37 = scmp.eq.s32.totalorder %s15, 1
    %p38 = por %p36, %p37
    %p40 = scmp.ne.s32.totalorder %s23, %s39
    %p41 = scmp.eq.s32.totalorder %s15, 0
    %p42 = por %p40, %p41
    %s44 = sadd.s32 %s43, 1
    %p47 = scmp.eq.s32.totalorder %s9, 1
    %p48 = scmp.ne.s32.totalorder %s43, %s45
    %p49 = scmp.eq.s32.totalorder %s9, 0
    %p50 = por %p48, %p49
    %p51 = scmp.ne.s32.totalorder %s43, %s45
    %p52 = scmp.eq.s32.totalorder %s14, 1
    %p53 = por %p51, %p52
    %p54 = scmp.ne.s32.totalorder %s45, %s46
    %p55 = scmp.eq.s32.totalorder %s14, 0
    %p56 = por %p54, %p55
    %p57 = scmp.ne.s32.totalorder %s45, %s46
    %p58 = scmp.eq.s32.totalorder %s15, 1
    %p59 = por %p57, %p58
    %p61 = scmp.ne.s32.totalorder %s46, %s60
    %p62 = scmp.eq.s32.totalorder %s15, 0
    %p63 = por %p61, %p62
    %s64 = ssub.s32 %s9, %s16
    %p65 = scmp.eq.s32.totalorder %s64, 0
    %s67 = sadd.s32 %s66, 1
    %s68 = scalar_select %p65, %s66, %s67
    %p71 = pneg %p65
    %p72 = scmp.eq.s32.totalorder %s9, 1
    %p73 = por %p71, %p72
    %p74 = scmp.ne.s32.totalorder %s66, %s69
    %p75 = scmp.eq.s32.totalorder %s9, 0
    %p76 = por %p74, %p75
    %p77 = scmp.ne.s32.totalorder %s66, %s69
    %p78 = scmp.eq.s32.totalorder %s14, 1
    %p79 = por %p77, %p78
    %p80 = scmp.ne.s32.totalorder %s69, %s70
    %p81 = scmp.eq.s32.totalorder %s14, 0
    %p82 = por %p80, %p81
    %p83 = scmp.ne.s32.totalorder %s69, %s70
    %p84 = scmp.eq.s32.totalorder %s15, 1
    %p85 = por %p83, %p84
    %p87 = scmp.ne.s32.totalorder %s70, %s86
    %p88 = scmp.eq.s32.totalorder %s15, 0
    %p89 = por %p87, %p88
    %s90 = ssub.s32 %s9, %s16
    %p91 = scmp.eq.s32.totalorder %s90, 0
    %s93 = sadd.s32 %s92, 1
    %s94 = scalar_select %p91, %s92, %s93
    %p97 = pneg %p91
    %p98 = scmp.eq.s32.totalorder %s9, 1
    %p99 = por %p97, %p98
    %p100 = scmp.ne.s32.totalorder %s92, %s95
    %p101 = scmp.eq.s32.totalorder %s9, 0
    %p102 = por %p100, %p101
    %p103 = scmp.ne.s32.totalorder %s92, %s95
    %p104 = scmp.eq.s32.totalorder %s14, 1
    %p105 = por %p103, %p104
    %p106 = scmp.ne.s32.totalorder %s95, %s96
    %p107 = scmp.eq.s32.totalorder %s14, 0
    %p108 = por %p106, %p107
    %p109 = scmp.ne.s32.totalorder %s95, %s96
    %p110 = scmp.eq.s32.totalorder %s15, 1
    %p111 = por %p109, %p110
    %p113 = scmp.ne.s32.totalorder %s96, %s112
    %p114 = scmp.eq.s32.totalorder %s15, 0
    %p115 = por %p113, %p114
    %p116 = scmp.le.s32.totalorder 1, %s9
    %p117 = scmp.lt.s32.totalorder %s9, 3
    %p118 = pnand %p116, %p117
    %p119 = pneg %p118
    // Predicated region
    $region9: #{densenet_forward.24} parent=5 // pred_check
      _
    $region10: #{densenet_forward.24} parent=5 // pred_check_branch
      %121 = sbr.rel (%p118) target = $region12
    $region11: #{densenet_forward.24} parent=5 // pred_region
      %s122 = ssub.s32 %s9, 1
      // Predicated region
      $region13: #{densenet_forward.24} parent=11 // pred_check
        %p123 = pneg %p56
      $region14: #{densenet_forward.24} parent=11 // pred_check_branch
        %125 = sbr.rel (%p123) target = $region16
      $region15: #{densenet_forward.24} parent=11 // pred_region
        _
      $region16: #{densenet_forward.24} parent=11 // pred_fallthru
        _
    $region12: #{densenet_forward.24} parent=5 // pred_fallthru
      _
    %p126 = scmp.lt.s32.totalorder %s9, 2
    // Predicated region
    $region17: #{densenet_forward.24} parent=5 // pred_check
      %p127 = pneg %p126
    $region18: #{densenet_forward.24} parent=5 // pred_check_branch
      %129 = sbr.rel (%p127) target = $region20
    $region19: #{densenet_forward.24} parent=5 // pred_region
      // Predicated region
      $region21: #{densenet_forward.24} parent=19 // pred_check
        %p130 = pneg %p29
      $region22: #{densenet_forward.24} parent=19 // pred_check_branch
        %132 = sbr.rel (%p130) target = $region24
      $region23: #{densenet_forward.24} parent=19 // pred_region
        %s133 = smul.u32 2, %s9
        %p134 = scmp.lt.s32.totalorder %s133, 3
        %s135 = scalar_select %p134, %s133, 3
        %s136 = smul.addr %s135, 9
        %s137 = smul.addr %s136, 4
        %s138 = scalar_lea.vmem %s0, %s137
        %s139 = smul.u32 2, %s9
      $region24: #{densenet_forward.24} parent=19 // pred_fallthru
        _
      // Predicated region
      $region25: #{densenet_forward.24} parent=19 // pred_check
        %p140 = pneg %p76
      $region26: #{densenet_forward.24} parent=19 // pred_check_branch
        %142 = sbr.rel (%p140) target = $region28
      $region27: #{densenet_forward.24} parent=19 // pred_region
        %s143 = smul.u32 2, %s9
        %p144 = scmp.lt.s32.totalorder %s143, 3
        %s145 = scalar_select %p144, %s143, 3
        %s146 = smul.addr %s145, 4
        %s147 = scalar_lea.vmem %s2, %s146
        %s148 = smul.u32 2, %s9
      $region28: #{densenet_forward.24} parent=19 // pred_fallthru
        _
    $region20: #{densenet_forward.24} parent=5 // pred_fallthru
      _
    %p149 = scmp.le.s32.totalorder 1, %s9
    %p150 = scmp.lt.s32.totalorder %s9, 3
    %p151 = pnand %p149, %p150
    %p152 = pneg %p151
    // Predicated region
    $region29: #{densenet_forward.24} parent=5 // pred_check
      _
    $region30: #{densenet_forward.24} parent=5 // pred_check_branch
      %154 = sbr.rel (%p151) target = $region32
    $region31: #{densenet_forward.24} parent=5 // pred_region
      %s155 = ssub.s32 %s9, 1
      %s156 = smul.u32 2, %s14
      %p157 = scmp.lt.s32.totalorder %s156, 3
      %s158 = scalar_select %p157, %s156, 3
      %s159 = smul.addr %s158, 9
      %s160 = smul.addr %s159, 4
      %s161 = scalar_lea.vmem %s0, %s160
      %p162 = pneg %p35
      %p163 = pneg %p32
      %p164 = pneg %p56
      %p165 = pneg %p53
      %s166 = smul.u32 2, %s14
      %p167 = scmp.lt.s32.totalorder %s166, 3
      %s168 = scalar_select %p167, %s166, 3
      %s169 = smul.addr %s168, 4
      %s170 = scalar_lea.vmem %s2, %s169
      %p171 = pneg %p82
      %p172 = pneg %p79
      %p173 = pneg %p108
      %p174 = pneg %p105
      %s175 = smul.u32 2, %s14
      %p176 = scmp.lt.s32.totalorder %s175, 3
      %s177 = scalar_select %p176, %s175, 3
      %s178 = smul.addr %s177, 4
      %s179 = scalar_lea.vmem %s3, %s178
      %s180 = smul.u32 2, %s14
      %p181 = scmp.lt.s32.totalorder %s180, 3
      %s182 = scalar_select %p181, %s180, 3
      %s183 = smul.addr %s182, 9
      %s184 = smul.addr %s183, 4
      %s185 = scalar_lea.vmem %s0, %s184
      %s186 = smul.u32 2, %s14
      %s187 = smul.u32 2, %s14
      %p188 = scmp.lt.s32.totalorder %s187, 3
      %s189 = scalar_select %p188, %s187, 3
      %s190 = smul.addr %s189, 4
      %s191 = scalar_lea.vmem %s2, %s190
      %s192 = smul.u32 2, %s14
      %s193 = smul.u32 2, %s14
      %p194 = scmp.lt.s32.totalorder %s193, 3
      %s195 = scalar_select %p194, %s193, 3
      %s196 = smul.addr %s195, 4
      %s197 = scalar_lea.vmem %s3, %s196
      %s198 = smul.u32 2, %s14
      %v200 = vld [vmem:[%s185] sm:$0xff]
      %v201 = vld [vmem:[%s185 + $0x8] sm:$0xff]
      %v202 = vld [vmem:[%s185 + $0x10] sm:$0xff]
      %v203 = vld [vmem:[%s185 + $0x18] sm:$0xff]
      %v204 = vld [vmem:[%s185 + $0x20] sm:$0xf]
      %v205 = vld [vmem:[%s185 + $0x24] sm:$0xff]
      %v206 = vld [vmem:[%s185 + $0x2c] sm:$0xff]
      %v207 = vld [vmem:[%s185 + $0x34] sm:$0xff]
      %v208 = vld [vmem:[%s185 + $0x3c] sm:$0xff]
      %v209 = vld [vmem:[%s185 + $0x44] sm:$0xf]
      %v210 = vld [vmem:[%s1] sm:$0xf]
      %v211 = vld [vmem:[%s1 + $0x4] sm:$0xf]
      %v212 = vld [vmem:[%s1 + $0x8] sm:$0xf]
      %v213 = vld [vmem:[%s1 + $0xc] sm:$0xf]
      %v214 = vld [vmem:[%s1 + $0x10] sm:$0xf]
      %v215 = vld [vmem:[%s1 + $0x14] sm:$0xf]
      %v216 = vld [vmem:[%s1 + $0x18] sm:$0xf]
      %v217 = vld [vmem:[%s1 + $0x1c] sm:$0xf]
      %v218 = vld [vmem:[%s1 + $0x20] sm:$0xf]
      %v219 = vld [vmem:[%s1 + $0x24] sm:$0xf]
      %v220 = vld [vmem:[%s1 + $0x28] sm:$0xf]
      %v221 = vld [vmem:[%s1 + $0x2c] sm:$0xf]
      %v222 = vld [vmem:[%s1 + $0x30] sm:$0xf]
      %v223 = vld [vmem:[%s1 + $0x34] sm:$0xf]
      %v224 = vld [vmem:[%s1 + $0x38] sm:$0xf]
      %v225 = vld [vmem:[%s1 + $0x3c] sm:$0xf]
      %v226 = vld [vmem:[%s1 + $0x40] sm:$0xf]
      %v227 = vld [vmem:[%s1 + $0x44] sm:$0xf]
      %v228 = vld [vmem:[%s1 + $0x48] sm:$0xf]
      %v229 = vld [vmem:[%s1 + $0x4c] sm:$0xf]
      %v230 = vld [vmem:[%s1 + $0x50] sm:$0xf]
      %v231 = vld [vmem:[%s1 + $0x54] sm:$0xf]
      %v232 = vld [vmem:[%s1 + $0x58] sm:$0xf]
      %v233 = vld [vmem:[%s1 + $0x5c] sm:$0xf]
      %v234 = vld [vmem:[%s1 + $0x60] sm:$0xf]
      %v235 = vld [vmem:[%s1 + $0x64] sm:$0xf]
      %v236 = vld [vmem:[%s1 + $0x68] sm:$0xf]
      %v237 = vld [vmem:[%s1 + $0x6c] sm:$0xf]
      %v238 = vld [vmem:[%s1 + $0x70] sm:$0xf]
      %v239 = vld [vmem:[%s1 + $0x74] sm:$0xf]
      %v240 = vld [vmem:[%s1 + $0x78] sm:$0xf]
      %v241 = vld [vmem:[%s1 + $0x7c] sm:$0xf]
      %v242 = vld [vmem:[%s1 + $0x80] sm:$0xf]
      %v243 = vld [vmem:[%s1 + $0x84] sm:$0xf]
      %v244 = vld [vmem:[%s1 + $0x88] sm:$0xf]
      %v245 = vld [vmem:[%s1 + $0x8c] sm:$0xf]
      %v246 = vld [vmem:[%s1 + $0x90] sm:$0xf]
      %v247 = vld [vmem:[%s1 + $0x94] sm:$0xf]
      %v248 = vld [vmem:[%s1 + $0x98] sm:$0xf]
      %v249 = vld [vmem:[%s1 + $0x9c] sm:$0xf]
      %v250 = vld [vmem:[%s1 + $0xa0] sm:$0xf]
      %v251 = vld [vmem:[%s1 + $0xa4] sm:$0xf]
      %v252 = vld [vmem:[%s1 + $0xa8] sm:$0xf]
      %v253 = vld [vmem:[%s1 + $0xac] sm:$0xf]
      %v254 = vld [vmem:[%s1 + $0xb0] sm:$0xf]
      %v255 = vld [vmem:[%s1 + $0xb4] sm:$0xf]
      %v256 = vld [vmem:[%s1 + $0xb8] sm:$0xf]
      %v257 = vld [vmem:[%s1 + $0xbc] sm:$0xf]
      %v258 = vld [vmem:[%s1 + $0xc0] sm:$0xf]
      %v259 = vld [vmem:[%s1 + $0xc4] sm:$0xf]
      %v260 = vld [vmem:[%s1 + $0xc8] sm:$0xf]
      %v261 = vld [vmem:[%s1 + $0xcc] sm:$0xf]
      %v262 = vld [vmem:[%s1 + $0xd0] sm:$0xf]
      %v263 = vld [vmem:[%s1 + $0xd4] sm:$0xf]
      %v264 = vld [vmem:[%s1 + $0xd8] sm:$0xf]
      %v265 = vld [vmem:[%s1 + $0xdc] sm:$0xf]
      %v266 = vld [vmem:[%s1 + $0xe0] sm:$0xf]
      %v267 = vld [vmem:[%s1 + $0xe4] sm:$0xf]
      %v268 = vld [vmem:[%s1 + $0xe8] sm:$0xf]
      %v269 = vld [vmem:[%s1 + $0xec] sm:$0xf]
      %v270 = vld [vmem:[%s1 + $0xf0] sm:$0xf]
      %v271 = vld [vmem:[%s1 + $0xf4] sm:$0xf]
      %v272 = vld [vmem:[%s1 + $0xf8] sm:$0xf]
      %v273 = vld [vmem:[%s1 + $0xfc] sm:$0xf]
      %v274 = vld [vmem:[%s1 + $0x100] sm:$0xf]
      %v275 = vld [vmem:[%s1 + $0x104] sm:$0xf]
      %v276 = vld [vmem:[%s1 + $0x108] sm:$0xf]
      %v277 = vld [vmem:[%s1 + $0x10c] sm:$0xf]
      %v278 = vld [vmem:[%s1 + $0x110] sm:$0xf]
      %v279 = vld [vmem:[%s1 + $0x114] sm:$0xf]
      %v280 = vld [vmem:[%s1 + $0x118] sm:$0xf]
      %v281 = vld [vmem:[%s1 + $0x11c] sm:$0xf]
      %v282 = vld [vmem:[%s1 + $0x120] sm:$0xf]
      %v283 = vld [vmem:[%s1 + $0x124] sm:$0xf]
      %v284 = vld [vmem:[%s1 + $0x128] sm:$0xf]
      %v285 = vld [vmem:[%s1 + $0x12c] sm:$0xf]
      %v286 = vld [vmem:[%s1 + $0x130] sm:$0xf]
      %v287 = vld [vmem:[%s1 + $0x134] sm:$0xf]
      %v288 = vld [vmem:[%s1 + $0x138] sm:$0xf]
      %v289 = vld [vmem:[%s1 + $0x13c] sm:$0xf]
      %v290 = vld [vmem:[%s1 + $0x140] sm:$0xf]
      %v291 = vld [vmem:[%s1 + $0x144] sm:$0xf]
      %v292 = vld [vmem:[%s1 + $0x148] sm:$0xf]
      %v293 = vld [vmem:[%s1 + $0x14c] sm:$0xf]
      %v294 = vld [vmem:[%s1 + $0x150] sm:$0xf]
      %v295 = vld [vmem:[%s1 + $0x154] sm:$0xf]
      %v296 = vld [vmem:[%s1 + $0x158] sm:$0xf]
      %v297 = vld [vmem:[%s1 + $0x15c] sm:$0xf]
      %v298 = vld [vmem:[%s1 + $0x160] sm:$0xf]
      %v299 = vld [vmem:[%s1 + $0x164] sm:$0xf]
      %v300 = vld [vmem:[%s1 + $0x168] sm:$0xf]
      %v301 = vld [vmem:[%s1 + $0x16c] sm:$0xf]
      %v302 = vld [vmem:[%s1 + $0x170] sm:$0xf]
      %v303 = vld [vmem:[%s1 + $0x174] sm:$0xf]
      %v304 = vld [vmem:[%s1 + $0x178] sm:$0xf]
      %v305 = vld [vmem:[%s1 + $0x17c] sm:$0xf]
      %v306 = vld [vmem:[%s1 + $0x180] sm:$0xf]
      %v307 = vld [vmem:[%s1 + $0x184] sm:$0xf]
      %v308 = vld [vmem:[%s1 + $0x188] sm:$0xf]
      %v309 = vld [vmem:[%s1 + $0x18c] sm:$0xf]
      %v310 = vld [vmem:[%s1 + $0x190] sm:$0xf]
      %v311 = vld [vmem:[%s1 + $0x194] sm:$0xf]
      %v312 = vld [vmem:[%s1 + $0x198] sm:$0xf]
      %v313 = vld [vmem:[%s1 + $0x19c] sm:$0xf]
      %v314 = vld [vmem:[%s1 + $0x1a0] sm:$0xf]
      %v315 = vld [vmem:[%s1 + $0x1a4] sm:$0xf]
      %v316 = vld [vmem:[%s1 + $0x1a8] sm:$0xf]
      %v317 = vld [vmem:[%s1 + $0x1ac] sm:$0xf]
      %v318 = vld [vmem:[%s1 + $0x1b0] sm:$0xf]
      %v319 = vld [vmem:[%s1 + $0x1b4] sm:$0xf]
      %v320 = vld [vmem:[%s1 + $0x1b8] sm:$0xf]
      %v321 = vld [vmem:[%s1 + $0x1bc] sm:$0xf]
      %v322 = vld [vmem:[%s1 + $0x1c0] sm:$0xf]
      %v323 = vld [vmem:[%s1 + $0x1c4] sm:$0xf]
      %v324 = vld [vmem:[%s1 + $0x1c8] sm:$0xf]
      %v325 = vld [vmem:[%s1 + $0x1cc] sm:$0xf]
      %v326 = vld [vmem:[%s1 + $0x1d0] sm:$0xf]
      %v327 = vld [vmem:[%s1 + $0x1d4] sm:$0xf]
      %v328 = vld [vmem:[%s1 + $0x1d8] sm:$0xf]
      %v329 = vld [vmem:[%s1 + $0x1dc] sm:$0xf]
      %v330 = vld [vmem:[%s1 + $0x1e0] sm:$0xf]
      %v331 = vld [vmem:[%s1 + $0x1e4] sm:$0xf]
      %v332 = vld [vmem:[%s1 + $0x1e8] sm:$0xf]
      %v333 = vld [vmem:[%s1 + $0x1ec] sm:$0xf]
      %v334 = vld [vmem:[%s1 + $0x1f0] sm:$0xf]
      %v335 = vld [vmem:[%s1 + $0x1f4] sm:$0xf]
      %v336 = vld [vmem:[%s1 + $0x1f8] sm:$0xf]
      %v337 = vld [vmem:[%s1 + $0x1fc] sm:$0xf]
      %v338 = vld [vmem:[%s1 + $0x200] sm:$0xf]
      %v339 = vld [vmem:[%s1 + $0x204] sm:$0xf]
      %v340 = vld [vmem:[%s1 + $0x208] sm:$0xf]
      %v341 = vld [vmem:[%s1 + $0x20c] sm:$0xf]
      %v342 = vld [vmem:[%s1 + $0x210] sm:$0xf]
      %v343 = vld [vmem:[%s1 + $0x214] sm:$0xf]
      %v344 = vld [vmem:[%s1 + $0x218] sm:$0xf]
      %v345 = vld [vmem:[%s1 + $0x21c] sm:$0xf]
      %v346 = vld [vmem:[%s1 + $0x220] sm:$0xf]
      %v347 = vld [vmem:[%s1 + $0x224] sm:$0xf]
      %v348 = vld [vmem:[%s1 + $0x228] sm:$0xf]
      %v349 = vld [vmem:[%s1 + $0x22c] sm:$0xf]
      %v350 = vld [vmem:[%s1 + $0x230] sm:$0xf]
      %v351 = vld [vmem:[%s1 + $0x234] sm:$0xf]
      %v352 = vld [vmem:[%s1 + $0x238] sm:$0xf]
      %v353 = vld [vmem:[%s1 + $0x23c] sm:$0xf]
      %v354 = vld [vmem:[%s191] sm:$0xf]
      %v355 = vld [vmem:[%s191 + $0x4] sm:$0xf]
      %v356 = vunpack.c.l.bf16 %v354
      %v357 = vunpack.c.l.bf16 %v355
      %v368 = vunpack.c.l.b16 %v200
      %v369 = vunpack.c.h.b16 %v200
      %v370 = vunpack.c.l.b16 %v201
      %v371 = vunpack.c.h.b16 %v201
      %v372 = vunpack.c.l.b16 %v202
      %v373 = vunpack.c.h.b16 %v202
      %v374 = vunpack.c.l.b16 %v203
      %v375 = vunpack.c.h.b16 %v203
      %v376 = vunpack.c.l.b16 %v204
      %v377 = vunpack.c.l.b16 %v205
      %v378 = vunpack.c.h.b16 %v205
      %v379 = vunpack.c.l.b16 %v206
      %v380 = vunpack.c.h.b16 %v206
      %v381 = vunpack.c.l.b16 %v207
      %v382 = vunpack.c.h.b16 %v207
      %v383 = vunpack.c.l.b16 %v208
      %v384 = vunpack.c.h.b16 %v208
      %v385 = vunpack.c.l.b16 %v209
      %v386 = vpack.c.b16 %v377, %v368
      %v387 = vpack.c.b16 %v378, %v369
      %v388 = vpack.c.b16 %v379, %v370
      %v389 = vpack.c.b16 %v380, %v371
      %v390 = vpack.c.b16 %v381, %v372
      %v391 = vpack.c.b16 %v382, %v373
      %v392 = vpack.c.b16 %v383, %v374
      %v393 = vpack.c.b16 %v384, %v375
      %v394 = vpack.c.b16 %v385, %v376
      %v548 = vunpack.c.l.b16 %v210
      %v549 = vunpack.c.l.b16 %v211
      %v550 = vunpack.c.l.b16 %v212
      %v551 = vunpack.c.l.b16 %v213
      %v552 = vunpack.c.l.b16 %v214
      %v553 = vunpack.c.l.b16 %v215
      %v554 = vunpack.c.l.b16 %v216
      %v555 = vunpack.c.l.b16 %v217
      %v556 = vunpack.c.l.b16 %v218
      %v557 = vunpack.c.l.b16 %v219
      %v558 = vunpack.c.l.b16 %v220
      %v559 = vunpack.c.l.b16 %v221
      %v560 = vunpack.c.l.b16 %v222
      %v561 = vunpack.c.l.b16 %v223
      %v562 = vunpack.c.l.b16 %v224
      %v563 = vunpack.c.l.b16 %v225
      %v564 = vunpack.c.l.b16 %v226
      %v565 = vunpack.c.l.b16 %v227
      %v566 = vunpack.c.l.b16 %v228
      %v567 = vunpack.c.l.b16 %v229
      %v568 = vunpack.c.l.b16 %v230
      %v569 = vunpack.c.l.b16 %v231
      %v570 = vunpack.c.l.b16 %v232
      %v571 = vunpack.c.l.b16 %v233
      %v572 = vunpack.c.l.b16 %v234
      %v573 = vunpack.c.l.b16 %v235
      %v574 = vunpack.c.l.b16 %v236
      %v575 = vunpack.c.l.b16 %v237
      %v576 = vunpack.c.l.b16 %v238
      %v577 = vunpack.c.l.b16 %v239
      %v578 = vunpack.c.l.b16 %v240
      %v579 = vunpack.c.l.b16 %v241
      %v580 = vunpack.c.l.b16 %v242
      %v581 = vunpack.c.l.b16 %v243
      %v582 = vunpack.c.l.b16 %v244
      %v583 = vunpack.c.l.b16 %v245
      %v584 = vunpack.c.l.b16 %v246
      %v585 = vunpack.c.l.b16 %v247
      %v586 = vunpack.c.l.b16 %v248
      %v587 = vunpack.c.l.b16 %v249
      %v588 = vunpack.c.l.b16 %v250
      %v589 = vunpack.c.l.b16 %v251
      %v590 = vunpack.c.l.b16 %v252
      %v591 = vunpack.c.l.b16 %v253
      %v592 = vunpack.c.l.b16 %v254
      %v593 = vunpack.c.l.b16 %v255
      %v594 = vunpack.c.l.b16 %v256
      %v595 = vunpack.c.l.b16 %v257
      %v596 = vunpack.c.l.b16 %v258
      %v597 = vunpack.c.l.b16 %v259
      %v598 = vunpack.c.l.b16 %v260
      %v599 = vunpack.c.l.b16 %v261
      %v600 = vunpack.c.l.b16 %v262
      %v601 = vunpack.c.l.b16 %v263
      %v602 = vunpack.c.l.b16 %v264
      %v603 = vunpack.c.l.b16 %v265
      %v604 = vunpack.c.l.b16 %v266
      %v605 = vunpack.c.l.b16 %v267
      %v606 = vunpack.c.l.b16 %v268
      %v607 = vunpack.c.l.b16 %v269
      %v608 = vunpack.c.l.b16 %v270
      %v609 = vunpack.c.l.b16 %v271
      %v610 = vunpack.c.l.b16 %v272
      %v611 = vunpack.c.l.b16 %v273
      %v612 = vunpack.c.l.b16 %v274
      %v613 = vunpack.c.l.b16 %v275
      %v614 = vunpack.c.l.b16 %v276
      %v615 = vunpack.c.l.b16 %v277
      %v616 = vunpack.c.l.b16 %v278
      %v617 = vunpack.c.l.b16 %v279
      %v618 = vunpack.c.l.b16 %v280
      %v619 = vunpack.c.l.b16 %v281
      %v620 = vunpack.c.l.b16 %v282
      %v621 = vunpack.c.l.b16 %v283
      %v622 = vunpack.c.l.b16 %v284
      %v623 = vunpack.c.l.b16 %v285
      %v624 = vunpack.c.l.b16 %v286
      %v625 = vunpack.c.l.b16 %v287
      %v626 = vunpack.c.l.b16 %v288
      %v627 = vunpack.c.l.b16 %v289
      %v628 = vunpack.c.l.b16 %v290
      %v629 = vunpack.c.l.b16 %v291
      %v630 = vunpack.c.l.b16 %v292
      %v631 = vunpack.c.l.b16 %v293
      %v632 = vunpack.c.l.b16 %v294
      %v633 = vunpack.c.l.b16 %v295
      %v634 = vunpack.c.l.b16 %v296
      %v635 = vunpack.c.l.b16 %v297
      %v636 = vunpack.c.l.b16 %v298
      %v637 = vunpack.c.l.b16 %v299
      %v638 = vunpack.c.l.b16 %v300
      %v639 = vunpack.c.l.b16 %v301
      %v640 = vunpack.c.l.b16 %v302
      %v641 = vunpack.c.l.b16 %v303
      %v642 = vunpack.c.l.b16 %v304
      %v643 = vunpack.c.l.b16 %v305
      %v644 = vunpack.c.l.b16 %v306
      %v645 = vunpack.c.l.b16 %v307
      %v646 = vunpack.c.l.b16 %v308
      %v647 = vunpack.c.l.b16 %v309
      %v648 = vunpack.c.l.b16 %v310
      %v649 = vunpack.c.l.b16 %v311
      %v650 = vunpack.c.l.b16 %v312
      %v651 = vunpack.c.l.b16 %v313
      %v652 = vunpack.c.l.b16 %v314
      %v653 = vunpack.c.l.b16 %v315
      %v654 = vunpack.c.l.b16 %v316
      %v655 = vunpack.c.l.b16 %v317
      %v656 = vunpack.c.l.b16 %v318
      %v657 = vunpack.c.l.b16 %v319
      %v658 = vunpack.c.l.b16 %v320
      %v659 = vunpack.c.l.b16 %v321
      %v660 = vunpack.c.l.b16 %v322
      %v661 = vunpack.c.l.b16 %v323
      %v662 = vunpack.c.l.b16 %v324
      %v663 = vunpack.c.l.b16 %v325
      %v664 = vunpack.c.l.b16 %v326
      %v665 = vunpack.c.l.b16 %v327
      %v666 = vunpack.c.l.b16 %v328
      %v667 = vunpack.c.l.b16 %v329
      %v668 = vunpack.c.l.b16 %v330
      %v669 = vunpack.c.l.b16 %v331
      %v670 = vunpack.c.l.b16 %v332
      %v671 = vunpack.c.l.b16 %v333
      %v672 = vunpack.c.l.b16 %v334
      %v673 = vunpack.c.l.b16 %v335
      %v674 = vunpack.c.l.b16 %v336
      %v675 = vunpack.c.l.b16 %v337
      %v676 = vunpack.c.l.b16 %v338
      %v677 = vunpack.c.l.b16 %v339
      %v678 = vunpack.c.l.b16 %v340
      %v679 = vunpack.c.l.b16 %v341
      %v680 = vunpack.c.l.b16 %v342
      %v681 = vunpack.c.l.b16 %v343
      %v682 = vunpack.c.l.b16 %v344
      %v683 = vunpack.c.l.b16 %v345
      %v684 = vunpack.c.l.b16 %v346
      %v685 = vunpack.c.l.b16 %v347
      %v686 = vunpack.c.l.b16 %v348
      %v687 = vunpack.c.l.b16 %v349
      %v688 = vunpack.c.l.b16 %v350
      %v689 = vunpack.c.l.b16 %v351
      %v690 = vunpack.c.l.b16 %v352
      %v691 = vunpack.c.l.b16 %v353
      %v692 = vpack.c.b16 %v549, %v548
      %v693 = vpack.c.b16 %v551, %v550
      %v694 = vpack.c.b16 %v553, %v552
      %v695 = vpack.c.b16 %v555, %v554
      %v696 = vpack.c.b16 %v557, %v556
      %v697 = vpack.c.b16 %v559, %v558
      %v698 = vpack.c.b16 %v561, %v560
      %v699 = vpack.c.b16 %v563, %v562
      %v700 = vpack.c.b16 %v565, %v564
      %v701 = vpack.c.b16 %v567, %v566
      %v702 = vpack.c.b16 %v569, %v568
      %v703 = vpack.c.b16 %v571, %v570
      %v704 = vpack.c.b16 %v573, %v572
      %v705 = vpack.c.b16 %v575, %v574
      %v706 = vpack.c.b16 %v577, %v576
      %v707 = vpack.c.b16 %v579, %v578
      %v708 = vpack.c.b16 %v581, %v580
      %v709 = vpack.c.b16 %v583, %v582
      %v710 = vpack.c.b16 %v585, %v584
      %v711 = vpack.c.b16 %v587, %v586
      %v712 = vpack.c.b16 %v589, %v588
      %v713 = vpack.c.b16 %v591, %v590
      %v714 = vpack.c.b16 %v593, %v592
      %v715 = vpack.c.b16 %v595, %v594
      %v716 = vpack.c.b16 %v597, %v596
      %v717 = vpack.c.b16 %v599, %v598
      %v718 = vpack.c.b16 %v601, %v600
      %v719 = vpack.c.b16 %v603, %v602
      %v720 = vpack.c.b16 %v605, %v604
      %v721 = vpack.c.b16 %v607, %v606
      %v722 = vpack.c.b16 %v609, %v608
      %v723 = vpack.c.b16 %v611, %v610
      %v724 = vpack.c.b16 %v613, %v612
      %v725 = vpack.c.b16 %v615, %v614
      %v726 = vpack.c.b16 %v617, %v616
      %v727 = vpack.c.b16 %v619, %v618
      %v728 = vpack.c.b16 %v621, %v620
      %v729 = vpack.c.b16 %v623, %v622
      %v730 = vpack.c.b16 %v625, %v624
      %v731 = vpack.c.b16 %v627, %v626
      %v732 = vpack.c.b16 %v629, %v628
      %v733 = vpack.c.b16 %v631, %v630
      %v734 = vpack.c.b16 %v633, %v632
      %v735 = vpack.c.b16 %v635, %v634
      %v736 = vpack.c.b16 %v637, %v636
      %v737 = vpack.c.b16 %v639, %v638
      %v738 = vpack.c.b16 %v641, %v640
      %v739 = vpack.c.b16 %v643, %v642
      %v740 = vpack.c.b16 %v645, %v644
      %v741 = vpack.c.b16 %v647, %v646
      %v742 = vpack.c.b16 %v649, %v648
      %v743 = vpack.c.b16 %v651, %v650
      %v744 = vpack.c.b16 %v653, %v652
      %v745 = vpack.c.b16 %v655, %v654
      %v746 = vpack.c.b16 %v657, %v656
      %v747 = vpack.c.b16 %v659, %v658
      %v748 = vpack.c.b16 %v661, %v660
      %v749 = vpack.c.b16 %v663, %v662
      %v750 = vpack.c.b16 %v665, %v664
      %v751 = vpack.c.b16 %v667, %v666
      %v752 = vpack.c.b16 %v669, %v668
      %v753 = vpack.c.b16 %v671, %v670
      %v754 = vpack.c.b16 %v673, %v672
      %v755 = vpack.c.b16 %v675, %v674
      %v756 = vpack.c.b16 %v677, %v676
      %v757 = vpack.c.b16 %v679, %v678
      %v758 = vpack.c.b16 %v681, %v680
      %v759 = vpack.c.b16 %v683, %v682
      %v760 = vpack.c.b16 %v685, %v684
      %v761 = vpack.c.b16 %v687, %v686
      %v762 = vpack.c.b16 %v689, %v688
      %v763 = vpack.c.b16 %v691, %v690
      %836 = vmatprep.subr.bf16.mxu0 0
      %837 = vmatpush1.bf16.msra.mxu0 %v699
      %838 = vmatprep.subr.bf16.mxu0 0
      %839 = vmatpush1.bf16.msra.mxu0 %v698
      %840 = vmatprep.subr.bf16.mxu0 0
      %841 = vmatpush1.bf16.msra.mxu0 %v697
      %842 = vmatprep.subr.bf16.mxu0 0
      %843 = vmatpush1.bf16.msra.mxu0 %v696
      %844 = vmatprep.subr.bf16.mxu0 0
      %845 = vmatpush1.bf16.msra.mxu0 %v695
      %846 = vmatprep.subr.bf16.mxu0 0
      %847 = vmatpush1.bf16.msra.mxu0 %v694
      %848 = vmatprep.subr.bf16.mxu0 0
      %849 = vmatpush1.bf16.msra.mxu0 %v693
      %850 = vmatprep.subr.bf16.mxu0 0
      %851 = vmatpush1.bf16.msra.mxu0 %v692
      %852 = vmatprep.subr.bf16.mxu0 0
      %853 = vmatpush2.bf16.msra.mxu0 %v707
      %854 = vmatprep.subr.bf16.mxu0 0
      %855 = vmatpush2.bf16.msra.mxu0 %v706
      %856 = vmatprep.subr.bf16.mxu0 0
      %857 = vmatpush2.bf16.msra.mxu0 %v705
      %858 = vmatprep.subr.bf16.mxu0 0
      %859 = vmatpush2.bf16.msra.mxu0 %v704
      %860 = vmatprep.subr.bf16.mxu0 0
      %861 = vmatpush2.bf16.msra.mxu0 %v703
      %862 = vmatprep.subr.bf16.mxu0 0
      %863 = vmatpush2.bf16.msra.mxu0 %v702
      %864 = vmatprep.subr.bf16.mxu0 0
      %865 = vmatpush2.bf16.msra.mxu0 %v701
      %866 = vmatprep.subr.bf16.mxu0 0
      %867 = vmatpush2.bf16.msra.mxu0 %v700
      %868 = vmatprep.mubr.bf16.mxu0 %v387
      %869 = vmatmul.mubr.bf16.gmra.mxu0 %v386
      %v870 = vpop.f32.mrf.mxu0
      %v871 = vadd.f32 %v356, %v870
      %v872 = vpop.f32.mrf.mxu0
      %v873 = vpop.f32.mrf.mxu0
      %v874 = vadd.f32 %v357, %v873
      %v875 = vpop.f32.mrf.mxu0
      %876 = vdwg.mxu0
      %877 = vmatprep.subr.bf16.mxu0 0
      %878 = vmatpush1.bf16.msra.mxu0 %v715
      %879 = vmatprep.subr.bf16.mxu0 0
      %880 = vmatpush1.bf16.msra.mxu0 %v714
      %881 = vmatprep.subr.bf16.mxu0 0
      %882 = vmatpush1.bf16.msra.mxu0 %v713
      %883 = vmatprep.subr.bf16.mxu0 0
      %884 = vmatpush1.bf16.msra.mxu0 %v712
      %885 = vmatprep.subr.bf16.mxu0 0
      %886 = vmatpush1.bf16.msra.mxu0 %v711
      %887 = vmatprep.subr.bf16.mxu0 0
      %888 = vmatpush1.bf16.msra.mxu0 %v710
      %889 = vmatprep.subr.bf16.mxu0 0
      %890 = vmatpush1.bf16.msra.mxu0 %v709
      %891 = vmatprep.subr.bf16.mxu0 0
      %892 = vmatpush1.bf16.msra.mxu0 %v708
      %893 = vmatprep.subr.bf16.mxu0 0
      %894 = vmatpush2.bf16.msra.mxu0 %v723
      %895 = vmatprep.subr.bf16.mxu0 0
      %896 = vmatpush2.bf16.msra.mxu0 %v722
      %897 = vmatprep.subr.bf16.mxu0 0
      %898 = vmatpush2.bf16.msra.mxu0 %v721
      %899 = vmatprep.subr.bf16.mxu0 0
      %900 = vmatpush2.bf16.msra.mxu0 %v720
      %901 = vmatprep.subr.bf16.mxu0 0
      %902 = vmatpush2.bf16.msra.mxu0 %v719
      %903 = vmatprep.subr.bf16.mxu0 0
      %904 = vmatpush2.bf16.msra.mxu0 %v718
      %905 = vmatprep.subr.bf16.mxu0 0
      %906 = vmatpush2.bf16.msra.mxu0 %v717
      %907 = vmatprep.subr.bf16.mxu0 0
      %908 = vmatpush2.bf16.msra.mxu0 %v716
      %909 = vmatprep.mubr.bf16.mxu0 %v389
      %910 = vmatmul.mubr.bf16.gmra.mxu0 %v388
      %v911 = vpop.f32.mrf.mxu0
      %v912 = vadd.f32 %v871, %v911
      %v913 = vpop.f32.mrf.mxu0
      %v914 = vpop.f32.mrf.mxu0
      %v915 = vadd.f32 %v874, %v914
      %v916 = vpop.f32.mrf.mxu0
      %917 = vdwg.mxu0
      %918 = vmatprep.subr.bf16.mxu0 0
      %919 = vmatpush1.bf16.msra.mxu0 %v731
      %920 = vmatprep.subr.bf16.mxu0 0
      %921 = vmatpush1.bf16.msra.mxu0 %v730
      %922 = vmatprep.subr.bf16.mxu0 0
      %923 = vmatpush1.bf16.msra.mxu0 %v729
      %924 = vmatprep.subr.bf16.mxu0 0
      %925 = vmatpush1.bf16.msra.mxu0 %v728
      %926 = vmatprep.subr.bf16.mxu0 0
      %927 = vmatpush1.bf16.msra.mxu0 %v727
      %928 = vmatprep.subr.bf16.mxu0 0
      %929 = vmatpush1.bf16.msra.mxu0 %v726
      %930 = vmatprep.subr.bf16.mxu0 0
      %931 = vmatpush1.bf16.msra.mxu0 %v725
      %932 = vmatprep.subr.bf16.mxu0 0
      %933 = vmatpush1.bf16.msra.mxu0 %v724
      %934 = vmatprep.subr.bf16.mxu0 0
      %935 = vmatpush2.bf16.msra.mxu0 %v739
      %936 = vmatprep.subr.bf16.mxu0 0
      %937 = vmatpush2.bf16.msra.mxu0 %v738
      %938 = vmatprep.subr.bf16.mxu0 0
      %939 = vmatpush2.bf16.msra.mxu0 %v737
      %940 = vmatprep.subr.bf16.mxu0 0
      %941 = vmatpush2.bf16.msra.mxu0 %v736
      %942 = vmatprep.subr.bf16.mxu0 0
      %943 = vmatpush2.bf16.msra.mxu0 %v735
      %944 = vmatprep.subr.bf16.mxu0 0
      %945 = vmatpush2.bf16.msra.mxu0 %v734
      %946 = vmatprep.subr.bf16.mxu0 0
      %947 = vmatpush2.bf16.msra.mxu0 %v733
      %948 = vmatprep.subr.bf16.mxu0 0
      %949 = vmatpush2.bf16.msra.mxu0 %v732
      %950 = vmatprep.mubr.bf16.mxu0 %v391
      %951 = vmatmul.mubr.bf16.gmra.mxu0 %v390
      %v952 = vpop.f32.mrf.mxu0
      %v953 = vadd.f32 %v912, %v952
      %v954 = vpop.f32.mrf.mxu0
      %v955 = vpop.f32.mrf.mxu0
      %v956 = vadd.f32 %v915, %v955
      %v957 = vpop.f32.mrf.mxu0
      %958 = vdwg.mxu0
      %959 = vmatprep.subr.bf16.mxu0 0
      %960 = vmatpush1.bf16.msra.mxu0 %v747
      %961 = vmatprep.subr.bf16.mxu0 0
      %962 = vmatpush1.bf16.msra.mxu0 %v746
      %963 = vmatprep.subr.bf16.mxu0 0
      %964 = vmatpush1.bf16.msra.mxu0 %v745
      %965 = vmatprep.subr.bf16.mxu0 0
      %966 = vmatpush1.bf16.msra.mxu0 %v744
      %967 = vmatprep.subr.bf16.mxu0 0
      %968 = vmatpush1.bf16.msra.mxu0 %v743
      %969 = vmatprep.subr.bf16.mxu0 0
      %970 = vmatpush1.bf16.msra.mxu0 %v742
      %971 = vmatprep.subr.bf16.mxu0 0
      %972 = vmatpush1.bf16.msra.mxu0 %v741
      %973 = vmatprep.subr.bf16.mxu0 0
      %974 = vmatpush1.bf16.msra.mxu0 %v740
      %975 = vmatprep.subr.bf16.mxu0 0
      %976 = vmatpush2.bf16.msra.mxu0 %v755
      %977 = vmatprep.subr.bf16.mxu0 0
      %978 = vmatpush2.bf16.msra.mxu0 %v754
      %979 = vmatprep.subr.bf16.mxu0 0
      %980 = vmatpush2.bf16.msra.mxu0 %v753
      %981 = vmatprep.subr.bf16.mxu0 0
      %982 = vmatpush2.bf16.msra.mxu0 %v752
      %983 = vmatprep.subr.bf16.mxu0 0
      %984 = vmatpush2.bf16.msra.mxu0 %v751
      %985 = vmatprep.subr.bf16.mxu0 0
      %986 = vmatpush2.bf16.msra.mxu0 %v750
      %987 = vmatprep.subr.bf16.mxu0 0
      %988 = vmatpush2.bf16.msra.mxu0 %v749
      %989 = vmatprep.subr.bf16.mxu0 0
      %990 = vmatpush2.bf16.msra.mxu0 %v748
      %991 = vmatprep.mubr.bf16.mxu0 %v393
      %992 = vmatmul.mubr.bf16.gmra.mxu0 %v392
      %v993 = vpop.f32.mrf.mxu0
      %v994 = vadd.f32 %v953, %v993
      %v995 = vpop.f32.mrf.mxu0
      %v996 = vpop.f32.mrf.mxu0
      %v997 = vadd.f32 %v956, %v996
      %v998 = vpop.f32.mrf.mxu0
      %999 = vdwg.mxu0
      %1000 = vmatprep.subr.bf16.mxu0 0
      %1001 = vmatpush1.bf16.msra.mxu0 %v763
      %1002 = vmatprep.subr.bf16.mxu0 0
      %1003 = vmatpush1.bf16.msra.mxu0 %v762
      %1004 = vmatprep.subr.bf16.mxu0 0
      %1005 = vmatpush1.bf16.msra.mxu0 %v761
      %1006 = vmatprep.subr.bf16.mxu0 0
      %1007 = vmatpush1.bf16.msra.mxu0 %v760
      %1008 = vmatprep.subr.bf16.mxu0 0
      %1009 = vmatpush1.bf16.msra.mxu0 %v759
      %1010 = vmatprep.subr.bf16.mxu0 0
      %1011 = vmatpush1.bf16.msra.mxu0 %v758
      %1012 = vmatprep.subr.bf16.mxu0 0
      %1013 = vmatpush1.bf16.msra.mxu0 %v757
      %1014 = vmatprep.subr.bf16.mxu0 0
      %1015 = vmatpush1.bf16.msra.mxu0 %v756
      %1016 = vmatprep.subr.bf16.mxu0 0
      %1017 = vmatpush2.bf16.msra.mxu0 0
      %1018 = vmatprep.subr.bf16.mxu0 0
      %1019 = vmatpush2.bf16.msra.mxu0 0
      %1020 = vmatprep.subr.bf16.mxu0 0
      %1021 = vmatpush2.bf16.msra.mxu0 0
      %1022 = vmatprep.subr.bf16.mxu0 0
      %1023 = vmatpush2.bf16.msra.mxu0 0
      %1024 = vmatprep.subr.bf16.mxu0 0
      %1025 = vmatpush2.bf16.msra.mxu0 0
      %1026 = vmatprep.subr.bf16.mxu0 0
      %1027 = vmatpush2.bf16.msra.mxu0 0
      %1028 = vmatprep.subr.bf16.mxu0 0
      %1029 = vmatpush2.bf16.msra.mxu0 0
      %1030 = vmatprep.subr.bf16.mxu0 0
      %1031 = vmatpush2.bf16.msra.mxu0 0
      %1032 = vmatprep.mubr.bf16.mxu0 0
      %1033 = vmatmul.mubr.bf16.gmra.mxu0 %v394
      %v1034 = vpop.f32.mrf.mxu0
      %v1035 = vadd.f32 %v994, %v1034
      %v1036 = vpop.f32.mrf.mxu0
      %v1037 = vpop.f32.mrf.mxu0
      %v1038 = vadd.f32 %v997, %v1037
      %v1039 = vpop.f32.mrf.mxu0
      %1040 = vdwg.mxu0
      %v1041 = vpack.c.bf16 %v1038, %v1035
      %v1043 = vunpack.c.l.b16 %v1041
      %v1044 = vunpack.c.h.b16 %v1041
      %v1045 = vpack.c.b16 %v1043, %v1043
      %v1046 = vpack.c.b16 %v1044, %v1044
      %1049 = vst [vmem:[%s197] sm:$0xf] %v1045
      %1050 = vst [vmem:[%s197 + $0x4] sm:$0xf] %v1046
      %s1051 = smul.u32 2, %s14
      %p1052 = scmp.lt.s32.totalorder %s1051, 3
      %s1053 = scalar_select %p1052, %s1051, 3
      %s1054 = smul.addr %s1053, 4
      %s1055 = scalar_lea.vmem %s3, %s1054
      // Predicated region
      $region33: #{densenet_forward.24} parent=31 // pred_check
        %p1056 = pneg %p105
      $region34: #{densenet_forward.24} parent=31 // pred_check_branch
        %1058 = sbr.rel (%p1056) target = $region36
      $region35: #{densenet_forward.24} parent=31 // pred_region
        %s1059 = smul.u32 2, %s14
      $region36: #{densenet_forward.24} parent=31 // pred_fallthru
        _
    $region32: #{densenet_forward.24} parent=5 // pred_fallthru
      _
    %p1060 = scmp.le.s32.totalorder 2, %s9
    // Predicated region
    $region37: #{densenet_forward.24} parent=5 // pred_check
      %p1061 = pneg %p1060
    $region38: #{densenet_forward.24} parent=5 // pred_check_branch
      %1063 = sbr.rel (%p1061) target = $region40
    $region39: #{densenet_forward.24} parent=5 // pred_region
      %s1064 = ssub.s32 %s9, 2
      // Predicated region
      $region41: #{densenet_forward.24} parent=39 // pred_check
        %p1065 = pneg %p111
      $region42: #{densenet_forward.24} parent=39 // pred_check_branch
        %1067 = sbr.rel (%p1065) target = $region44
      $region43: #{densenet_forward.24} parent=39 // pred_region
        %s1068 = smul.u32 2, %s15
        %p1069 = scmp.lt.s32.totalorder %s1068, 3
        %s1070 = scalar_select %p1069, %s1068, 3
        %s1071 = smul.addr %s1070, 4
        %s1072 = scalar_lea.vmem %s3, %s1071
      $region44: #{densenet_forward.24} parent=39 // pred_fallthru
        _
    $region40: #{densenet_forward.24} parent=5 // pred_fallthru
      _
  $region6: #{densenet_forward.24} parent=0 // loop_footer
    %s13 = sadd.s32 1, %s9
  $region7: #{densenet_forward.24} parent=0 // loop_footer_branch
    %8 = sbr.rel target = $region3
  $region8: #{densenet_forward.24} parent=0 // loop_exit
    _

</llo_original>
